<compile_context>
chip_gen: v5e
topology: v5e:2x2
jax: 0.10.0
libtpu: 0.0.40
codegen_flags: <defaults>
</compile_context>

<pallas_src>
import functools

import numpy as np

import jax
import jax.numpy as jnp
from jax.experimental import pallas as pl
from jax.experimental.pallas import tpu as pltpu


# ------------------------------ Pallas kernel -------------------------------

def _encoder_kernel(x_ref, m1_ref, b1_ref, m2_ref, b2_ref, m3_ref, b3_ref,
                    m4_hbm_ref, b4_ref, s_ref, out_ref, m4_vmem, m4_sem, *,
                    num_keypoints, hw, threshold, padding):
    """Fused conv stack (as dense GEMMs) + vectorized keypoint head."""
    # Kick off the DMA of the largest, last-used weight matrix; it overlaps with
    # the first three GEMM layers and is waited on just before the convT4 dot.
    m4_copy = pltpu.make_async_copy(m4_hbm_ref, m4_vmem, m4_sem.at[0])
    m4_copy.start()

    def dense_layer(h, m_ref, b_ref, leaky):
        lhs = h if h.dtype == m_ref.dtype else h.astype(m_ref.dtype)
        y = jnp.dot(lhs, m_ref[...], preferred_element_type=jnp.float32)
        y = y + b_ref[...]
        if leaky:                                   # F.leaky_relu (slope 0.01)
            return jnp.where(y >= 0.0, y, 0.01 * y)
        return jnp.maximum(y, 0.0)                  # F.relu

    h = dense_layer(x_ref[...], m1_ref, b1_ref, True)    # conv1 (+ Normalize fold)
    h = dense_layer(h, m2_ref, b2_ref, True)             # conv2
    h = dense_layer(h, m3_ref, b3_ref, True)             # convT3
    m4_copy.wait()
    h = dense_layer(h, m4_vmem, b4_ref, False)            # convT4 -> [B, K*HW] f32

    kp = num_keypoints
    b = h.shape[0]

    # Per-keypoint amax over (H, W): K tiny, aligned lane-slice reductions.
    maxes = [jnp.max(h[:, k * hw:(k + 1) * hw], axis=-1, keepdims=True)
             for k in range(kp)]                                   # K x [B, 1]
    m_cat = jnp.concatenate(maxes, axis=-1)                        # [B, K]
    m_map = jnp.concatenate([jnp.broadcast_to(m, (b, hw)) for m in maxes],
                            axis=-1)                               # [B, K*HW]

    # One exp over all keypoints at once (max-shifted, as the reference).
    e = jnp.exp(h - m_map)                                         # [B, K*HW] f32

    # All 3K reductions (sum_e, sum_e*x, sum_e*y) with one small f32 matmul
    # against the host-built block-diagonal selector/grid matrix s_ref.
    red = jnp.dot(e, s_ref[...], preferred_element_type=jnp.float32)  # [B, 3K]
    s_sum = red[:, :kp]
    sx = red[:, kp:2 * kp]
    sy = red[:, 2 * kp:3 * kp]

    denom = s_sum + 1e-8          # matches reference: exp / (sum(exp) + 1e-8)
    ex = sx / denom               # narrow [B, K] divides, not full-map divides
    ey = sy / denom
    if padding > 0:
        ex = ex - float(padding)
        ey = ey - float(padding)

    # active_status = sigmoid(1000 * (amax - threshold)); single-exp stable form.
    z = 1000.0 * (m_cat - threshold)
    sig = 1.0 / (1.0 + jnp.exp(-z))

    out_ref[...] = jnp.concatenate([ex, ey, sig], axis=-1)         # [B, 3K]


# ---------------- host-side one-time weight transforms (f32, numpy) ----------------

def _conv2d_as_dense(w, b, h_in, w_in, stride):
    """Dense M, bias so that  vec_out = vec_in @ M + bias  ==  Conv2d(stride, pad=0),
    activations flattened channel-major (C, H, W)."""
    c_out, c_in, k, _ = w.shape
    h_out = (h_in - k) // stride + 1
    w_out = (w_in - k) // stride + 1
    mat = np.zeros((c_in * h_in * w_in, c_out * h_out * w_out), np.float32)
    ohg, owg = np.meshgrid(np.arange(h_out), np.arange(w_out), indexing="ij")
    cols_sp = (ohg * w_out + owg).ravel()
    for co in range(c_out):
        for ci in range(c_in):
            for kh in range(k):
                for kw in range(k):
                    rows = ci * h_in * w_in + ((stride * ohg + kh) * w_in
                                               + (stride * owg + kw)).ravel()
                    mat[rows, co * h_out * w_out + cols_sp] += w[co, ci, kh, kw]
    bias = np.repeat(np.asarray(b, np.float32), h_out * w_out)
    return mat, bias, h_out, w_out


def _convT2d_as_dense(w, b, h_in, w_in, stride):
    """Same, for ConvTranspose2d (PyTorch weight layout [Cin, Cout, k, k],
    padding=0, output_padding=0). No zero-dilated buffer is ever built."""
    c_in, c_out, k, _ = w.shape
    h_out = (h_in - 1) * stride + k
    w_out = (w_in - 1) * stride + k
    mat = np.zeros((c_in * h_in * w_in, c_out * h_out * w_out), np.float32)
    ihg, iwg = np.meshgrid(np.arange(h_in), np.arange(w_in), indexing="ij")
    rows_sp = (ihg * w_in + iwg).ravel()
    for ci in range(c_in):
        for co in range(c_out):
            for kh in range(k):
                for kw in range(k):
                    cols = co * h_out * w_out + ((stride * ihg + kh) * w_out
                                                 + (stride * iwg + kw)).ravel()
                    mat[ci * h_in * w_in + rows_sp, cols] += w[ci, co, kh, kw]
    bias = np.repeat(np.asarray(b, np.float32), h_out * w_out)
    return mat, bias, h_out, w_out


def build_encoder_params(params, dataset_stats, config, mm_dtype=jnp.bfloat16):
    """Pre-lower every conv layer to a dense GEMM on channel-major-flattened
    activations; fold transforms.Normalize into layer 1 (exact, in f32); build the
    keypoint-head selector/grid reduction matrix."""
    c = config["channels"]
    height, width = config["height"], config["width"]
    kp = int(config["num_keypoints"])
    mean = np.asarray(dataset_stats[0], np.float32)
    std = np.asarray(dataset_stats[1], np.float32)

    w1 = np.asarray(params["w1"], np.float32); b1 = np.asarray(params["b1"], np.float32)
    w2 = np.asarray(params["w2"], np.float32); b2 = np.asarray(params["b2"], np.float32)
    w3 = np.asarray(params["w3"], np.float32); b3 = np.asarray(params["b3"], np.float32)
    w4 = np.asarray(params["w4"], np.float32); b4 = np.asarray(params["b4"], np.float32)

    m1, v1, h1, w1o = _conv2d_as_dense(w1, b1, height, width, 2)
    inv_std = np.repeat(1.0 / std, height * width)
    mean_f = np.repeat(mean, height * width)
    v1 = v1 - (mean_f * inv_std) @ m1          # fold (x - mean) / std into layer 1
    m1 = m1 * inv_std[:, None]

    m2, v2, h2, w2o = _conv2d_as_dense(w2, b2, h1, w1o, 2)
    m3, v3, h3, w3o = _convT2d_as_dense(w3, b3, h2, w2o, 2)
    m4, v4, h4, w4o = _convT2d_as_dense(w4, b4, h3, w3o, 2)

    # Keypoint-head reduction matrix: columns [sum_k | sum*x_k | sum*y_k].
    # torch.meshgrid([arange(H), arange(W)]) 'ij': y varies slow, x varies fast.
    hw = h4 * w4o
    yg, xg = np.meshgrid(np.arange(h4), np.arange(w4o), indexing="ij")
    xg = xg.ravel().astype(np.float32)
    yg = yg.ravel().astype(np.float32)
    smat = np.zeros((kp * hw, 3 * kp), np.float32)
    for k in range(kp):
        rows = slice(k * hw, (k + 1) * hw)
        smat[rows, k] = 1.0
        smat[rows, kp + k] = xg
        smat[rows, 2 * kp + k] = yg

    weights = []
    for m, v in ((m1, v1), (m2, v2), (m3, v3), (m4, v4)):
        weights.append(jnp.asarray(m, mm_dtype))
        weights.append(jnp.asarray(v.reshape(1, -1), jnp.float32))
    weights.append(jnp.asarray(smat, jnp.float32))
    return weights, (h4, w4o)


# ------------------------------ forward wrapper ------------------------------

def make_encoder_forward(config, out_hw):
    kp_k = int(config["num_keypoints"])
    out_h, out_w = int(out_hw[0]), int(out_hw[1])
    hw = out_h * out_w
    kern = functools.partial(
        _encoder_kernel, num_keypoints=kp_k, hw=hw,
        threshold=float(config["activation_score_threshold"]),
        padding=int(config["padding"]))

    def _full(shape):
        # whole-array block -> exempt from (8,128) block-shape divisibility.
        return pl.BlockSpec(shape, lambda i: (0, 0))

    @jax.jit
    def forward(x, m1, v1, m2, v2, m3, v3, m4, v4, smat):
        n, sf, c, h, w = x.shape
        b = n * sf
        b_pad = ((b + 7) // 8) * 8             # fill f32 sublane / MXU row groups
        # bf16 input: halves input DMA bytes, no in-kernel cast for layer 1.
        x_flat = x.astype(jnp.bfloat16).reshape(b, c * h * w)
        if b_pad != b:
            x_flat = jnp.pad(x_flat, ((0, b_pad - b), (0, 0)))

        def _nbytes(a):
            return a.size * a.dtype.itemsize

        flops = int(2 * b_pad * (m1.shape[0] * m1.shape[1]
                                 + m2.shape[0] * m2.shape[1]
                                 + m3.shape[0] * m3.shape[1]
                                 + m4.shape[0] * m4.shape[1]
                                 + smat.shape[0] * smat.shape[1]))
        transcendentals = int(b_pad * (kp_k * hw + kp_k))
        bytes_accessed = int(sum(_nbytes(a) for a in
                                 (x_flat, m1, v1, m2, v2, m3, v3, m4, v4, smat))
                             + b_pad * 3 * kp_k * 4)

        out = pl.pallas_call(
            kern,
            out_shape=jax.ShapeDtypeStruct((b_pad, 3 * kp_k), jnp.float32),
            grid=(1,),
            in_specs=[_full(x_flat.shape),
                      _full(m1.shape), _full(v1.shape),
                      _full(m2.shape), _full(v2.shape),
                      _full(m3.shape), _full(v3.shape),
                      pl.BlockSpec(memory_space=pl.ANY),   # m4: manual overlapped DMA
                      _full(v4.shape),
                      _full(smat.shape)],
            out_specs=_full((b_pad, 3 * kp_k)),
            scratch_shapes=[pltpu.VMEM(m4.shape, m4.dtype),
                            pltpu.SemaphoreType.DMA((1,))],
            compiler_params=pltpu.CompilerParams(
                dimension_semantics=("arbitrary",)),
            cost_estimate=pl.CostEstimate(flops=flops,
                                          transcendentals=transcendentals,
                                          bytes_accessed=bytes_accessed),
        )(x_flat, m1, v1, m2, v2, m3, v3, m4, v4, smat)

        out = out[:b]
        kp = jnp.stack([out[:, :kp_k],            # expected_x
                        out[:, kp_k:2 * kp_k],    # expected_y
                        out[:, 2 * kp_k:]],       # active_status
                       axis=-1)
        return kp.reshape(n, sf, kp_k, 3)

    return forward


# ---------------------------------- main -------------------------------------

if __name__ == "__main__":
    config = dict(num_keypoints=4, width=16, height=16, channels=3,
                  batch_norm=False, padding=0, activation_score_threshold=0.5)
    kp_k = config["num_keypoints"]
    c = config["channels"]
    k4 = 3 + 2 * config["padding"] + 1             # conv4 kernel size

    key = jax.random.PRNGKey(0)
    ks = jax.random.split(key, 9)
    # weights ~ N(0,1) (torch.nn.init.normal_); biases small & deterministic
    params = {
        "w1": jax.random.normal(ks[0], (2 * kp_k, c, 3, 3), jnp.float32),
        "b1": 0.01 * jax.random.normal(ks[1], (2 * kp_k,), jnp.float32),
        "w2": jax.random.normal(ks[2], (kp_k, 2 * kp_k, 3, 3), jnp.float32),
        "b2": 0.01 * jax.random.normal(ks[3], (kp_k,), jnp.float32),
        "w3": jax.random.normal(ks[4], (kp_k, 2 * kp_k, 3, 3), jnp.float32),   # ConvT
        "b3": 0.01 * jax.random.normal(ks[5], (2 * kp_k,), jnp.float32),
        "w4": jax.random.normal(ks[6], (2 * kp_k, kp_k, k4, k4), jnp.float32),  # ConvT
        "b4": 0.01 * jax.random.normal(ks[7], (kp_k,), jnp.float32),
    }
    dataset_stats = (np.array([0.1, 0.2, 0.3], np.float32),
                     np.array([0.5, 0.5, 0.5], np.float32))

    weights, out_hw = build_encoder_params(params, dataset_stats, config)
    forward = make_encoder_forward(config, out_hw)

    n, sf, h, w = 2, 2, config["height"], config["width"]
    x = jax.random.normal(ks[8], (n, sf, c, h, w), jnp.float32)

    kp = forward(x, *weights)
    kp = jax.block_until_ready(kp)
    assert kp.shape == (n, sf, kp_k, 3), kp.shape
    assert bool(jnp.all(jnp.isfinite(kp)))
    print("KERNEL_OK")
</pallas_src>

<mosaic_0001>
module attributes {stable_mosaic.version = 11 : i64} {
  func.func @_encoder_kernel(%arg0: i32, %arg1: memref<8x768xbf16, #tpu.memory_space<vmem>>, %arg2: memref<768x392xbf16, #tpu.memory_space<vmem>>, %arg3: memref<1x392xf32, #tpu.memory_space<vmem>>, %arg4: memref<392x36xbf16, #tpu.memory_space<vmem>>, %arg5: memref<1x36xf32, #tpu.memory_space<vmem>>, %arg6: memref<36x392xbf16, #tpu.memory_space<vmem>>, %arg7: memref<1x392xf32, #tpu.memory_space<vmem>>, %arg8: memref<392x1024xbf16, #tpu.memory_space<any>>, %arg9: memref<1x1024xf32, #tpu.memory_space<vmem>>, %arg10: memref<1024x12xf32, #tpu.memory_space<vmem>>, %arg11: memref<8x12xf32, #tpu.memory_space<vmem>>, %arg12: memref<392x1024xbf16, #tpu.memory_space<vmem>>, %arg13: memref<1x!tpu.dma_semaphore, #tpu.memory_space<semaphore_mem>>) attributes {dimension_semantics = [#tpu.dimension_semantics<arbitrary>], iteration_bounds = array<i64: 1>, scalar_prefetch = 0 : i64, scratch_operands = 2 : i64, tpu.core_type = #tpu.core_type<tc>, window_params = [{pipeline_mode = #tpu.pipeline_mode<synchronous>, transform_indices = @transform_0, window_bounds = array<i64: 8, 768>}, {pipeline_mode = #tpu.pipeline_mode<synchronous>, transform_indices = @transform_1, window_bounds = array<i64: 768, 392>}, {pipeline_mode = #tpu.pipeline_mode<synchronous>, transform_indices = @transform_2, window_bounds = array<i64: 1, 392>}, {pipeline_mode = #tpu.pipeline_mode<synchronous>, transform_indices = @transform_3, window_bounds = array<i64: 392, 36>}, {pipeline_mode = #tpu.pipeline_mode<synchronous>, transform_indices = @transform_4, window_bounds = array<i64: 1, 36>}, {pipeline_mode = #tpu.pipeline_mode<synchronous>, transform_indices = @transform_5, window_bounds = array<i64: 36, 392>}, {pipeline_mode = #tpu.pipeline_mode<synchronous>, transform_indices = @transform_6, window_bounds = array<i64: 1, 392>}, {}, {pipeline_mode = #tpu.pipeline_mode<synchronous>, transform_indices = @transform_8, window_bounds = array<i64: 1, 1024>}, {pipeline_mode = #tpu.pipeline_mode<synchronous>, transform_indices = @transform_9, window_bounds = array<i64: 1024, 12>}, {pipeline_mode = #tpu.pipeline_mode<synchronous>, transform_indices = @transform_10, window_bounds = array<i64: 8, 12>}]} {
    %c0_i32 = arith.constant 0 : i32
    %0 = tpu.memref_slice %arg13[%c0_i32] : memref<1x!tpu.dma_semaphore, #tpu.memory_space<semaphore_mem>> -> memref<1x!tpu.dma_semaphore, #tpu.memory_space<semaphore_mem>>
    %1 = tpu.memref_squeeze %0 : memref<1x!tpu.dma_semaphore, #tpu.memory_space<semaphore_mem>> -> memref<!tpu.dma_semaphore, #tpu.memory_space<semaphore_mem>>
    tpu.enqueue_dma source(%arg8 : memref<392x1024xbf16, #tpu.memory_space<any>>) target(%arg12 : memref<392x1024xbf16, #tpu.memory_space<vmem>>) target_semaphore(%1 : memref<!tpu.dma_semaphore, #tpu.memory_space<semaphore_mem>>)
    %c0 = arith.constant 0 : index
    %c0_0 = arith.constant 0 : index
    %2 = vector.load %arg1[%c0, %c0_0] : memref<8x768xbf16, #tpu.memory_space<vmem>>, vector<8x768xbf16>
    %c0_1 = arith.constant 0 : index
    %c0_2 = arith.constant 0 : index
    %3 = vector.load %arg2[%c0_1, %c0_2] : memref<768x392xbf16, #tpu.memory_space<vmem>>, vector<768x392xbf16>
    %cst = arith.constant dense<0.000000e+00> : vector<8x392xf32>
    %4 = tpu.matmul %2, %3, %cst {dimension_numbers = #tpu.dot_dimension_numbers<[1], [0], [0], [1], [0, 0, 1, 1], [], []>} : vector<8x768xbf16>, vector<768x392xbf16>, vector<8x392xf32> -> vector<8x392xf32>
    %c0_3 = arith.constant 0 : index
    %c0_4 = arith.constant 0 : index
    %5 = vector.load %arg3[%c0_3, %c0_4] : memref<1x392xf32, #tpu.memory_space<vmem>>, vector<1x392xf32>
    %6 = vector.broadcast %5 : vector<1x392xf32> to vector<8x392xf32>
    %7 = arith.addf %4, %6 : vector<8x392xf32>
    %cst_5 = arith.constant 0.000000e+00 : f32
    %8 = vector.broadcast %cst_5 : f32 to vector<8x392xf32>
    %9 = arith.cmpf oge, %7, %8 : vector<8x392xf32>
    %cst_6 = arith.constant 0.00999999977 : f32
    %10 = vector.broadcast %cst_6 : f32 to vector<8x392xf32>
    %11 = arith.mulf %10, %7 : vector<8x392xf32>
    %12 = arith.select %9, %7, %11 : vector<8x392xi1>, vector<8x392xf32>
    %13 = arith.truncf %12 : vector<8x392xf32> to vector<8x392xbf16>
    %c0_7 = arith.constant 0 : index
    %c0_8 = arith.constant 0 : index
    %14 = vector.load %arg4[%c0_7, %c0_8] : memref<392x36xbf16, #tpu.memory_space<vmem>>, vector<392x36xbf16>
    %cst_9 = arith.constant dense<0.000000e+00> : vector<8x36xf32>
    %15 = tpu.matmul %13, %14, %cst_9 {dimension_numbers = #tpu.dot_dimension_numbers<[1], [0], [0], [1], [0, 0, 1, 1], [], []>} : vector<8x392xbf16>, vector<392x36xbf16>, vector<8x36xf32> -> vector<8x36xf32>
    %c0_10 = arith.constant 0 : index
    %c0_11 = arith.constant 0 : index
    %16 = vector.load %arg5[%c0_10, %c0_11] : memref<1x36xf32, #tpu.memory_space<vmem>>, vector<1x36xf32>
    %17 = vector.broadcast %16 : vector<1x36xf32> to vector<8x36xf32>
    %18 = arith.addf %15, %17 : vector<8x36xf32>
    %cst_12 = arith.constant 0.000000e+00 : f32
    %19 = vector.broadcast %cst_12 : f32 to vector<8x36xf32>
    %20 = arith.cmpf oge, %18, %19 : vector<8x36xf32>
    %cst_13 = arith.constant 0.00999999977 : f32
    %21 = vector.broadcast %cst_13 : f32 to vector<8x36xf32>
    %22 = arith.mulf %21, %18 : vector<8x36xf32>
    %23 = arith.select %20, %18, %22 : vector<8x36xi1>, vector<8x36xf32>
    %24 = arith.truncf %23 : vector<8x36xf32> to vector<8x36xbf16>
    %c0_14 = arith.constant 0 : index
    %c0_15 = arith.constant 0 : index
    %25 = vector.load %arg6[%c0_14, %c0_15] : memref<36x392xbf16, #tpu.memory_space<vmem>>, vector<36x392xbf16>
    %cst_16 = arith.constant dense<0.000000e+00> : vector<8x392xf32>
    %26 = tpu.matmul %24, %25, %cst_16 {dimension_numbers = #tpu.dot_dimension_numbers<[1], [0], [0], [1], [0, 0, 1, 1], [], []>} : vector<8x36xbf16>, vector<36x392xbf16>, vector<8x392xf32> -> vector<8x392xf32>
    %c0_17 = arith.constant 0 : index
    %c0_18 = arith.constant 0 : index
    %27 = vector.load %arg7[%c0_17, %c0_18] : memref<1x392xf32, #tpu.memory_space<vmem>>, vector<1x392xf32>
    %28 = vector.broadcast %27 : vector<1x392xf32> to vector<8x392xf32>
    %29 = arith.addf %26, %28 : vector<8x392xf32>
    %cst_19 = arith.constant 0.000000e+00 : f32
    %30 = vector.broadcast %cst_19 : f32 to vector<8x392xf32>
    %31 = arith.cmpf oge, %29, %30 : vector<8x392xf32>
    %cst_20 = arith.constant 0.00999999977 : f32
    %32 = vector.broadcast %cst_20 : f32 to vector<8x392xf32>
    %33 = arith.mulf %32, %29 : vector<8x392xf32>
    %34 = arith.select %31, %29, %33 : vector<8x392xi1>, vector<8x392xf32>
    %c0_i32_21 = arith.constant 0 : i32
    %35 = tpu.memref_slice %arg13[%c0_i32_21] : memref<1x!tpu.dma_semaphore, #tpu.memory_space<semaphore_mem>> -> memref<1x!tpu.dma_semaphore, #tpu.memory_space<semaphore_mem>>
    %36 = tpu.memref_squeeze %35 : memref<1x!tpu.dma_semaphore, #tpu.memory_space<semaphore_mem>> -> memref<!tpu.dma_semaphore, #tpu.memory_space<semaphore_mem>>
    tpu.wait_dma2 semaphore(%36 : memref<!tpu.dma_semaphore, #tpu.memory_space<semaphore_mem>>) src(%arg8 : memref<392x1024xbf16, #tpu.memory_space<any>>) dst(%arg12 : memref<392x1024xbf16, #tpu.memory_space<vmem>>)
    %37 = arith.truncf %34 : vector<8x392xf32> to vector<8x392xbf16>
    %c0_22 = arith.constant 0 : index
    %c0_23 = arith.constant 0 : index
    %38 = vector.load %arg12[%c0_22, %c0_23] : memref<392x1024xbf16, #tpu.memory_space<vmem>>, vector<392x1024xbf16>
    %cst_24 = arith.constant dense<0.000000e+00> : vector<8x1024xf32>
    %39 = tpu.matmul %37, %38, %cst_24 {dimension_numbers = #tpu.dot_dimension_numbers<[1], [0], [0], [1], [0, 0, 1, 1], [], []>} : vector<8x392xbf16>, vector<392x1024xbf16>, vector<8x1024xf32> -> vector<8x1024xf32>
    %c0_25 = arith.constant 0 : index
    %c0_26 = arith.constant 0 : index
    %40 = vector.load %arg9[%c0_25, %c0_26] : memref<1x1024xf32, #tpu.memory_space<vmem>>, vector<1x1024xf32>
    %41 = vector.broadcast %40 : vector<1x1024xf32> to vector<8x1024xf32>
    %42 = arith.addf %39, %41 : vector<8x1024xf32>
    %cst_27 = arith.constant 0.000000e+00 : f32
    %43 = vector.broadcast %cst_27 : f32 to vector<8x1024xf32>
    %44 = arith.maximumf %42, %43 : vector<8x1024xf32>
    %45 = vector.extract_strided_slice %44 {offsets = [0, 0], sizes = [8, 256], strides = [1, 1]} : vector<8x1024xf32> to vector<8x256xf32>
    %cst_28 = arith.constant dense<0xFF800000> : vector<8xf32>
    %46 = vector.multi_reduction <maximumf>, %45, %cst_28 [1] : vector<8x256xf32> to vector<8xf32>
    %47 = vector.shape_cast %46 : vector<8xf32> to vector<8x1xf32>
    %48 = vector.extract_strided_slice %44 {offsets = [0, 256], sizes = [8, 256], strides = [1, 1]} : vector<8x1024xf32> to vector<8x256xf32>
    %cst_29 = arith.constant dense<0xFF800000> : vector<8xf32>
    %49 = vector.multi_reduction <maximumf>, %48, %cst_29 [1] : vector<8x256xf32> to vector<8xf32>
    %50 = vector.shape_cast %49 : vector<8xf32> to vector<8x1xf32>
    %51 = vector.extract_strided_slice %44 {offsets = [0, 512], sizes = [8, 256], strides = [1, 1]} : vector<8x1024xf32> to vector<8x256xf32>
    %cst_30 = arith.constant dense<0xFF800000> : vector<8xf32>
    %52 = vector.multi_reduction <maximumf>, %51, %cst_30 [1] : vector<8x256xf32> to vector<8xf32>
    %53 = vector.shape_cast %52 : vector<8xf32> to vector<8x1xf32>
    %54 = vector.extract_strided_slice %44 {offsets = [0, 768], sizes = [8, 256], strides = [1, 1]} : vector<8x1024xf32> to vector<8x256xf32>
    %cst_31 = arith.constant dense<0xFF800000> : vector<8xf32>
    %55 = vector.multi_reduction <maximumf>, %54, %cst_31 [1] : vector<8x256xf32> to vector<8xf32>
    %56 = vector.shape_cast %55 : vector<8xf32> to vector<8x1xf32>
    %57 = tpu.concatenate %47, %50, %53, %56 in 1 : vector<8x1xf32>, vector<8x1xf32>, vector<8x1xf32>, vector<8x1xf32> -> vector<8x4xf32>
    %58 = vector.shape_cast %47 : vector<8x1xf32> to vector<8x1xf32>
    %59 = vector.broadcast %58 : vector<8x1xf32> to vector<8x256xf32>
    %60 = vector.shape_cast %50 : vector<8x1xf32> to vector<8x1xf32>
    %61 = vector.broadcast %60 : vector<8x1xf32> to vector<8x256xf32>
    %62 = vector.shape_cast %53 : vector<8x1xf32> to vector<8x1xf32>
    %63 = vector.broadcast %62 : vector<8x1xf32> to vector<8x256xf32>
    %64 = vector.shape_cast %56 : vector<8x1xf32> to vector<8x1xf32>
    %65 = vector.broadcast %64 : vector<8x1xf32> to vector<8x256xf32>
    %66 = tpu.concatenate %59, %61, %63, %65 in 1 : vector<8x256xf32>, vector<8x256xf32>, vector<8x256xf32>, vector<8x256xf32> -> vector<8x1024xf32>
    %67 = arith.subf %44, %66 : vector<8x1024xf32>
    %68 = math.exp %67 : vector<8x1024xf32>
    %c0_32 = arith.constant 0 : index
    %c0_33 = arith.constant 0 : index
    %69 = vector.load %arg10[%c0_32, %c0_33] : memref<1024x12xf32, #tpu.memory_space<vmem>>, vector<1024x12xf32>
    %cst_34 = arith.constant dense<0.000000e+00> : vector<8x12xf32>
    %70 = tpu.matmul %68, %69, %cst_34 {dimension_numbers = #tpu.dot_dimension_numbers<[1], [0], [0], [1], [0, 0, 1, 1], [], []>} : vector<8x1024xf32>, vector<1024x12xf32>, vector<8x12xf32> -> vector<8x12xf32>
    %71 = vector.extract_strided_slice %70 {offsets = [0, 0], sizes = [8, 4], strides = [1, 1]} : vector<8x12xf32> to vector<8x4xf32>
    %72 = vector.extract_strided_slice %70 {offsets = [0, 4], sizes = [8, 4], strides = [1, 1]} : vector<8x12xf32> to vector<8x4xf32>
    %73 = vector.extract_strided_slice %70 {offsets = [0, 8], sizes = [8, 4], strides = [1, 1]} : vector<8x12xf32> to vector<8x4xf32>
    %cst_35 = arith.constant 9.99999993E-9 : f32
    %74 = vector.broadcast %cst_35 : f32 to vector<8x4xf32>
    %75 = arith.addf %71, %74 : vector<8x4xf32>
    %76 = arith.divf %72, %75 : vector<8x4xf32>
    %77 = arith.divf %73, %75 : vector<8x4xf32>
    %cst_36 = arith.constant 5.000000e-01 : f32
    %78 = vector.broadcast %cst_36 : f32 to vector<8x4xf32>
    %79 = arith.subf %57, %78 : vector<8x4xf32>
    %cst_37 = arith.constant 1.000000e+03 : f32
    %80 = vector.broadcast %cst_37 : f32 to vector<8x4xf32>
    %81 = arith.mulf %80, %79 : vector<8x4xf32>
    %cst_38 = arith.constant 0.000000e+00 : f32
    %82 = vector.broadcast %cst_38 : f32 to vector<8x4xf32>
    %83 = arith.subf %82, %81 : vector<8x4xf32>
    %84 = math.exp %83 : vector<8x4xf32>
    %cst_39 = arith.constant 1.000000e+00 : f32
    %85 = vector.broadcast %cst_39 : f32 to vector<8x4xf32>
    %86 = arith.addf %85, %84 : vector<8x4xf32>
    %cst_40 = arith.constant 1.000000e+00 : f32
    %87 = vector.broadcast %cst_40 : f32 to vector<8x4xf32>
    %88 = arith.divf %87, %86 : vector<8x4xf32>
    %89 = tpu.concatenate %76, %77, %88 in 1 : vector<8x4xf32>, vector<8x4xf32>, vector<8x4xf32> -> vector<8x12xf32>
    %c0_41 = arith.constant 0 : index
    %c0_42 = arith.constant 0 : index
    %90 = vector.load %arg11[%c0_41, %c0_42] : memref<8x12xf32, #tpu.memory_space<vmem>>, vector<8x12xf32>
    tpu.vector_store %arg11[%c0_41, %c0_42], %89 {strides = array<i32>} : memref<8x12xf32, #tpu.memory_space<vmem>>, vector<8x12xf32>,
    return
  }
  func.func @transform_0(%arg0: i32) -> (i32, i32) {
    %c0_i32 = arith.constant 0 : i32
    %c0_i32_0 = arith.constant 0 : i32
    %c0_i32_1 = arith.constant 0 : i32
    return %c0_i32, %c0_i32_0 : i32, i32
  }
  func.func @transform_1(%arg0: i32) -> (i32, i32) {
    %c0_i32 = arith.constant 0 : i32
    %c0_i32_0 = arith.constant 0 : i32
    %c0_i32_1 = arith.constant 0 : i32
    return %c0_i32, %c0_i32_0 : i32, i32
  }
  func.func @transform_2(%arg0: i32) -> (i32, i32) {
    %c0_i32 = arith.constant 0 : i32
    %c0_i32_0 = arith.constant 0 : i32
    %c0_i32_1 = arith.constant 0 : i32
    return %c0_i32, %c0_i32_0 : i32, i32
  }
  func.func @transform_3(%arg0: i32) -> (i32, i32) {
    %c0_i32 = arith.constant 0 : i32
    %c0_i32_0 = arith.constant 0 : i32
    %c0_i32_1 = arith.constant 0 : i32
    return %c0_i32, %c0_i32_0 : i32, i32
  }
  func.func @transform_4(%arg0: i32) -> (i32, i32) {
    %c0_i32 = arith.constant 0 : i32
    %c0_i32_0 = arith.constant 0 : i32
    %c0_i32_1 = arith.constant 0 : i32
    return %c0_i32, %c0_i32_0 : i32, i32
  }
  func.func @transform_5(%arg0: i32) -> (i32, i32) {
    %c0_i32 = arith.constant 0 : i32
    %c0_i32_0 = arith.constant 0 : i32
    %c0_i32_1 = arith.constant 0 : i32
    return %c0_i32, %c0_i32_0 : i32, i32
  }
  func.func @transform_6(%arg0: i32) -> (i32, i32) {
    %c0_i32 = arith.constant 0 : i32
    %c0_i32_0 = arith.constant 0 : i32
    %c0_i32_1 = arith.constant 0 : i32
    return %c0_i32, %c0_i32_0 : i32, i32
  }
  func.func @transform_8(%arg0: i32) -> (i32, i32) {
    %c0_i32 = arith.constant 0 : i32
    %c0_i32_0 = arith.constant 0 : i32
    %c0_i32_1 = arith.constant 0 : i32
    return %c0_i32, %c0_i32_0 : i32, i32
  }
  func.func @transform_9(%arg0: i32) -> (i32, i32) {
    %c0_i32 = arith.constant 0 : i32
    %c0_i32_0 = arith.constant 0 : i32
    %c0_i32_1 = arith.constant 0 : i32
    return %c0_i32, %c0_i32_0 : i32, i32
  }
  func.func @transform_10(%arg0: i32) -> (i32, i32) {
    %c0_i32 = arith.constant 0 : i32
    %c0_i32_0 = arith.constant 0 : i32
    %c0_i32_1 = arith.constant 0 : i32
    return %c0_i32, %c0_i32_0 : i32, i32
  }
}

</mosaic_0001>

<llo_original>
// kernel: forward.1
$region0: #{forward.1}
  #allocation0 [shape = 'u32[]', space=smem, size = 0x4, offset = 0x4, fixed_abs, tag = 'smem constant byte address 0x4 - core index']
  #allocation1 [shape = 'u32[72,128]{1,0:T(1,128)}', space=vmem, size = 0x9000, scoped, tag = 'internal scratch']
  #allocation2 [shape = 'bf16[392,1024]{1,0:T(8,128)(2,1)}', space=vmem, size = 0xc4000, scoped, tag = 'scratch operand']
  #allocation3 [shape = 's32[1]{0}', space=sflag, size = 0x4, scoped, tag = 'scratch operand']
  #allocation4 [shape = 's32[]', space=sflag, size = 0x4, offset = 0, fixed_abs, tag = 'sflag constant byte address 0x0 - dummy sync flag']
  %s0 = inlined_call_operand.vmem [shape: bf16[8,768], index: 0, kind: input, shape index: {}]
  %s1 = inlined_call_operand.vmem [shape: bf16[768,392], index: 1, kind: input, shape index: {}]
  %s2 = inlined_call_operand.vmem [shape: f32[1,392], index: 2, kind: input, shape index: {}]
  %s3 = inlined_call_operand.vmem [shape: bf16[392,36], index: 3, kind: input, shape index: {}]
  %s4 = inlined_call_operand.vmem [shape: f32[1,36], index: 4, kind: input, shape index: {}]
  %s5 = inlined_call_operand.vmem [shape: bf16[36,392], index: 5, kind: input, shape index: {}]
  %s6 = inlined_call_operand.vmem [shape: f32[1,392], index: 6, kind: input, shape index: {}]
  %s7 = inlined_call_operand.vmem [shape: bf16[392,1024], index: 7, kind: input, shape index: {}]
  %s8 = inlined_call_operand.vmem [shape: f32[1,1024], index: 8, kind: input, shape index: {}]
  %s9 = inlined_call_operand.vmem [shape: f32[1024,12], index: 9, kind: input, shape index: {}]
  %s10 = inlined_call_operand.vmem [shape: f32[8,12], index: 10, kind: output, shape index: {}]
  %s11 = sld [smem:[#allocation0]]
  $region65: #{forward.1} parent=0
    _
  %s13 = ssub.s32 1, %s11
  %s14 = scalar_select 0, %s13, %s11
  // Predicated region
  $region2: #{forward.1} parent=0 // pred_check
    _
  $region3: #{forward.1} parent=0 // pred_check_branch
    %16 = sbr.rel (0) target = $region5
  $region4: #{forward.1} parent=0 // pred_region
    _
  $region5: #{forward.1} parent=0 // pred_fallthru
    _
  // Predicated region
  $region6: #{forward.1} parent=0 // pred_check
    _
  $region7: #{forward.1} parent=0 // pred_check_branch
    %18 = sbr.rel (0) target = $region9
  $region8: #{forward.1} parent=0 // pred_region
    _
  $region9: #{forward.1} parent=0 // pred_fallthru
    _
  // Predicated region
  $region10: #{forward.1} parent=0 // pred_check
    _
  $region11: #{forward.1} parent=0 // pred_check_branch
    %20 = sbr.rel (0) target = $region13
  $region12: #{forward.1} parent=0 // pred_region
    _
  $region13: #{forward.1} parent=0 // pred_fallthru
    _
  // Predicated region
  $region14: #{forward.1} parent=0 // pred_check
    _
  $region15: #{forward.1} parent=0 // pred_check_branch
    %22 = sbr.rel (0) target = $region17
  $region16: #{forward.1} parent=0 // pred_region
    _
  $region17: #{forward.1} parent=0 // pred_fallthru
    _
  // Predicated region
  $region18: #{forward.1} parent=0 // pred_check
    _
  $region19: #{forward.1} parent=0 // pred_check_branch
    %24 = sbr.rel (0) target = $region21
  $region20: #{forward.1} parent=0 // pred_region
    _
  $region21: #{forward.1} parent=0 // pred_fallthru
    _
  // Predicated region
  $region22: #{forward.1} parent=0 // pred_check
    _
  $region23: #{forward.1} parent=0 // pred_check_branch
    %26 = sbr.rel (0) target = $region25
  $region24: #{forward.1} parent=0 // pred_region
    _
  $region25: #{forward.1} parent=0 // pred_fallthru
    _
  // Predicated region
  $region26: #{forward.1} parent=0 // pred_check
    _
  $region27: #{forward.1} parent=0 // pred_check_branch
    %28 = sbr.rel (0) target = $region29
  $region28: #{forward.1} parent=0 // pred_region
    _
  $region29: #{forward.1} parent=0 // pred_fallthru
    _
  // Predicated region
  $region30: #{forward.1} parent=0 // pred_check
    _
  $region31: #{forward.1} parent=0 // pred_check_branch
    %30 = sbr.rel (0) target = $region33
  $region32: #{forward.1} parent=0 // pred_region
    _
  $region33: #{forward.1} parent=0 // pred_fallthru
    _
  // Predicated region
  $region34: #{forward.1} parent=0 // pred_check
    _
  $region35: #{forward.1} parent=0 // pred_check_branch
    %32 = sbr.rel (0) target = $region37
  $region36: #{forward.1} parent=0 // pred_region
    _
  $region37: #{forward.1} parent=0 // pred_fallthru
    _
  // Predicated region
  $region38: #{forward.1} parent=0 // pred_check
    _
  $region39: #{forward.1} parent=0 // pred_check_branch
    %35 = sbr.rel (0) target = $region41
  $region40: #{forward.1} parent=0 // pred_region
    loop: start=0, step=1, limit=1
    $region42: #{forward.1} parent=40 // loop_pre_header
      _
    $region43: #{forward.1} parent=40 // loop_header
      %s37 = sphi 0, %s41
      %p38 = scmp.ge.s32.totalorder %s37, 1
      %s42 = sphi %s7, %s7
      %s43 = sphi [#allocation2], [#allocation2]
    $region44: #{forward.1} parent=40 // loop_header_branch
      %40 = sbr.rel (%p38) target = $region48
    $region45: #{forward.1} parent=40 // loop_body
      %v44 = vld [vmem:[%s42] sm:$0xff]
      %45 = vst [vmem:[%s43] sm:$0xff] %v44
      %v46 = vld [vmem:[%s42 + $0x8] sm:$0xff]
      %47 = vst [vmem:[%s43 + $0x8] sm:$0xff] %v46
      %v48 = vld [vmem:[%s42 + $0x10] sm:$0xff]
      %49 = vst [vmem:[%s43 + $0x10] sm:$0xff] %v48
      %v50 = vld [vmem:[%s42 + $0x18] sm:$0xff]
      %51 = vst [vmem:[%s43 + $0x18] sm:$0xff] %v50
      %v52 = vld [vmem:[%s42 + $0x20] sm:$0xff]
      %53 = vst [vmem:[%s43 + $0x20] sm:$0xff] %v52
      %v54 = vld [vmem:[%s42 + $0x28] sm:$0xff]
      %55 = vst [vmem:[%s43 + $0x28] sm:$0xff] %v54
      %v56 = vld [vmem:[%s42 + $0x30] sm:$0xff]
      %57 = vst [vmem:[%s43 + $0x30] sm:$0xff] %v56
      %v58 = vld [vmem:[%s42 + $0x38] sm:$0xff]
      %59 = vst [vmem:[%s43 + $0x38] sm:$0xff] %v58
      %v60 = vld [vmem:[%s42 + $0x40] sm:$0xff]
      %61 = vst [vmem:[%s43 + $0x40] sm:$0xff] %v60
      %v62 = vld [vmem:[%s42 + $0x48] sm:$0xff]
      %63 = vst [vmem:[%s43 + $0x48] sm:$0xff] %v62
      %v64 = vld [vmem:[%s42 + $0x50] sm:$0xff]
      %65 = vst [vmem:[%s43 + $0x50] sm:$0xff] %v64
      %v66 = vld [vmem:[%s42 + $0x58] sm:$0xff]
      %67 = vst [vmem:[%s43 + $0x58] sm:$0xff] %v66
      %v68 = vld [vmem:[%s42 + $0x60] sm:$0xff]
      %69 = vst [vmem:[%s43 + $0x60] sm:$0xff] %v68
      %v70 = vld [vmem:[%s42 + $0x68] sm:$0xff]
      %71 = vst [vmem:[%s43 + $0x68] sm:$0xff] %v70
      %v72 = vld [vmem:[%s42 + $0x70] sm:$0xff]
      %73 = vst [vmem:[%s43 + $0x70] sm:$0xff] %v72
      %v74 = vld [vmem:[%s42 + $0x78] sm:$0xff]
      %75 = vst [vmem:[%s43 + $0x78] sm:$0xff] %v74
      %v76 = vld [vmem:[%s42 + $0x80] sm:$0xff]
      %77 = vst [vmem:[%s43 + $0x80] sm:$0xff] %v76
      %v78 = vld [vmem:[%s42 + $0x88] sm:$0xff]
      %79 = vst [vmem:[%s43 + $0x88] sm:$0xff] %v78
      %v80 = vld [vmem:[%s42 + $0x90] sm:$0xff]
      %81 = vst [vmem:[%s43 + $0x90] sm:$0xff] %v80
      %v82 = vld [vmem:[%s42 + $0x98] sm:$0xff]
      %83 = vst [vmem:[%s43 + $0x98] sm:$0xff] %v82
      %v84 = vld [vmem:[%s42 + $0xa0] sm:$0xff]
      %85 = vst [vmem:[%s43 + $0xa0] sm:$0xff] %v84
      %v86 = vld [vmem:[%s42 + $0xa8] sm:$0xff]
      %87 = vst [vmem:[%s43 + $0xa8] sm:$0xff] %v86
      %v88 = vld [vmem:[%s42 + $0xb0] sm:$0xff]
      %89 = vst [vmem:[%s43 + $0xb0] sm:$0xff] %v88
      %v90 = vld [vmem:[%s42 + $0xb8] sm:$0xff]
      %91 = vst [vmem:[%s43 + $0xb8] sm:$0xff] %v90
      %v92 = vld [vmem:[%s42 + $0xc0] sm:$0xff]
      %93 = vst [vmem:[%s43 + $0xc0] sm:$0xff] %v92
      %v94 = vld [vmem:[%s42 + $0xc8] sm:$0xff]
      %95 = vst [vmem:[%s43 + $0xc8] sm:$0xff] %v94
      %v96 = vld [vmem:[%s42 + $0xd0] sm:$0xff]
      %97 = vst [vmem:[%s43 + $0xd0] sm:$0xff] %v96
      %v98 = vld [vmem:[%s42 + $0xd8] sm:$0xff]
      %99 = vst [vmem:[%s43 + $0xd8] sm:$0xff] %v98
      %v100 = vld [vmem:[%s42 + $0xe0] sm:$0xff]
      %101 = vst [vmem:[%s43 + $0xe0] sm:$0xff] %v100
      %v102 = vld [vmem:[%s42 + $0xe8] sm:$0xff]
      %103 = vst [vmem:[%s43 + $0xe8] sm:$0xff] %v102
      %v104 = vld [vmem:[%s42 + $0xf0] sm:$0xff]
      %105 = vst [vmem:[%s43 + $0xf0] sm:$0xff] %v104
      %v106 = vld [vmem:[%s42 + $0xf8] sm:$0xff]
      %107 = vst [vmem:[%s43 + $0xf8] sm:$0xff] %v106
      %v108 = vld [vmem:[%s42 + $0x100] sm:$0xff]
      %109 = vst [vmem:[%s43 + $0x100] sm:$0xff] %v108
      %v110 = vld [vmem:[%s42 + $0x108] sm:$0xff]
      %111 = vst [vmem:[%s43 + $0x108] sm:$0xff] %v110
      %v112 = vld [vmem:[%s42 + $0x110] sm:$0xff]
      %113 = vst [vmem:[%s43 + $0x110] sm:$0xff] %v112
      %v114 = vld [vmem:[%s42 + $0x118] sm:$0xff]
      %115 = vst [vmem:[%s43 + $0x118] sm:$0xff] %v114
      %v116 = vld [vmem:[%s42 + $0x120] sm:$0xff]
      %117 = vst [vmem:[%s43 + $0x120] sm:$0xff] %v116
      %v118 = vld [vmem:[%s42 + $0x128] sm:$0xff]
      %119 = vst [vmem:[%s43 + $0x128] sm:$0xff] %v118
      %v120 = vld [vmem:[%s42 + $0x130] sm:$0xff]
      %121 = vst [vmem:[%s43 + $0x130] sm:$0xff] %v120
      %v122 = vld [vmem:[%s42 + $0x138] sm:$0xff]
      %123 = vst [vmem:[%s43 + $0x138] sm:$0xff] %v122
      %v124 = vld [vmem:[%s42 + $0x140] sm:$0xff]
      %125 = vst [vmem:[%s43 + $0x140] sm:$0xff] %v124
      %v126 = vld [vmem:[%s42 + $0x148] sm:$0xff]
      %127 = vst [vmem:[%s43 + $0x148] sm:$0xff] %v126
      %v128 = vld [vmem:[%s42 + $0x150] sm:$0xff]
      %129 = vst [vmem:[%s43 + $0x150] sm:$0xff] %v128
      %v130 = vld [vmem:[%s42 + $0x158] sm:$0xff]
      %131 = vst [vmem:[%s43 + $0x158] sm:$0xff] %v130
      %v132 = vld [vmem:[%s42 + $0x160] sm:$0xff]
      %133 = vst [vmem:[%s43 + $0x160] sm:$0xff] %v132
      %v134 = vld [vmem:[%s42 + $0x168] sm:$0xff]
      %135 = vst [vmem:[%s43 + $0x168] sm:$0xff] %v134
      %v136 = vld [vmem:[%s42 + $0x170] sm:$0xff]
      %137 = vst [vmem:[%s43 + $0x170] sm:$0xff] %v136
      %v138 = vld [vmem:[%s42 + $0x178] sm:$0xff]
      %139 = vst [vmem:[%s43 + $0x178] sm:$0xff] %v138
      %v140 = vld [vmem:[%s42 + $0x180] sm:$0xff]
      %141 = vst [vmem:[%s43 + $0x180] sm:$0xff] %v140
      %v142 = vld [vmem:[%s42 + $0x188] sm:$0xff]
      %143 = vst [vmem:[%s43 + $0x188] sm:$0xff] %v142
      %v144 = vld [vmem:[%s42 + $0x190] sm:$0xff]
      %145 = vst [vmem:[%s43 + $0x190] sm:$0xff] %v144
      %v146 = vld [vmem:[%s42 + $0x198] sm:$0xff]
      %147 = vst [vmem:[%s43 + $0x198] sm:$0xff] %v146
      %v148 = vld [vmem:[%s42 + $0x1a0] sm:$0xff]
      %149 = vst [vmem:[%s43 + $0x1a0] sm:$0xff] %v148
      %v150 = vld [vmem:[%s42 + $0x1a8] sm:$0xff]
      %151 = vst [vmem:[%s43 + $0x1a8] sm:$0xff] %v150
      %v152 = vld [vmem:[%s42 + $0x1b0] sm:$0xff]
      %153 = vst [vmem:[%s43 + $0x1b0] sm:$0xff] %v152
      %v154 = vld [vmem:[%s42 + $0x1b8] sm:$0xff]
      %155 = vst [vmem:[%s43 + $0x1b8] sm:$0xff] %v154
      %v156 = vld [vmem:[%s42 + $0x1c0] sm:$0xff]
      %157 = vst [vmem:[%s43 + $0x1c0] sm:$0xff] %v156
      %v158 = vld [vmem:[%s42 + $0x1c8] sm:$0xff]
      %159 = vst [vmem:[%s43 + $0x1c8] sm:$0xff] %v158
      %v160 = vld [vmem:[%s42 + $0x1d0] sm:$0xff]
      %161 = vst [vmem:[%s43 + $0x1d0] sm:$0xff] %v160
      %v162 = vld [vmem:[%s42 + $0x1d8] sm:$0xff]
      %163 = vst [vmem:[%s43 + $0x1d8] sm:$0xff] %v162
      %v164 = vld [vmem:[%s42 + $0x1e0] sm:$0xff]
      %165 = vst [vmem:[%s43 + $0x1e0] sm:$0xff] %v164
      %v166 = vld [vmem:[%s42 + $0x1e8] sm:$0xff]
      %167 = vst [vmem:[%s43 + $0x1e8] sm:$0xff] %v166
      %v168 = vld [vmem:[%s42 + $0x1f0] sm:$0xff]
      %169 = vst [vmem:[%s43 + $0x1f0] sm:$0xff] %v168
      %v170 = vld [vmem:[%s42 + $0x1f8] sm:$0xff]
      %171 = vst [vmem:[%s43 + $0x1f8] sm:$0xff] %v170
      %v172 = vld [vmem:[%s42 + $0x200] sm:$0xff]
      %173 = vst [vmem:[%s43 + $0x200] sm:$0xff] %v172
      %v174 = vld [vmem:[%s42 + $0x208] sm:$0xff]
      %175 = vst [vmem:[%s43 + $0x208] sm:$0xff] %v174
      %v176 = vld [vmem:[%s42 + $0x210] sm:$0xff]
      %177 = vst [vmem:[%s43 + $0x210] sm:$0xff] %v176
      %v178 = vld [vmem:[%s42 + $0x218] sm:$0xff]
      %179 = vst [vmem:[%s43 + $0x218] sm:$0xff] %v178
      %v180 = vld [vmem:[%s42 + $0x220] sm:$0xff]
      %181 = vst [vmem:[%s43 + $0x220] sm:$0xff] %v180
      %v182 = vld [vmem:[%s42 + $0x228] sm:$0xff]
      %183 = vst [vmem:[%s43 + $0x228] sm:$0xff] %v182
      %v184 = vld [vmem:[%s42 + $0x230] sm:$0xff]
      %185 = vst [vmem:[%s43 + $0x230] sm:$0xff] %v184
      %v186 = vld [vmem:[%s42 + $0x238] sm:$0xff]
      %187 = vst [vmem:[%s43 + $0x238] sm:$0xff] %v186
      %v188 = vld [vmem:[%s42 + $0x240] sm:$0xff]
      %189 = vst [vmem:[%s43 + $0x240] sm:$0xff] %v188
      %v190 = vld [vmem:[%s42 + $0x248] sm:$0xff]
      %191 = vst [vmem:[%s43 + $0x248] sm:$0xff] %v190
      %v192 = vld [vmem:[%s42 + $0x250] sm:$0xff]
      %193 = vst [vmem:[%s43 + $0x250] sm:$0xff] %v192
      %v194 = vld [vmem:[%s42 + $0x258] sm:$0xff]
      %195 = vst [vmem:[%s43 + $0x258] sm:$0xff] %v194
      %v196 = vld [vmem:[%s42 + $0x260] sm:$0xff]
      %197 = vst [vmem:[%s43 + $0x260] sm:$0xff] %v196
      %v198 = vld [vmem:[%s42 + $0x268] sm:$0xff]
      %199 = vst [vmem:[%s43 + $0x268] sm:$0xff] %v198
      %v200 = vld [vmem:[%s42 + $0x270] sm:$0xff]
      %201 = vst [vmem:[%s43 + $0x270] sm:$0xff] %v200
      %v202 = vld [vmem:[%s42 + $0x278] sm:$0xff]
      %203 = vst [vmem:[%s43 + $0x278] sm:$0xff] %v202
      %v204 = vld [vmem:[%s42 + $0x280] sm:$0xff]
      %205 = vst [vmem:[%s43 + $0x280] sm:$0xff] %v204
      %v206 = vld [vmem:[%s42 + $0x288] sm:$0xff]
      %207 = vst [vmem:[%s43 + $0x288] sm:$0xff] %v206
      %v208 = vld [vmem:[%s42 + $0x290] sm:$0xff]
      %209 = vst [vmem:[%s43 + $0x290] sm:$0xff] %v208
      %v210 = vld [vmem:[%s42 + $0x298] sm:$0xff]
      %211 = vst [vmem:[%s43 + $0x298] sm:$0xff] %v210
      %v212 = vld [vmem:[%s42 + $0x2a0] sm:$0xff]
      %213 = vst [vmem:[%s43 + $0x2a0] sm:$0xff] %v212
      %v214 = vld [vmem:[%s42 + $0x2a8] sm:$0xff]
      %215 = vst [vmem:[%s43 + $0x2a8] sm:$0xff] %v214
      %v216 = vld [vmem:[%s42 + $0x2b0] sm:$0xff]
      %217 = vst [vmem:[%s43 + $0x2b0] sm:$0xff] %v216
      %v218 = vld [vmem:[%s42 + $0x2b8] sm:$0xff]
      %219 = vst [vmem:[%s43 + $0x2b8] sm:$0xff] %v218
      %v220 = vld [vmem:[%s42 + $0x2c0] sm:$0xff]
      %221 = vst [vmem:[%s43 + $0x2c0] sm:$0xff] %v220
      %v222 = vld [vmem:[%s42 + $0x2c8] sm:$0xff]
      %223 = vst [vmem:[%s43 + $0x2c8] sm:$0xff] %v222
      %v224 = vld [vmem:[%s42 + $0x2d0] sm:$0xff]
      %225 = vst [vmem:[%s43 + $0x2d0] sm:$0xff] %v224
      %v226 = vld [vmem:[%s42 + $0x2d8] sm:$0xff]
      %227 = vst [vmem:[%s43 + $0x2d8] sm:$0xff] %v226
      %v228 = vld [vmem:[%s42 + $0x2e0] sm:$0xff]
      %229 = vst [vmem:[%s43 + $0x2e0] sm:$0xff] %v228
      %v230 = vld [vmem:[%s42 + $0x2e8] sm:$0xff]
      %231 = vst [vmem:[%s43 + $0x2e8] sm:$0xff] %v230
      %v232 = vld [vmem:[%s42 + $0x2f0] sm:$0xff]
      %233 = vst [vmem:[%s43 + $0x2f0] sm:$0xff] %v232
      %v234 = vld [vmem:[%s42 + $0x2f8] sm:$0xff]
      %235 = vst [vmem:[%s43 + $0x2f8] sm:$0xff] %v234
      %v236 = vld [vmem:[%s42 + $0x300] sm:$0xff]
      %237 = vst [vmem:[%s43 + $0x300] sm:$0xff] %v236
      %v238 = vld [vmem:[%s42 + $0x308] sm:$0xff]
      %239 = vst [vmem:[%s43 + $0x308] sm:$0xff] %v238
      %v240 = vld [vmem:[%s42 + $0x310] sm:$0xff]
      %241 = vst [vmem:[%s43 + $0x310] sm:$0xff] %v240
      %v242 = vld [vmem:[%s42 + $0x318] sm:$0xff]
      %243 = vst [vmem:[%s43 + $0x318] sm:$0xff] %v242
      %v244 = vld [vmem:[%s42 + $0x320] sm:$0xff]
      %245 = vst [vmem:[%s43 + $0x320] sm:$0xff] %v244
      %v246 = vld [vmem:[%s42 + $0x328] sm:$0xff]
      %247 = vst [vmem:[%s43 + $0x328] sm:$0xff] %v246
      %v248 = vld [vmem:[%s42 + $0x330] sm:$0xff]
      %249 = vst [vmem:[%s43 + $0x330] sm:$0xff] %v248
      %v250 = vld [vmem:[%s42 + $0x338] sm:$0xff]
      %251 = vst [vmem:[%s43 + $0x338] sm:$0xff] %v250
      %v252 = vld [vmem:[%s42 + $0x340] sm:$0xff]
      %253 = vst [vmem:[%s43 + $0x340] sm:$0xff] %v252
      %v254 = vld [vmem:[%s42 + $0x348] sm:$0xff]
      %255 = vst [vmem:[%s43 + $0x348] sm:$0xff] %v254
      %v256 = vld [vmem:[%s42 + $0x350] sm:$0xff]
      %257 = vst [vmem:[%s43 + $0x350] sm:$0xff] %v256
      %v258 = vld [vmem:[%s42 + $0x358] sm:$0xff]
      %259 = vst [vmem:[%s43 + $0x358] sm:$0xff] %v258
      %v260 = vld [vmem:[%s42 + $0x360] sm:$0xff]
      %261 = vst [vmem:[%s43 + $0x360] sm:$0xff] %v260
      %v262 = vld [vmem:[%s42 + $0x368] sm:$0xff]
      %263 = vst [vmem:[%s43 + $0x368] sm:$0xff] %v262
      %v264 = vld [vmem:[%s42 + $0x370] sm:$0xff]
      %265 = vst [vmem:[%s43 + $0x370] sm:$0xff] %v264
      %v266 = vld [vmem:[%s42 + $0x378] sm:$0xff]
      %267 = vst [vmem:[%s43 + $0x378] sm:$0xff] %v266
      %v268 = vld [vmem:[%s42 + $0x380] sm:$0xff]
      %269 = vst [vmem:[%s43 + $0x380] sm:$0xff] %v268
      %v270 = vld [vmem:[%s42 + $0x388] sm:$0xff]
      %271 = vst [vmem:[%s43 + $0x388] sm:$0xff] %v270
      %v272 = vld [vmem:[%s42 + $0x390] sm:$0xff]
      %273 = vst [vmem:[%s43 + $0x390] sm:$0xff] %v272
      %v274 = vld [vmem:[%s42 + $0x398] sm:$0xff]
      %275 = vst [vmem:[%s43 + $0x398] sm:$0xff] %v274
      %v276 = vld [vmem:[%s42 + $0x3a0] sm:$0xff]
      %277 = vst [vmem:[%s43 + $0x3a0] sm:$0xff] %v276
      %v278 = vld [vmem:[%s42 + $0x3a8] sm:$0xff]
      %279 = vst [vmem:[%s43 + $0x3a8] sm:$0xff] %v278
      %v280 = vld [vmem:[%s42 + $0x3b0] sm:$0xff]
      %281 = vst [vmem:[%s43 + $0x3b0] sm:$0xff] %v280
      %v282 = vld [vmem:[%s42 + $0x3b8] sm:$0xff]
      %283 = vst [vmem:[%s43 + $0x3b8] sm:$0xff] %v282
      %v284 = vld [vmem:[%s42 + $0x3c0] sm:$0xff]
      %285 = vst [vmem:[%s43 + $0x3c0] sm:$0xff] %v284
      %v286 = vld [vmem:[%s42 + $0x3c8] sm:$0xff]
      %287 = vst [vmem:[%s43 + $0x3c8] sm:$0xff] %v286
      %v288 = vld [vmem:[%s42 + $0x3d0] sm:$0xff]
      %289 = vst [vmem:[%s43 + $0x3d0] sm:$0xff] %v288
      %v290 = vld [vmem:[%s42 + $0x3d8] sm:$0xff]
      %291 = vst [vmem:[%s43 + $0x3d8] sm:$0xff] %v290
      %v292 = vld [vmem:[%s42 + $0x3e0] sm:$0xff]
      %293 = vst [vmem:[%s43 + $0x3e0] sm:$0xff] %v292
      %v294 = vld [vmem:[%s42 + $0x3e8] sm:$0xff]
      %295 = vst [vmem:[%s43 + $0x3e8] sm:$0xff] %v294
      %v296 = vld [vmem:[%s42 + $0x3f0] sm:$0xff]
      %297 = vst [vmem:[%s43 + $0x3f0] sm:$0xff] %v296
      %v298 = vld [vmem:[%s42 + $0x3f8] sm:$0xff]
      %299 = vst [vmem:[%s43 + $0x3f8] sm:$0xff] %v298
      %v300 = vld [vmem:[%s42 + $0x400] sm:$0xff]
      %301 = vst [vmem:[%s43 + $0x400] sm:$0xff] %v300
      %v302 = vld [vmem:[%s42 + $0x408] sm:$0xff]
      %303 = vst [vmem:[%s43 + $0x408] sm:$0xff] %v302
      %v304 = vld [vmem:[%s42 + $0x410] sm:$0xff]
      %305 = vst [vmem:[%s43 + $0x410] sm:$0xff] %v304
      %v306 = vld [vmem:[%s42 + $0x418] sm:$0xff]
      %307 = vst [vmem:[%s43 + $0x418] sm:$0xff] %v306
      %v308 = vld [vmem:[%s42 + $0x420] sm:$0xff]
      %309 = vst [vmem:[%s43 + $0x420] sm:$0xff] %v308
      %v310 = vld [vmem:[%s42 + $0x428] sm:$0xff]
      %311 = vst [vmem:[%s43 + $0x428] sm:$0xff] %v310
      %v312 = vld [vmem:[%s42 + $0x430] sm:$0xff]
      %313 = vst [vmem:[%s43 + $0x430] sm:$0xff] %v312
      %v314 = vld [vmem:[%s42 + $0x438] sm:$0xff]
      %315 = vst [vmem:[%s43 + $0x438] sm:$0xff] %v314
      %v316 = vld [vmem:[%s42 + $0x440] sm:$0xff]
      %317 = vst [vmem:[%s43 + $0x440] sm:$0xff] %v316
      %v318 = vld [vmem:[%s42 + $0x448] sm:$0xff]
      %319 = vst [vmem:[%s43 + $0x448] sm:$0xff] %v318
      %v320 = vld [vmem:[%s42 + $0x450] sm:$0xff]
      %321 = vst [vmem:[%s43 + $0x450] sm:$0xff] %v320
      %v322 = vld [vmem:[%s42 + $0x458] sm:$0xff]
      %323 = vst [vmem:[%s43 + $0x458] sm:$0xff] %v322
      %v324 = vld [vmem:[%s42 + $0x460] sm:$0xff]
      %325 = vst [vmem:[%s43 + $0x460] sm:$0xff] %v324
      %v326 = vld [vmem:[%s42 + $0x468] sm:$0xff]
      %327 = vst [vmem:[%s43 + $0x468] sm:$0xff] %v326
      %v328 = vld [vmem:[%s42 + $0x470] sm:$0xff]
      %329 = vst [vmem:[%s43 + $0x470] sm:$0xff] %v328
      %v330 = vld [vmem:[%s42 + $0x478] sm:$0xff]
      %331 = vst [vmem:[%s43 + $0x478] sm:$0xff] %v330
      %v332 = vld [vmem:[%s42 + $0x480] sm:$0xff]
      %333 = vst [vmem:[%s43 + $0x480] sm:$0xff] %v332
      %v334 = vld [vmem:[%s42 + $0x488] sm:$0xff]
      %335 = vst [vmem:[%s43 + $0x488] sm:$0xff] %v334
      %v336 = vld [vmem:[%s42 + $0x490] sm:$0xff]
      %337 = vst [vmem:[%s43 + $0x490] sm:$0xff] %v336
      %v338 = vld [vmem:[%s42 + $0x498] sm:$0xff]
      %339 = vst [vmem:[%s43 + $0x498] sm:$0xff] %v338
      %v340 = vld [vmem:[%s42 + $0x4a0] sm:$0xff]
      %341 = vst [vmem:[%s43 + $0x4a0] sm:$0xff] %v340
      %v342 = vld [vmem:[%s42 + $0x4a8] sm:$0xff]
      %343 = vst [vmem:[%s43 + $0x4a8] sm:$0xff] %v342
      %v344 = vld [vmem:[%s42 + $0x4b0] sm:$0xff]
      %345 = vst [vmem:[%s43 + $0x4b0] sm:$0xff] %v344
      %v346 = vld [vmem:[%s42 + $0x4b8] sm:$0xff]
      %347 = vst [vmem:[%s43 + $0x4b8] sm:$0xff] %v346
      %v348 = vld [vmem:[%s42 + $0x4c0] sm:$0xff]
      %349 = vst [vmem:[%s43 + $0x4c0] sm:$0xff] %v348
      %v350 = vld [vmem:[%s42 + $0x4c8] sm:$0xff]
      %351 = vst [vmem:[%s43 + $0x4c8] sm:$0xff] %v350
      %v352 = vld [vmem:[%s42 + $0x4d0] sm:$0xff]
      %353 = vst [vmem:[%s43 + $0x4d0] sm:$0xff] %v352
      %v354 = vld [vmem:[%s42 + $0x4d8] sm:$0xff]
      %355 = vst [vmem:[%s43 + $0x4d8] sm:$0xff] %v354
      %v356 = vld [vmem:[%s42 + $0x4e0] sm:$0xff]
      %357 = vst [vmem:[%s43 + $0x4e0] sm:$0xff] %v356
      %v358 = vld [vmem:[%s42 + $0x4e8] sm:$0xff]
      %359 = vst [vmem:[%s43 + $0x4e8] sm:$0xff] %v358
      %v360 = vld [vmem:[%s42 + $0x4f0] sm:$0xff]
      %361 = vst [vmem:[%s43 + $0x4f0] sm:$0xff] %v360
      %v362 = vld [vmem:[%s42 + $0x4f8] sm:$0xff]
      %363 = vst [vmem:[%s43 + $0x4f8] sm:$0xff] %v362
      %v364 = vld [vmem:[%s42 + $0x500] sm:$0xff]
      %365 = vst [vmem:[%s43 + $0x500] sm:$0xff] %v364
      %v366 = vld [vmem:[%s42 + $0x508] sm:$0xff]
      %367 = vst [vmem:[%s43 + $0x508] sm:$0xff] %v366
      %v368 = vld [vmem:[%s42 + $0x510] sm:$0xff]
      %369 = vst [vmem:[%s43 + $0x510] sm:$0xff] %v368
      %v370 = vld [vmem:[%s42 + $0x518] sm:$0xff]
      %371 = vst [vmem:[%s43 + $0x518] sm:$0xff] %v370
      %v372 = vld [vmem:[%s42 + $0x520] sm:$0xff]
      %373 = vst [vmem:[%s43 + $0x520] sm:$0xff] %v372
      %v374 = vld [vmem:[%s42 + $0x528] sm:$0xff]
      %375 = vst [vmem:[%s43 + $0x528] sm:$0xff] %v374
      %v376 = vld [vmem:[%s42 + $0x530] sm:$0xff]
      %377 = vst [vmem:[%s43 + $0x530] sm:$0xff] %v376
      %v378 = vld [vmem:[%s42 + $0x538] sm:$0xff]
      %379 = vst [vmem:[%s43 + $0x538] sm:$0xff] %v378
      %v380 = vld [vmem:[%s42 + $0x540] sm:$0xff]
      %381 = vst [vmem:[%s43 + $0x540] sm:$0xff] %v380
      %v382 = vld [vmem:[%s42 + $0x548] sm:$0xff]
      %383 = vst [vmem:[%s43 + $0x548] sm:$0xff] %v382
      %v384 = vld [vmem:[%s42 + $0x550] sm:$0xff]
      %385 = vst [vmem:[%s43 + $0x550] sm:$0xff] %v384
      %v386 = vld [vmem:[%s42 + $0x558] sm:$0xff]
      %387 = vst [vmem:[%s43 + $0x558] sm:$0xff] %v386
      %v388 = vld [vmem:[%s42 + $0x560] sm:$0xff]
      %389 = vst [vmem:[%s43 + $0x560] sm:$0xff] %v388
      %v390 = vld [vmem:[%s42 + $0x568] sm:$0xff]
      %391 = vst [vmem:[%s43 + $0x568] sm:$0xff] %v390
      %v392 = vld [vmem:[%s42 + $0x570] sm:$0xff]
      %393 = vst [vmem:[%s43 + $0x570] sm:$0xff] %v392
      %v394 = vld [vmem:[%s42 + $0x578] sm:$0xff]
      %395 = vst [vmem:[%s43 + $0x578] sm:$0xff] %v394
      %v396 = vld [vmem:[%s42 + $0x580] sm:$0xff]
      %397 = vst [vmem:[%s43 + $0x580] sm:$0xff] %v396
      %v398 = vld [vmem:[%s42 + $0x588] sm:$0xff]
      %399 = vst [vmem:[%s43 + $0x588] sm:$0xff] %v398
      %v400 = vld [vmem:[%s42 + $0x590] sm:$0xff]
      %401 = vst [vmem:[%s43 + $0x590] sm:$0xff] %v400
      %v402 = vld [vmem:[%s42 + $0x598] sm:$0xff]
      %403 = vst [vmem:[%s43 + $0x598] sm:$0xff] %v402
      %v404 = vld [vmem:[%s42 + $0x5a0] sm:$0xff]
      %405 = vst [vmem:[%s43 + $0x5a0] sm:$0xff] %v404
      %v406 = vld [vmem:[%s42 + $0x5a8] sm:$0xff]
      %407 = vst [vmem:[%s43 + $0x5a8] sm:$0xff] %v406
      %v408 = vld [vmem:[%s42 + $0x5b0] sm:$0xff]
      %409 = vst [vmem:[%s43 + $0x5b0] sm:$0xff] %v408
      %v410 = vld [vmem:[%s42 + $0x5b8] sm:$0xff]
      %411 = vst [vmem:[%s43 + $0x5b8] sm:$0xff] %v410
      %v412 = vld [vmem:[%s42 + $0x5c0] sm:$0xff]
      %413 = vst [vmem:[%s43 + $0x5c0] sm:$0xff] %v412
      %v414 = vld [vmem:[%s42 + $0x5c8] sm:$0xff]
      %415 = vst [vmem:[%s43 + $0x5c8] sm:$0xff] %v414
      %v416 = vld [vmem:[%s42 + $0x5d0] sm:$0xff]
      %417 = vst [vmem:[%s43 + $0x5d0] sm:$0xff] %v416
      %v418 = vld [vmem:[%s42 + $0x5d8] sm:$0xff]
      %419 = vst [vmem:[%s43 + $0x5d8] sm:$0xff] %v418
      %v420 = vld [vmem:[%s42 + $0x5e0] sm:$0xff]
      %421 = vst [vmem:[%s43 + $0x5e0] sm:$0xff] %v420
      %v422 = vld [vmem:[%s42 + $0x5e8] sm:$0xff]
      %423 = vst [vmem:[%s43 + $0x5e8] sm:$0xff] %v422
      %v424 = vld [vmem:[%s42 + $0x5f0] sm:$0xff]
      %425 = vst [vmem:[%s43 + $0x5f0] sm:$0xff] %v424
      %v426 = vld [vmem:[%s42 + $0x5f8] sm:$0xff]
      %427 = vst [vmem:[%s43 + $0x5f8] sm:$0xff] %v426
      %v428 = vld [vmem:[%s42 + $0x600] sm:$0xff]
      %429 = vst [vmem:[%s43 + $0x600] sm:$0xff] %v428
      %v430 = vld [vmem:[%s42 + $0x608] sm:$0xff]
      %431 = vst [vmem:[%s43 + $0x608] sm:$0xff] %v430
      %v432 = vld [vmem:[%s42 + $0x610] sm:$0xff]
      %433 = vst [vmem:[%s43 + $0x610] sm:$0xff] %v432
      %v434 = vld [vmem:[%s42 + $0x618] sm:$0xff]
      %435 = vst [vmem:[%s43 + $0x618] sm:$0xff] %v434
    $region46: #{forward.1} parent=40 // loop_footer
      %s41 = sadd.s32 1, %s37
    $region47: #{forward.1} parent=40 // loop_footer_branch
      %36 = sbr.rel target = $region43
    $region48: #{forward.1} parent=40 // loop_exit
      _
  $region41: #{forward.1} parent=0 // pred_fallthru
    _
  // Predicated region
  $region49: #{forward.1} parent=0 // pred_check
    _
  $region50: #{forward.1} parent=0 // pred_check_branch
    %437 = sbr.rel target = $region52
  $region51: #{forward.1} parent=0 // pred_region
    _
  $region52: #{forward.1} parent=0 // pred_fallthru
    _
  // Predicated region
  $region53: #{forward.1} parent=0 // pred_check
    _
  $region54: #{forward.1} parent=0 // pred_check_branch
    %440 = sbr.rel (0) target = $region56
  $region55: #{forward.1} parent=0 // pred_region
    %441 = vsyncadd [#allocation3], 25088
  $region56: #{forward.1} parent=0 // pred_fallthru
    _
  %v442 = vld [vmem:[%s0] sm:$0xff]
  %v443 = vld [vmem:[%s0 + $0x8] sm:$0xff]
  %v444 = vld [vmem:[%s0 + $0x10] sm:$0xff]
  %v445 = vld [vmem:[%s1] sm:$0xff]
  %v446 = vld [vmem:[%s1 + $0x8] sm:$0xff]
  %v447 = vld [vmem:[%s1 + $0x10] sm:$0xff]
  %v448 = vld [vmem:[%s1 + $0x18] sm:$0xff]
  %v449 = vld [vmem:[%s1 + $0x20] sm:$0xff]
  %v450 = vld [vmem:[%s1 + $0x28] sm:$0xff]
  %v451 = vld [vmem:[%s1 + $0x30] sm:$0xff]
  %v452 = vld [vmem:[%s1 + $0x38] sm:$0xff]
  %v453 = vld [vmem:[%s1 + $0x40] sm:$0xff]
  %v454 = vld [vmem:[%s1 + $0x48] sm:$0xff]
  %v455 = vld [vmem:[%s1 + $0x50] sm:$0xff]
  %v456 = vld [vmem:[%s1 + $0x58] sm:$0xff]
  %v457 = vld [vmem:[%s1 + $0x60] sm:$0xff]
  %v458 = vld [vmem:[%s1 + $0x68] sm:$0xff]
  %v459 = vld [vmem:[%s1 + $0x70] sm:$0xff]
  %v460 = vld [vmem:[%s1 + $0x78] sm:$0xff]
  %v461 = vld [vmem:[%s1 + $0x80] sm:$0xff]
  %v462 = vld [vmem:[%s1 + $0x88] sm:$0xff]
  %v463 = vld [vmem:[%s1 + $0x90] sm:$0xff]
  %v464 = vld [vmem:[%s1 + $0x98] sm:$0xff]
  %v465 = vld [vmem:[%s1 + $0xa0] sm:$0xff]
  %v466 = vld [vmem:[%s1 + $0xa8] sm:$0xff]
  %v467 = vld [vmem:[%s1 + $0xb0] sm:$0xff]
  %v468 = vld [vmem:[%s1 + $0xb8] sm:$0xff]
  %v469 = vld [vmem:[%s1 + $0xc0] sm:$0xff]
  %v470 = vld [vmem:[%s1 + $0xc8] sm:$0xff]
  %v471 = vld [vmem:[%s1 + $0xd0] sm:$0xff]
  %v472 = vld [vmem:[%s1 + $0xd8] sm:$0xff]
  %v473 = vld [vmem:[%s1 + $0xe0] sm:$0xff]
  %v474 = vld [vmem:[%s1 + $0xe8] sm:$0xff]
  %v475 = vld [vmem:[%s1 + $0xf0] sm:$0xff]
  %v476 = vld [vmem:[%s1 + $0xf8] sm:$0xff]
  %v477 = vld [vmem:[%s1 + $0x100] sm:$0xff]
  %v478 = vld [vmem:[%s1 + $0x108] sm:$0xff]
  %v479 = vld [vmem:[%s1 + $0x110] sm:$0xff]
  %v480 = vld [vmem:[%s1 + $0x118] sm:$0xff]
  %v481 = vld [vmem:[%s1 + $0x120] sm:$0xff]
  %v482 = vld [vmem:[%s1 + $0x128] sm:$0xff]
  %v483 = vld [vmem:[%s1 + $0x130] sm:$0xff]
  %v484 = vld [vmem:[%s1 + $0x138] sm:$0xff]
  %v485 = vld [vmem:[%s1 + $0x140] sm:$0xff]
  %v486 = vld [vmem:[%s1 + $0x148] sm:$0xff]
  %v487 = vld [vmem:[%s1 + $0x150] sm:$0xff]
  %v488 = vld [vmem:[%s1 + $0x158] sm:$0xff]
  %v489 = vld [vmem:[%s1 + $0x160] sm:$0xff]
  %v490 = vld [vmem:[%s1 + $0x168] sm:$0xff]
  %v491 = vld [vmem:[%s1 + $0x170] sm:$0xff]
  %v492 = vld [vmem:[%s1 + $0x178] sm:$0xff]
  %v493 = vld [vmem:[%s1 + $0x180] sm:$0xff]
  %v494 = vld [vmem:[%s1 + $0x188] sm:$0xff]
  %v495 = vld [vmem:[%s1 + $0x190] sm:$0xff]
  %v496 = vld [vmem:[%s1 + $0x198] sm:$0xff]
  %v497 = vld [vmem:[%s1 + $0x1a0] sm:$0xff]
  %v498 = vld [vmem:[%s1 + $0x1a8] sm:$0xff]
  %v499 = vld [vmem:[%s1 + $0x1b0] sm:$0xff]
  %v500 = vld [vmem:[%s1 + $0x1b8] sm:$0xff]
  %v501 = vld [vmem:[%s1 + $0x1c0] sm:$0xff]
  %v502 = vld [vmem:[%s1 + $0x1c8] sm:$0xff]
  %v503 = vld [vmem:[%s1 + $0x1d0] sm:$0xff]
  %v504 = vld [vmem:[%s1 + $0x1d8] sm:$0xff]
  %v505 = vld [vmem:[%s1 + $0x1e0] sm:$0xff]
  %v506 = vld [vmem:[%s1 + $0x1e8] sm:$0xff]
  %v507 = vld [vmem:[%s1 + $0x1f0] sm:$0xff]
  %v508 = vld [vmem:[%s1 + $0x1f8] sm:$0xff]
  %v509 = vld [vmem:[%s1 + $0x200] sm:$0xff]
  %v510 = vld [vmem:[%s1 + $0x208] sm:$0xff]
  %v511 = vld [vmem:[%s1 + $0x210] sm:$0xff]
  %v512 = vld [vmem:[%s1 + $0x218] sm:$0xff]
  %v513 = vld [vmem:[%s1 + $0x220] sm:$0xff]
  %v514 = vld [vmem:[%s1 + $0x228] sm:$0xff]
  %v515 = vld [vmem:[%s1 + $0x230] sm:$0xff]
  %v516 = vld [vmem:[%s1 + $0x238] sm:$0xff]
  %v517 = vld [vmem:[%s1 + $0x240] sm:$0xff]
  %v518 = vld [vmem:[%s1 + $0x248] sm:$0xff]
  %v519 = vld [vmem:[%s1 + $0x250] sm:$0xff]
  %v520 = vld [vmem:[%s1 + $0x258] sm:$0xff]
  %v521 = vld [vmem:[%s1 + $0x260] sm:$0xff]
  %v522 = vld [vmem:[%s1 + $0x268] sm:$0xff]
  %v523 = vld [vmem:[%s1 + $0x270] sm:$0xff]
  %v524 = vld [vmem:[%s1 + $0x278] sm:$0xff]
  %v525 = vld [vmem:[%s1 + $0x280] sm:$0xff]
  %v526 = vld [vmem:[%s1 + $0x288] sm:$0xff]
  %v527 = vld [vmem:[%s1 + $0x290] sm:$0xff]
  %v528 = vld [vmem:[%s1 + $0x298] sm:$0xff]
  %v529 = vld [vmem:[%s1 + $0x2a0] sm:$0xff]
  %v530 = vld [vmem:[%s1 + $0x2a8] sm:$0xff]
  %v531 = vld [vmem:[%s1 + $0x2b0] sm:$0xff]
  %v532 = vld [vmem:[%s1 + $0x2b8] sm:$0xff]
  %v533 = vld [vmem:[%s1 + $0x2c0] sm:$0xff]
  %v534 = vld [vmem:[%s1 + $0x2c8] sm:$0xff]
  %v535 = vld [vmem:[%s1 + $0x2d0] sm:$0xff]
  %v536 = vld [vmem:[%s1 + $0x2d8] sm:$0xff]
  %v537 = vld [vmem:[%s1 + $0x2e0] sm:$0xff]
  %v538 = vld [vmem:[%s1 + $0x2e8] sm:$0xff]
  %v539 = vld [vmem:[%s1 + $0x2f0] sm:$0xff]
  %v540 = vld [vmem:[%s1 + $0x2f8] sm:$0xff]
  %v541 = vld [vmem:[%s1 + $0x300] sm:$0xff]
  %v542 = vld [vmem:[%s1 + $0x308] sm:$0xff]
  %v543 = vld [vmem:[%s1 + $0x310] sm:$0xff]
  %v544 = vld [vmem:[%s1 + $0x318] sm:$0xff]
  %v545 = vld [vmem:[%s1 + $0x320] sm:$0xff]
  %v546 = vld [vmem:[%s1 + $0x328] sm:$0xff]
  %v547 = vld [vmem:[%s1 + $0x330] sm:$0xff]
  %v548 = vld [vmem:[%s1 + $0x338] sm:$0xff]
  %v549 = vld [vmem:[%s1 + $0x340] sm:$0xff]
  %v550 = vld [vmem:[%s1 + $0x348] sm:$0xff]
  %v551 = vld [vmem:[%s1 + $0x350] sm:$0xff]
  %v552 = vld [vmem:[%s1 + $0x358] sm:$0xff]
  %v553 = vld [vmem:[%s1 + $0x360] sm:$0xff]
  %v554 = vld [vmem:[%s1 + $0x368] sm:$0xff]
  %v555 = vld [vmem:[%s1 + $0x370] sm:$0xff]
  %v556 = vld [vmem:[%s1 + $0x378] sm:$0xff]
  %v557 = vld [vmem:[%s1 + $0x380] sm:$0xff]
  %v558 = vld [vmem:[%s1 + $0x388] sm:$0xff]
  %v559 = vld [vmem:[%s1 + $0x390] sm:$0xff]
  %v560 = vld [vmem:[%s1 + $0x398] sm:$0xff]
  %v561 = vld [vmem:[%s1 + $0x3a0] sm:$0xff]
  %v562 = vld [vmem:[%s1 + $0x3a8] sm:$0xff]
  %v563 = vld [vmem:[%s1 + $0x3b0] sm:$0xff]
  %v564 = vld [vmem:[%s1 + $0x3b8] sm:$0xff]
  %v565 = vld [vmem:[%s1 + $0x3c0] sm:$0xff]
  %v566 = vld [vmem:[%s1 + $0x3c8] sm:$0xff]
  %v567 = vld [vmem:[%s1 + $0x3d0] sm:$0xff]
  %v568 = vld [vmem:[%s1 + $0x3d8] sm:$0xff]
  %v569 = vld [vmem:[%s1 + $0x3e0] sm:$0xff]
  %v570 = vld [vmem:[%s1 + $0x3e8] sm:$0xff]
  %v571 = vld [vmem:[%s1 + $0x3f0] sm:$0xff]
  %v572 = vld [vmem:[%s1 + $0x3f8] sm:$0xff]
  %v573 = vld [vmem:[%s1 + $0x400] sm:$0xff]
  %v574 = vld [vmem:[%s1 + $0x408] sm:$0xff]
  %v575 = vld [vmem:[%s1 + $0x410] sm:$0xff]
  %v576 = vld [vmem:[%s1 + $0x418] sm:$0xff]
  %v577 = vld [vmem:[%s1 + $0x420] sm:$0xff]
  %v578 = vld [vmem:[%s1 + $0x428] sm:$0xff]
  %v579 = vld [vmem:[%s1 + $0x430] sm:$0xff]
  %v580 = vld [vmem:[%s1 + $0x438] sm:$0xff]
  %v581 = vld [vmem:[%s1 + $0x440] sm:$0xff]
  %v582 = vld [vmem:[%s1 + $0x448] sm:$0xff]
  %v583 = vld [vmem:[%s1 + $0x450] sm:$0xff]
  %v584 = vld [vmem:[%s1 + $0x458] sm:$0xff]
  %v585 = vld [vmem:[%s1 + $0x460] sm:$0xff]
  %v586 = vld [vmem:[%s1 + $0x468] sm:$0xff]
  %v587 = vld [vmem:[%s1 + $0x470] sm:$0xff]
  %v588 = vld [vmem:[%s1 + $0x478] sm:$0xff]
  %v589 = vld [vmem:[%s1 + $0x480] sm:$0xff]
  %v590 = vld [vmem:[%s1 + $0x488] sm:$0xff]
  %v591 = vld [vmem:[%s1 + $0x490] sm:$0xff]
  %v592 = vld [vmem:[%s1 + $0x498] sm:$0xff]
  %v593 = vld [vmem:[%s1 + $0x4a0] sm:$0xff]
  %v594 = vld [vmem:[%s1 + $0x4a8] sm:$0xff]
  %v595 = vld [vmem:[%s1 + $0x4b0] sm:$0xff]
  %v596 = vld [vmem:[%s1 + $0x4b8] sm:$0xff]
  %v597 = vld [vmem:[%s1 + $0x4c0] sm:$0xff]
  %v598 = vld [vmem:[%s1 + $0x4c8] sm:$0xff]
  %v599 = vld [vmem:[%s1 + $0x4d0] sm:$0xff]
  %v600 = vld [vmem:[%s1 + $0x4d8] sm:$0xff]
  %v601 = vld [vmem:[%s1 + $0x4e0] sm:$0xff]
  %v602 = vld [vmem:[%s1 + $0x4e8] sm:$0xff]
  %v603 = vld [vmem:[%s1 + $0x4f0] sm:$0xff]
  %v604 = vld [vmem:[%s1 + $0x4f8] sm:$0xff]
  %v605 = vld [vmem:[%s1 + $0x500] sm:$0xff]
  %v606 = vld [vmem:[%s1 + $0x508] sm:$0xff]
  %v607 = vld [vmem:[%s1 + $0x510] sm:$0xff]
  %v608 = vld [vmem:[%s1 + $0x518] sm:$0xff]
  %v609 = vld [vmem:[%s1 + $0x520] sm:$0xff]
  %v610 = vld [vmem:[%s1 + $0x528] sm:$0xff]
  %v611 = vld [vmem:[%s1 + $0x530] sm:$0xff]
  %v612 = vld [vmem:[%s1 + $0x538] sm:$0xff]
  %v613 = vld [vmem:[%s1 + $0x540] sm:$0xff]
  %v614 = vld [vmem:[%s1 + $0x548] sm:$0xff]
  %v615 = vld [vmem:[%s1 + $0x550] sm:$0xff]
  %v616 = vld [vmem:[%s1 + $0x558] sm:$0xff]
  %v617 = vld [vmem:[%s1 + $0x560] sm:$0xff]
  %v618 = vld [vmem:[%s1 + $0x568] sm:$0xff]
  %v619 = vld [vmem:[%s1 + $0x570] sm:$0xff]
  %v620 = vld [vmem:[%s1 + $0x578] sm:$0xff]
  %v621 = vld [vmem:[%s1 + $0x580] sm:$0xff]
  %v622 = vld [vmem:[%s1 + $0x588] sm:$0xff]
  %v623 = vld [vmem:[%s1 + $0x590] sm:$0xff]
  %v624 = vld [vmem:[%s1 + $0x598] sm:$0xff]
  %v625 = vld [vmem:[%s1 + $0x5a0] sm:$0xff]
  %v626 = vld [vmem:[%s1 + $0x5a8] sm:$0xff]
  %v627 = vld [vmem:[%s1 + $0x5b0] sm:$0xff]
  %v628 = vld [vmem:[%s1 + $0x5b8] sm:$0xff]
  %v629 = vld [vmem:[%s1 + $0x5c0] sm:$0xff]
  %v630 = vld [vmem:[%s1 + $0x5c8] sm:$0xff]
  %v631 = vld [vmem:[%s1 + $0x5d0] sm:$0xff]
  %v632 = vld [vmem:[%s1 + $0x5d8] sm:$0xff]
  %v633 = vld [vmem:[%s1 + $0x5e0] sm:$0xff]
  %v634 = vld [vmem:[%s1 + $0x5e8] sm:$0xff]
  %v635 = vld [vmem:[%s1 + $0x5f0] sm:$0xff]
  %v636 = vld [vmem:[%s1 + $0x5f8] sm:$0xff]
  %v637 = vld [vmem:[%s2] sm:$0xf]
  %v639 = vperm.slane %v637, 0
  %v640 = vperm.slane %v637, 1
  %v641 = vperm.slane %v637, 2
  %v642 = vperm.slane %v637, 3
  %v650 = vunpack.c.l.b16 %v442
  %v651 = vunpack.c.h.b16 %v442
  %v652 = vunpack.c.l.b16 %v443
  %v653 = vunpack.c.h.b16 %v443
  %v654 = vunpack.c.l.b16 %v444
  %v655 = vunpack.c.h.b16 %v444
  %v656 = vpack.c.b16 %v650, %v650
  %v657 = vpack.c.b16 %v651, %v651
  %v658 = vpack.c.b16 %v652, %v652
  %v659 = vpack.c.b16 %v653, %v653
  %v660 = vpack.c.b16 %v654, %v654
  %v661 = vpack.c.b16 %v655, %v655
  %v860 = vunpack.c.l.b16 %v445
  %v861 = vunpack.c.h.b16 %v445
  %v862 = vunpack.c.l.b16 %v446
  %v863 = vunpack.c.h.b16 %v446
  %v864 = vunpack.c.l.b16 %v447
  %v865 = vunpack.c.h.b16 %v447
  %v866 = vunpack.c.l.b16 %v448
  %v867 = vunpack.c.h.b16 %v448
  %v868 = vunpack.c.l.b16 %v449
  %v869 = vunpack.c.h.b16 %v449
  %v870 = vunpack.c.l.b16 %v450
  %v871 = vunpack.c.h.b16 %v450
  %v872 = vunpack.c.l.b16 %v451
  %v873 = vunpack.c.h.b16 %v451
  %v874 = vunpack.c.l.b16 %v452
  %v875 = vunpack.c.h.b16 %v452
  %v876 = vunpack.c.l.b16 %v453
  %v877 = vunpack.c.h.b16 %v453
  %v878 = vunpack.c.l.b16 %v454
  %v879 = vunpack.c.h.b16 %v454
  %v880 = vunpack.c.l.b16 %v455
  %v881 = vunpack.c.h.b16 %v455
  %v882 = vunpack.c.l.b16 %v456
  %v883 = vunpack.c.h.b16 %v456
  %v884 = vunpack.c.l.b16 %v457
  %v885 = vunpack.c.h.b16 %v457
  %v886 = vunpack.c.l.b16 %v458
  %v887 = vunpack.c.h.b16 %v458
  %v888 = vunpack.c.l.b16 %v459
  %v889 = vunpack.c.h.b16 %v459
  %v890 = vunpack.c.l.b16 %v460
  %v891 = vunpack.c.h.b16 %v460
  %v892 = vunpack.c.l.b16 %v461
  %v893 = vunpack.c.h.b16 %v461
  %v894 = vunpack.c.l.b16 %v462
  %v895 = vunpack.c.h.b16 %v462
  %v896 = vunpack.c.l.b16 %v463
  %v897 = vunpack.c.h.b16 %v463
  %v898 = vunpack.c.l.b16 %v464
  %v899 = vunpack.c.h.b16 %v464
  %v900 = vunpack.c.l.b16 %v465
  %v901 = vunpack.c.h.b16 %v465
  %v902 = vunpack.c.l.b16 %v466
  %v903 = vunpack.c.h.b16 %v466
  %v904 = vunpack.c.l.b16 %v467
  %v905 = vunpack.c.h.b16 %v467
  %v906 = vunpack.c.l.b16 %v468
  %v907 = vunpack.c.h.b16 %v468
  %v908 = vunpack.c.l.b16 %v469
  %v909 = vunpack.c.h.b16 %v469
  %v910 = vunpack.c.l.b16 %v470
  %v911 = vunpack.c.h.b16 %v470
  %v912 = vunpack.c.l.b16 %v471
  %v913 = vunpack.c.h.b16 %v471
  %v914 = vunpack.c.l.b16 %v472
  %v915 = vunpack.c.h.b16 %v472
  %v916 = vunpack.c.l.b16 %v473
  %v917 = vunpack.c.h.b16 %v473
  %v918 = vunpack.c.l.b16 %v474
  %v919 = vunpack.c.h.b16 %v474
  %v920 = vunpack.c.l.b16 %v475
  %v921 = vunpack.c.h.b16 %v475
  %v922 = vunpack.c.l.b16 %v476
  %v923 = vunpack.c.h.b16 %v476
  %v924 = vunpack.c.l.b16 %v477
  %v925 = vunpack.c.h.b16 %v477
  %v926 = vunpack.c.l.b16 %v478
  %v927 = vunpack.c.h.b16 %v478
  %v928 = vunpack.c.l.b16 %v479
  %v929 = vunpack.c.h.b16 %v479
  %v930 = vunpack.c.l.b16 %v480
  %v931 = vunpack.c.h.b16 %v480
  %v932 = vunpack.c.l.b16 %v481
  %v933 = vunpack.c.h.b16 %v481
  %v934 = vunpack.c.l.b16 %v482
  %v935 = vunpack.c.h.b16 %v482
  %v936 = vunpack.c.l.b16 %v483
  %v937 = vunpack.c.h.b16 %v483
  %v938 = vunpack.c.l.b16 %v484
  %v939 = vunpack.c.h.b16 %v484
  %v940 = vunpack.c.l.b16 %v485
  %v941 = vunpack.c.h.b16 %v485
  %v942 = vunpack.c.l.b16 %v486
  %v943 = vunpack.c.h.b16 %v486
  %v944 = vunpack.c.l.b16 %v487
  %v945 = vunpack.c.h.b16 %v487
  %v946 = vunpack.c.l.b16 %v488
  %v947 = vunpack.c.h.b16 %v488
  %v948 = vunpack.c.l.b16 %v489
  %v949 = vunpack.c.h.b16 %v489
  %v950 = vunpack.c.l.b16 %v490
  %v951 = vunpack.c.h.b16 %v490
  %v952 = vunpack.c.l.b16 %v491
  %v953 = vunpack.c.h.b16 %v491
  %v954 = vunpack.c.l.b16 %v492
  %v955 = vunpack.c.h.b16 %v492
  %v956 = vunpack.c.l.b16 %v493
  %v957 = vunpack.c.h.b16 %v493
  %v958 = vunpack.c.l.b16 %v494
  %v959 = vunpack.c.h.b16 %v494
  %v960 = vunpack.c.l.b16 %v495
  %v961 = vunpack.c.h.b16 %v495
  %v962 = vunpack.c.l.b16 %v496
  %v963 = vunpack.c.h.b16 %v496
  %v964 = vunpack.c.l.b16 %v497
  %v965 = vunpack.c.h.b16 %v497
  %v966 = vunpack.c.l.b16 %v498
  %v967 = vunpack.c.h.b16 %v498
  %v968 = vunpack.c.l.b16 %v499
  %v969 = vunpack.c.h.b16 %v499
  %v970 = vunpack.c.l.b16 %v500
  %v971 = vunpack.c.h.b16 %v500
  %v972 = vunpack.c.l.b16 %v501
  %v973 = vunpack.c.h.b16 %v501
  %v974 = vunpack.c.l.b16 %v502
  %v975 = vunpack.c.h.b16 %v502
  %v976 = vunpack.c.l.b16 %v503
  %v977 = vunpack.c.h.b16 %v503
  %v978 = vunpack.c.l.b16 %v504
  %v979 = vunpack.c.h.b16 %v504
  %v980 = vunpack.c.l.b16 %v505
  %v981 = vunpack.c.h.b16 %v505
  %v982 = vunpack.c.l.b16 %v506
  %v983 = vunpack.c.h.b16 %v506
  %v984 = vunpack.c.l.b16 %v507
  %v985 = vunpack.c.h.b16 %v507
  %v986 = vunpack.c.l.b16 %v508
  %v987 = vunpack.c.h.b16 %v508
  %v988 = vunpack.c.l.b16 %v509
  %v989 = vunpack.c.h.b16 %v509
  %v990 = vunpack.c.l.b16 %v510
  %v991 = vunpack.c.h.b16 %v510
  %v992 = vunpack.c.l.b16 %v511
  %v993 = vunpack.c.h.b16 %v511
  %v994 = vunpack.c.l.b16 %v512
  %v995 = vunpack.c.h.b16 %v512
  %v996 = vunpack.c.l.b16 %v513
  %v997 = vunpack.c.h.b16 %v513
  %v998 = vunpack.c.l.b16 %v514
  %v999 = vunpack.c.h.b16 %v514
  %v1000 = vunpack.c.l.b16 %v515
  %v1001 = vunpack.c.h.b16 %v515
  %v1002 = vunpack.c.l.b16 %v516
  %v1003 = vunpack.c.h.b16 %v516
  %v1004 = vunpack.c.l.b16 %v517
  %v1005 = vunpack.c.h.b16 %v517
  %v1006 = vunpack.c.l.b16 %v518
  %v1007 = vunpack.c.h.b16 %v518
  %v1008 = vunpack.c.l.b16 %v519
  %v1009 = vunpack.c.h.b16 %v519
  %v1010 = vunpack.c.l.b16 %v520
  %v1011 = vunpack.c.h.b16 %v520
  %v1012 = vunpack.c.l.b16 %v521
  %v1013 = vunpack.c.h.b16 %v521
  %v1014 = vunpack.c.l.b16 %v522
  %v1015 = vunpack.c.h.b16 %v522
  %v1016 = vunpack.c.l.b16 %v523
  %v1017 = vunpack.c.h.b16 %v523
  %v1018 = vunpack.c.l.b16 %v524
  %v1019 = vunpack.c.h.b16 %v524
  %v1020 = vunpack.c.l.b16 %v525
  %v1021 = vunpack.c.h.b16 %v525
  %v1022 = vunpack.c.l.b16 %v526
  %v1023 = vunpack.c.h.b16 %v526
  %v1024 = vunpack.c.l.b16 %v527
  %v1025 = vunpack.c.h.b16 %v527
  %v1026 = vunpack.c.l.b16 %v528
  %v1027 = vunpack.c.h.b16 %v528
  %v1028 = vunpack.c.l.b16 %v529
  %v1029 = vunpack.c.h.b16 %v529
  %v1030 = vunpack.c.l.b16 %v530
  %v1031 = vunpack.c.h.b16 %v530
  %v1032 = vunpack.c.l.b16 %v531
  %v1033 = vunpack.c.h.b16 %v531
  %v1034 = vunpack.c.l.b16 %v532
  %v1035 = vunpack.c.h.b16 %v532
  %v1036 = vunpack.c.l.b16 %v533
  %v1037 = vunpack.c.h.b16 %v533
  %v1038 = vunpack.c.l.b16 %v534
  %v1039 = vunpack.c.h.b16 %v534
  %v1040 = vunpack.c.l.b16 %v535
  %v1041 = vunpack.c.h.b16 %v535
  %v1042 = vunpack.c.l.b16 %v536
  %v1043 = vunpack.c.h.b16 %v536
  %v1044 = vunpack.c.l.b16 %v537
  %v1045 = vunpack.c.h.b16 %v537
  %v1046 = vunpack.c.l.b16 %v538
  %v1047 = vunpack.c.h.b16 %v538
  %v1048 = vunpack.c.l.b16 %v539
  %v1049 = vunpack.c.h.b16 %v539
  %v1050 = vunpack.c.l.b16 %v540
  %v1051 = vunpack.c.h.b16 %v540
  %v1052 = vunpack.c.l.b16 %v541
  %v1053 = vunpack.c.h.b16 %v541
  %v1054 = vunpack.c.l.b16 %v542
  %v1055 = vunpack.c.h.b16 %v542
  %v1056 = vunpack.c.l.b16 %v543
  %v1057 = vunpack.c.h.b16 %v543
  %v1058 = vunpack.c.l.b16 %v544
  %v1059 = vunpack.c.h.b16 %v544
  %v1060 = vunpack.c.l.b16 %v545
  %v1061 = vunpack.c.h.b16 %v545
  %v1062 = vunpack.c.l.b16 %v546
  %v1063 = vunpack.c.h.b16 %v546
  %v1064 = vunpack.c.l.b16 %v547
  %v1065 = vunpack.c.h.b16 %v547
  %v1066 = vunpack.c.l.b16 %v548
  %v1067 = vunpack.c.h.b16 %v548
  %v1068 = vunpack.c.l.b16 %v549
  %v1069 = vunpack.c.h.b16 %v549
  %v1070 = vunpack.c.l.b16 %v550
  %v1071 = vunpack.c.h.b16 %v550
  %v1072 = vunpack.c.l.b16 %v551
  %v1073 = vunpack.c.h.b16 %v551
  %v1074 = vunpack.c.l.b16 %v552
  %v1075 = vunpack.c.h.b16 %v552
  %v1076 = vunpack.c.l.b16 %v553
  %v1077 = vunpack.c.h.b16 %v553
  %v1078 = vunpack.c.l.b16 %v554
  %v1079 = vunpack.c.h.b16 %v554
  %v1080 = vunpack.c.l.b16 %v555
  %v1081 = vunpack.c.h.b16 %v555
  %v1082 = vunpack.c.l.b16 %v556
  %v1083 = vunpack.c.h.b16 %v556
  %v1084 = vunpack.c.l.b16 %v557
  %v1085 = vunpack.c.h.b16 %v557
  %v1086 = vunpack.c.l.b16 %v558
  %v1087 = vunpack.c.h.b16 %v558
  %v1088 = vunpack.c.l.b16 %v559
  %v1089 = vunpack.c.h.b16 %v559
  %v1090 = vunpack.c.l.b16 %v560
  %v1091 = vunpack.c.h.b16 %v560
  %v1092 = vunpack.c.l.b16 %v561
  %v1093 = vunpack.c.h.b16 %v561
  %v1094 = vunpack.c.l.b16 %v562
  %v1095 = vunpack.c.h.b16 %v562
  %v1096 = vunpack.c.l.b16 %v563
  %v1097 = vunpack.c.h.b16 %v563
  %v1098 = vunpack.c.l.b16 %v564
  %v1099 = vunpack.c.h.b16 %v564
  %v1100 = vunpack.c.l.b16 %v565
  %v1101 = vunpack.c.h.b16 %v565
  %v1102 = vunpack.c.l.b16 %v566
  %v1103 = vunpack.c.h.b16 %v566
  %v1104 = vunpack.c.l.b16 %v567
  %v1105 = vunpack.c.h.b16 %v567
  %v1106 = vunpack.c.l.b16 %v568
  %v1107 = vunpack.c.h.b16 %v568
  %v1108 = vunpack.c.l.b16 %v569
  %v1109 = vunpack.c.h.b16 %v569
  %v1110 = vunpack.c.l.b16 %v570
  %v1111 = vunpack.c.h.b16 %v570
  %v1112 = vunpack.c.l.b16 %v571
  %v1113 = vunpack.c.h.b16 %v571
  %v1114 = vunpack.c.l.b16 %v572
  %v1115 = vunpack.c.h.b16 %v572
  %v1116 = vunpack.c.l.b16 %v573
  %v1117 = vunpack.c.h.b16 %v573
  %v1118 = vunpack.c.l.b16 %v574
  %v1119 = vunpack.c.h.b16 %v574
  %v1120 = vunpack.c.l.b16 %v575
  %v1121 = vunpack.c.h.b16 %v575
  %v1122 = vunpack.c.l.b16 %v576
  %v1123 = vunpack.c.h.b16 %v576
  %v1124 = vunpack.c.l.b16 %v577
  %v1125 = vunpack.c.h.b16 %v577
  %v1126 = vunpack.c.l.b16 %v578
  %v1127 = vunpack.c.h.b16 %v578
  %v1128 = vunpack.c.l.b16 %v579
  %v1129 = vunpack.c.h.b16 %v579
  %v1130 = vunpack.c.l.b16 %v580
  %v1131 = vunpack.c.h.b16 %v580
  %v1132 = vunpack.c.l.b16 %v581
  %v1133 = vunpack.c.h.b16 %v581
  %v1134 = vunpack.c.l.b16 %v582
  %v1135 = vunpack.c.h.b16 %v582
  %v1136 = vunpack.c.l.b16 %v583
  %v1137 = vunpack.c.h.b16 %v583
  %v1138 = vunpack.c.l.b16 %v584
  %v1139 = vunpack.c.h.b16 %v584
  %v1140 = vunpack.c.l.b16 %v585
  %v1141 = vunpack.c.h.b16 %v585
  %v1142 = vunpack.c.l.b16 %v586
  %v1143 = vunpack.c.h.b16 %v586
  %v1144 = vunpack.c.l.b16 %v587
  %v1145 = vunpack.c.h.b16 %v587
  %v1146 = vunpack.c.l.b16 %v588
  %v1147 = vunpack.c.h.b16 %v588
  %v1148 = vunpack.c.l.b16 %v589
  %v1149 = vunpack.c.h.b16 %v589
  %v1150 = vunpack.c.l.b16 %v590
  %v1151 = vunpack.c.h.b16 %v590
  %v1152 = vunpack.c.l.b16 %v591
  %v1153 = vunpack.c.h.b16 %v591
  %v1154 = vunpack.c.l.b16 %v592
  %v1155 = vunpack.c.h.b16 %v592
  %v1156 = vunpack.c.l.b16 %v593
  %v1157 = vunpack.c.h.b16 %v593
  %v1158 = vunpack.c.l.b16 %v594
  %v1159 = vunpack.c.h.b16 %v594
  %v1160 = vunpack.c.l.b16 %v595
  %v1161 = vunpack.c.h.b16 %v595
  %v1162 = vunpack.c.l.b16 %v596
  %v1163 = vunpack.c.h.b16 %v596
  %v1164 = vunpack.c.l.b16 %v597
  %v1165 = vunpack.c.h.b16 %v597
  %v1166 = vunpack.c.l.b16 %v598
  %v1167 = vunpack.c.h.b16 %v598
  %v1168 = vunpack.c.l.b16 %v599
  %v1169 = vunpack.c.h.b16 %v599
  %v1170 = vunpack.c.l.b16 %v600
  %v1171 = vunpack.c.h.b16 %v600
  %v1172 = vunpack.c.l.b16 %v601
  %v1173 = vunpack.c.h.b16 %v601
  %v1174 = vunpack.c.l.b16 %v602
  %v1175 = vunpack.c.h.b16 %v602
  %v1176 = vunpack.c.l.b16 %v603
  %v1177 = vunpack.c.h.b16 %v603
  %v1178 = vunpack.c.l.b16 %v604
  %v1179 = vunpack.c.h.b16 %v604
  %v1180 = vunpack.c.l.b16 %v605
  %v1181 = vunpack.c.h.b16 %v605
  %v1182 = vunpack.c.l.b16 %v606
  %v1183 = vunpack.c.h.b16 %v606
  %v1184 = vunpack.c.l.b16 %v607
  %v1185 = vunpack.c.h.b16 %v607
  %v1186 = vunpack.c.l.b16 %v608
  %v1187 = vunpack.c.h.b16 %v608
  %v1188 = vunpack.c.l.b16 %v609
  %v1189 = vunpack.c.h.b16 %v609
  %v1190 = vunpack.c.l.b16 %v610
  %v1191 = vunpack.c.h.b16 %v610
  %v1192 = vunpack.c.l.b16 %v611
  %v1193 = vunpack.c.h.b16 %v611
  %v1194 = vunpack.c.l.b16 %v612
  %v1195 = vunpack.c.h.b16 %v612
  %v1196 = vunpack.c.l.b16 %v613
  %v1197 = vunpack.c.h.b16 %v613
  %v1198 = vunpack.c.l.b16 %v614
  %v1199 = vunpack.c.h.b16 %v614
  %v1200 = vunpack.c.l.b16 %v615
  %v1201 = vunpack.c.h.b16 %v615
  %v1202 = vunpack.c.l.b16 %v616
  %v1203 = vunpack.c.h.b16 %v616
  %v1204 = vunpack.c.l.b16 %v617
  %v1205 = vunpack.c.h.b16 %v617
  %v1206 = vunpack.c.l.b16 %v618
  %v1207 = vunpack.c.h.b16 %v618
  %v1208 = vunpack.c.l.b16 %v619
  %v1209 = vunpack.c.h.b16 %v619
  %v1210 = vunpack.c.l.b16 %v620
  %v1211 = vunpack.c.h.b16 %v620
  %v1212 = vunpack.c.l.b16 %v621
  %v1213 = vunpack.c.h.b16 %v621
  %v1214 = vunpack.c.l.b16 %v622
  %v1215 = vunpack.c.h.b16 %v622
  %v1216 = vunpack.c.l.b16 %v623
  %v1217 = vunpack.c.h.b16 %v623
  %v1218 = vunpack.c.l.b16 %v624
  %v1219 = vunpack.c.h.b16 %v624
  %v1220 = vunpack.c.l.b16 %v625
  %v1221 = vunpack.c.h.b16 %v625
  %v1222 = vunpack.c.l.b16 %v626
  %v1223 = vunpack.c.h.b16 %v626
  %v1224 = vunpack.c.l.b16 %v627
  %v1225 = vunpack.c.h.b16 %v627
  %v1226 = vunpack.c.l.b16 %v628
  %v1227 = vunpack.c.h.b16 %v628
  %v1228 = vunpack.c.l.b16 %v629
  %v1229 = vunpack.c.h.b16 %v629
  %v1230 = vunpack.c.l.b16 %v630
  %v1231 = vunpack.c.h.b16 %v630
  %v1232 = vunpack.c.l.b16 %v631
  %v1233 = vunpack.c.h.b16 %v631
  %v1234 = vunpack.c.l.b16 %v632
  %v1235 = vunpack.c.h.b16 %v632
  %v1236 = vunpack.c.l.b16 %v633
  %v1237 = vunpack.c.h.b16 %v633
  %v1238 = vunpack.c.l.b16 %v634
  %v1239 = vunpack.c.h.b16 %v634
  %v1240 = vunpack.c.l.b16 %v635
  %v1241 = vunpack.c.h.b16 %v635
  %v1242 = vunpack.c.l.b16 %v636
  %v1243 = vunpack.c.h.b16 %v636
  %v1244 = vpack.c.b16 %v864, %v860
  %v1245 = vpack.c.b16 %v865, %v861
  %v1246 = vpack.c.b16 %v866, %v862
  %v1247 = vpack.c.b16 %v867, %v863
  %v1248 = vpack.c.b16 %v872, %v868
  %v1249 = vpack.c.b16 %v873, %v869
  %v1250 = vpack.c.b16 %v874, %v870
  %v1251 = vpack.c.b16 %v875, %v871
  %v1252 = vpack.c.b16 %v880, %v876
  %v1253 = vpack.c.b16 %v881, %v877
  %v1254 = vpack.c.b16 %v882, %v878
  %v1255 = vpack.c.b16 %v883, %v879
  %v1256 = vpack.c.b16 %v888, %v884
  %v1257 = vpack.c.b16 %v889, %v885
  %v1258 = vpack.c.b16 %v890, %v886
  %v1259 = vpack.c.b16 %v891, %v887
  %v1260 = vpack.c.b16 %v896, %v892
  %v1261 = vpack.c.b16 %v897, %v893
  %v1262 = vpack.c.b16 %v898, %v894
  %v1263 = vpack.c.b16 %v899, %v895
  %v1264 = vpack.c.b16 %v904, %v900
  %v1265 = vpack.c.b16 %v905, %v901
  %v1266 = vpack.c.b16 %v906, %v902
  %v1267 = vpack.c.b16 %v907, %v903
  %v1268 = vpack.c.b16 %v912, %v908
  %v1269 = vpack.c.b16 %v913, %v909
  %v1270 = vpack.c.b16 %v914, %v910
  %v1271 = vpack.c.b16 %v915, %v911
  %v1272 = vpack.c.b16 %v920, %v916
  %v1273 = vpack.c.b16 %v921, %v917
  %v1274 = vpack.c.b16 %v922, %v918
  %v1275 = vpack.c.b16 %v923, %v919
  %v1276 = vpack.c.b16 %v928, %v924
  %v1277 = vpack.c.b16 %v929, %v925
  %v1278 = vpack.c.b16 %v930, %v926
  %v1279 = vpack.c.b16 %v931, %v927
  %v1280 = vpack.c.b16 %v936, %v932
  %v1281 = vpack.c.b16 %v937, %v933
  %v1282 = vpack.c.b16 %v938, %v934
  %v1283 = vpack.c.b16 %v939, %v935
  %v1284 = vpack.c.b16 %v944, %v940
  %v1285 = vpack.c.b16 %v945, %v941
  %v1286 = vpack.c.b16 %v946, %v942
  %v1287 = vpack.c.b16 %v947, %v943
  %v1288 = vpack.c.b16 %v952, %v948
  %v1289 = vpack.c.b16 %v953, %v949
  %v1290 = vpack.c.b16 %v954, %v950
  %v1291 = vpack.c.b16 %v955, %v951
  %v1292 = vpack.c.b16 %v960, %v956
  %v1293 = vpack.c.b16 %v961, %v957
  %v1294 = vpack.c.b16 %v962, %v958
  %v1295 = vpack.c.b16 %v963, %v959
  %v1296 = vpack.c.b16 %v968, %v964
  %v1297 = vpack.c.b16 %v969, %v965
  %v1298 = vpack.c.b16 %v970, %v966
  %v1299 = vpack.c.b16 %v971, %v967
  %v1300 = vpack.c.b16 %v976, %v972
  %v1301 = vpack.c.b16 %v977, %v973
  %v1302 = vpack.c.b16 %v978, %v974
  %v1303 = vpack.c.b16 %v979, %v975
  %v1304 = vpack.c.b16 %v984, %v980
  %v1305 = vpack.c.b16 %v985, %v981
  %v1306 = vpack.c.b16 %v986, %v982
  %v1307 = vpack.c.b16 %v987, %v983
  %v1308 = vpack.c.b16 %v992, %v988
  %v1309 = vpack.c.b16 %v993, %v989
  %v1310 = vpack.c.b16 %v994, %v990
  %v1311 = vpack.c.b16 %v995, %v991
  %v1312 = vpack.c.b16 %v1000, %v996
  %v1313 = vpack.c.b16 %v1001, %v997
  %v1314 = vpack.c.b16 %v1002, %v998
  %v1315 = vpack.c.b16 %v1003, %v999
  %v1316 = vpack.c.b16 %v1008, %v1004
  %v1317 = vpack.c.b16 %v1009, %v1005
  %v1318 = vpack.c.b16 %v1010, %v1006
  %v1319 = vpack.c.b16 %v1011, %v1007
  %v1320 = vpack.c.b16 %v1016, %v1012
  %v1321 = vpack.c.b16 %v1017, %v1013
  %v1322 = vpack.c.b16 %v1018, %v1014
  %v1323 = vpack.c.b16 %v1019, %v1015
  %v1324 = vpack.c.b16 %v1024, %v1020
  %v1325 = vpack.c.b16 %v1025, %v1021
  %v1326 = vpack.c.b16 %v1026, %v1022
  %v1327 = vpack.c.b16 %v1027, %v1023
  %v1328 = vpack.c.b16 %v1032, %v1028
  %v1329 = vpack.c.b16 %v1033, %v1029
  %v1330 = vpack.c.b16 %v1034, %v1030
  %v1331 = vpack.c.b16 %v1035, %v1031
  %v1332 = vpack.c.b16 %v1040, %v1036
  %v1333 = vpack.c.b16 %v1041, %v1037
  %v1334 = vpack.c.b16 %v1042, %v1038
  %v1335 = vpack.c.b16 %v1043, %v1039
  %v1336 = vpack.c.b16 %v1048, %v1044
  %v1337 = vpack.c.b16 %v1049, %v1045
  %v1338 = vpack.c.b16 %v1050, %v1046
  %v1339 = vpack.c.b16 %v1051, %v1047
  %v1340 = vpack.c.b16 %v1056, %v1052
  %v1341 = vpack.c.b16 %v1057, %v1053
  %v1342 = vpack.c.b16 %v1058, %v1054
  %v1343 = vpack.c.b16 %v1059, %v1055
  %v1344 = vpack.c.b16 %v1064, %v1060
  %v1345 = vpack.c.b16 %v1065, %v1061
  %v1346 = vpack.c.b16 %v1066, %v1062
  %v1347 = vpack.c.b16 %v1067, %v1063
  %v1348 = vpack.c.b16 %v1072, %v1068
  %v1349 = vpack.c.b16 %v1073, %v1069
  %v1350 = vpack.c.b16 %v1074, %v1070
  %v1351 = vpack.c.b16 %v1075, %v1071
  %v1352 = vpack.c.b16 %v1080, %v1076
  %v1353 = vpack.c.b16 %v1081, %v1077
  %v1354 = vpack.c.b16 %v1082, %v1078
  %v1355 = vpack.c.b16 %v1083, %v1079
  %v1356 = vpack.c.b16 %v1088, %v1084
  %v1357 = vpack.c.b16 %v1089, %v1085
  %v1358 = vpack.c.b16 %v1090, %v1086
  %v1359 = vpack.c.b16 %v1091, %v1087
  %v1360 = vpack.c.b16 %v1096, %v1092
  %v1361 = vpack.c.b16 %v1097, %v1093
  %v1362 = vpack.c.b16 %v1098, %v1094
  %v1363 = vpack.c.b16 %v1099, %v1095
  %v1364 = vpack.c.b16 %v1104, %v1100
  %v1365 = vpack.c.b16 %v1105, %v1101
  %v1366 = vpack.c.b16 %v1106, %v1102
  %v1367 = vpack.c.b16 %v1107, %v1103
  %v1368 = vpack.c.b16 %v1112, %v1108
  %v1369 = vpack.c.b16 %v1113, %v1109
  %v1370 = vpack.c.b16 %v1114, %v1110
  %v1371 = vpack.c.b16 %v1115, %v1111
  %v1372 = vpack.c.b16 %v1120, %v1116
  %v1373 = vpack.c.b16 %v1121, %v1117
  %v1374 = vpack.c.b16 %v1122, %v1118
  %v1375 = vpack.c.b16 %v1123, %v1119
  %v1376 = vpack.c.b16 %v1128, %v1124
  %v1377 = vpack.c.b16 %v1129, %v1125
  %v1378 = vpack.c.b16 %v1130, %v1126
  %v1379 = vpack.c.b16 %v1131, %v1127
  %v1380 = vpack.c.b16 %v1136, %v1132
  %v1381 = vpack.c.b16 %v1137, %v1133
  %v1382 = vpack.c.b16 %v1138, %v1134
  %v1383 = vpack.c.b16 %v1139, %v1135
  %v1384 = vpack.c.b16 %v1144, %v1140
  %v1385 = vpack.c.b16 %v1145, %v1141
  %v1386 = vpack.c.b16 %v1146, %v1142
  %v1387 = vpack.c.b16 %v1147, %v1143
  %v1388 = vpack.c.b16 %v1152, %v1148
  %v1389 = vpack.c.b16 %v1153, %v1149
  %v1390 = vpack.c.b16 %v1154, %v1150
  %v1391 = vpack.c.b16 %v1155, %v1151
  %v1392 = vpack.c.b16 %v1160, %v1156
  %v1393 = vpack.c.b16 %v1161, %v1157
  %v1394 = vpack.c.b16 %v1162, %v1158
  %v1395 = vpack.c.b16 %v1163, %v1159
  %v1396 = vpack.c.b16 %v1168, %v1164
  %v1397 = vpack.c.b16 %v1169, %v1165
  %v1398 = vpack.c.b16 %v1170, %v1166
  %v1399 = vpack.c.b16 %v1171, %v1167
  %v1400 = vpack.c.b16 %v1176, %v1172
  %v1401 = vpack.c.b16 %v1177, %v1173
  %v1402 = vpack.c.b16 %v1178, %v1174
  %v1403 = vpack.c.b16 %v1179, %v1175
  %v1404 = vpack.c.b16 %v1184, %v1180
  %v1405 = vpack.c.b16 %v1185, %v1181
  %v1406 = vpack.c.b16 %v1186, %v1182
  %v1407 = vpack.c.b16 %v1187, %v1183
  %v1408 = vpack.c.b16 %v1192, %v1188
  %v1409 = vpack.c.b16 %v1193, %v1189
  %v1410 = vpack.c.b16 %v1194, %v1190
  %v1411 = vpack.c.b16 %v1195, %v1191
  %v1412 = vpack.c.b16 %v1200, %v1196
  %v1413 = vpack.c.b16 %v1201, %v1197
  %v1414 = vpack.c.b16 %v1202, %v1198
  %v1415 = vpack.c.b16 %v1203, %v1199
  %v1416 = vpack.c.b16 %v1208, %v1204
  %v1417 = vpack.c.b16 %v1209, %v1205
  %v1418 = vpack.c.b16 %v1210, %v1206
  %v1419 = vpack.c.b16 %v1211, %v1207
  %v1420 = vpack.c.b16 %v1216, %v1212
  %v1421 = vpack.c.b16 %v1217, %v1213
  %v1422 = vpack.c.b16 %v1218, %v1214
  %v1423 = vpack.c.b16 %v1219, %v1215
  %v1424 = vpack.c.b16 %v1224, %v1220
  %v1425 = vpack.c.b16 %v1225, %v1221
  %v1426 = vpack.c.b16 %v1226, %v1222
  %v1427 = vpack.c.b16 %v1227, %v1223
  %v1428 = vpack.c.b16 %v1232, %v1228
  %v1429 = vpack.c.b16 %v1233, %v1229
  %v1430 = vpack.c.b16 %v1234, %v1230
  %v1431 = vpack.c.b16 %v1235, %v1231
  %v1432 = vpack.c.b16 %v1240, %v1236
  %v1433 = vpack.c.b16 %v1241, %v1237
  %v1434 = vpack.c.b16 %v1242, %v1238
  %v1435 = vpack.c.b16 %v1243, %v1239
  %1628 = vmatpush.bf16.msra.mxu0 %v1272
  %1629 = vmatpush.bf16.msra.mxu0 %v1268
  %1630 = vmatpush.bf16.msra.mxu0 %v1264
  %1631 = vmatpush.bf16.msra.mxu0 %v1260
  %1632 = vmatpush.bf16.msra.mxu0 %v1256
  %1633 = vmatpush.bf16.msra.mxu0 %v1252
  %1634 = vmatpush.bf16.msra.mxu0 %v1248
  %1635 = vmatpush.bf16.msra.mxu0 %v1244
  %1636 = vmatmul.bf16.gmra.mxu0 %v656
  %v1637 = vpop.f32.mrf.mxu0
  %v1638 = vadd.f32 %v639, %v1637
  %v1639 = vpop.f32.mrf.mxu0
  %1640 = vdwg.mxu0
  %1641 = vmatpush.bf16.msra.mxu0 %v1304
  %1642 = vmatpush.bf16.msra.mxu0 %v1300
  %1643 = vmatpush.bf16.msra.mxu0 %v1296
  %1644 = vmatpush.bf16.msra.mxu0 %v1292
  %1645 = vmatpush.bf16.msra.mxu0 %v1288
  %1646 = vmatpush.bf16.msra.mxu0 %v1284
  %1647 = vmatpush.bf16.msra.mxu0 %v1280
  %1648 = vmatpush.bf16.msra.mxu0 %v1276
  %1649 = vmatmul.bf16.gmra.mxu0 %v657
  %v1650 = vpop.f32.mrf.mxu0
  %v1651 = vadd.f32 %v1638, %v1650
  %v1652 = vpop.f32.mrf.mxu0
  %1653 = vdwg.mxu0
  %1654 = vmatpush.bf16.msra.mxu0 %v1336
  %1655 = vmatpush.bf16.msra.mxu0 %v1332
  %1656 = vmatpush.bf16.msra.mxu0 %v1328
  %1657 = vmatpush.bf16.msra.mxu0 %v1324
  %1658 = vmatpush.bf16.msra.mxu0 %v1320
  %1659 = vmatpush.bf16.msra.mxu0 %v1316
  %1660 = vmatpush.bf16.msra.mxu0 %v1312
  %1661 = vmatpush.bf16.msra.mxu0 %v1308
  %1662 = vmatmul.bf16.gmra.mxu0 %v658
  %v1663 = vpop.f32.mrf.mxu0
  %v1664 = vadd.f32 %v1651, %v1663
  %v1665 = vpop.f32.mrf.mxu0
  %1666 = vdwg.mxu0
  %1667 = vmatpush.bf16.msra.mxu0 %v1368
  %1668 = vmatpush.bf16.msra.mxu0 %v1364
  %1669 = vmatpush.bf16.msra.mxu0 %v1360
  %1670 = vmatpush.bf16.msra.mxu0 %v1356
  %1671 = vmatpush.bf16.msra.mxu0 %v1352
  %1672 = vmatpush.bf16.msra.mxu0 %v1348
  %1673 = vmatpush.bf16.msra.mxu0 %v1344
  %1674 = vmatpush.bf16.msra.mxu0 %v1340
  %1675 = vmatmul.bf16.gmra.mxu0 %v659
  %v1676 = vpop.f32.mrf.mxu0
  %v1677 = vadd.f32 %v1664, %v1676
  %v1678 = vpop.f32.mrf.mxu0
  %1679 = vdwg.mxu0
  %1680 = vmatpush.bf16.msra.mxu0 %v1400
  %1681 = vmatpush.bf16.msra.mxu0 %v1396
  %1682 = vmatpush.bf16.msra.mxu0 %v1392
  %1683 = vmatpush.bf16.msra.mxu0 %v1388
  %1684 = vmatpush.bf16.msra.mxu0 %v1384
  %1685 = vmatpush.bf16.msra.mxu0 %v1380
  %1686 = vmatpush.bf16.msra.mxu0 %v1376
  %1687 = vmatpush.bf16.msra.mxu0 %v1372
  %1688 = vmatmul.bf16.gmra.mxu0 %v660
  %v1689 = vpop.f32.mrf.mxu0
  %v1690 = vadd.f32 %v1677, %v1689
  %v1691 = vpop.f32.mrf.mxu0
  %1692 = vdwg.mxu0
  %1693 = vmatpush.bf16.msra.mxu0 %v1432
  %1694 = vmatpush.bf16.msra.mxu0 %v1428
  %1695 = vmatpush.bf16.msra.mxu0 %v1424
  %1696 = vmatpush.bf16.msra.mxu0 %v1420
  %1697 = vmatpush.bf16.msra.mxu0 %v1416
  %1698 = vmatpush.bf16.msra.mxu0 %v1412
  %1699 = vmatpush.bf16.msra.mxu0 %v1408
  %1700 = vmatpush.bf16.msra.mxu0 %v1404
  %1701 = vmatmul.bf16.gmra.mxu0 %v661
  %v1702 = vpop.f32.mrf.mxu0
  %v1703 = vadd.f32 %v1690, %v1702
  %v1704 = vpop.f32.mrf.mxu0
  %1705 = vdwg.mxu0
  %1706 = vmatpush.bf16.msra.mxu0 %v1273
  %1707 = vmatpush.bf16.msra.mxu0 %v1269
  %1708 = vmatpush.bf16.msra.mxu0 %v1265
  %1709 = vmatpush.bf16.msra.mxu0 %v1261
  %1710 = vmatpush.bf16.msra.mxu0 %v1257
  %1711 = vmatpush.bf16.msra.mxu0 %v1253
  %1712 = vmatpush.bf16.msra.mxu0 %v1249
  %1713 = vmatpush.bf16.msra.mxu0 %v1245
  %1714 = vmatmul.bf16.gmra.mxu0 %v656
  %v1715 = vpop.f32.mrf.mxu0
  %v1716 = vadd.f32 %v640, %v1715
  %v1717 = vpop.f32.mrf.mxu0
  %1718 = vdwg.mxu0
  %1719 = vmatpush.bf16.msra.mxu0 %v1305
  %1720 = vmatpush.bf16.msra.mxu0 %v1301
  %1721 = vmatpush.bf16.msra.mxu0 %v1297
  %1722 = vmatpush.bf16.msra.mxu0 %v1293
  %1723 = vmatpush.bf16.msra.mxu0 %v1289
  %1724 = vmatpush.bf16.msra.mxu0 %v1285
  %1725 = vmatpush.bf16.msra.mxu0 %v1281
  %1726 = vmatpush.bf16.msra.mxu0 %v1277
  %1727 = vmatmul.bf16.gmra.mxu0 %v657
  %v1728 = vpop.f32.mrf.mxu0
  %v1729 = vadd.f32 %v1716, %v1728
  %v1730 = vpop.f32.mrf.mxu0
  %1731 = vdwg.mxu0
  %1732 = vmatpush.bf16.msra.mxu0 %v1337
  %1733 = vmatpush.bf16.msra.mxu0 %v1333
  %1734 = vmatpush.bf16.msra.mxu0 %v1329
  %1735 = vmatpush.bf16.msra.mxu0 %v1325
  %1736 = vmatpush.bf16.msra.mxu0 %v1321
  %1737 = vmatpush.bf16.msra.mxu0 %v1317
  %1738 = vmatpush.bf16.msra.mxu0 %v1313
  %1739 = vmatpush.bf16.msra.mxu0 %v1309
  %1740 = vmatmul.bf16.gmra.mxu0 %v658
  %v1741 = vpop.f32.mrf.mxu0
  %v1742 = vadd.f32 %v1729, %v1741
  %v1743 = vpop.f32.mrf.mxu0
  %1744 = vdwg.mxu0
  %1745 = vmatpush.bf16.msra.mxu0 %v1369
  %1746 = vmatpush.bf16.msra.mxu0 %v1365
  %1747 = vmatpush.bf16.msra.mxu0 %v1361
  %1748 = vmatpush.bf16.msra.mxu0 %v1357
  %1749 = vmatpush.bf16.msra.mxu0 %v1353
  %1750 = vmatpush.bf16.msra.mxu0 %v1349
  %1751 = vmatpush.bf16.msra.mxu0 %v1345
  %1752 = vmatpush.bf16.msra.mxu0 %v1341
  %1753 = vmatmul.bf16.gmra.mxu0 %v659
  %v1754 = vpop.f32.mrf.mxu0
  %v1755 = vadd.f32 %v1742, %v1754
  %v1756 = vpop.f32.mrf.mxu0
  %1757 = vdwg.mxu0
  %1758 = vmatpush.bf16.msra.mxu0 %v1401
  %1759 = vmatpush.bf16.msra.mxu0 %v1397
  %1760 = vmatpush.bf16.msra.mxu0 %v1393
  %1761 = vmatpush.bf16.msra.mxu0 %v1389
  %1762 = vmatpush.bf16.msra.mxu0 %v1385
  %1763 = vmatpush.bf16.msra.mxu0 %v1381
  %1764 = vmatpush.bf16.msra.mxu0 %v1377
  %1765 = vmatpush.bf16.msra.mxu0 %v1373
  %1766 = vmatmul.bf16.gmra.mxu0 %v660
  %v1767 = vpop.f32.mrf.mxu0
  %v1768 = vadd.f32 %v1755, %v1767
  %v1769 = vpop.f32.mrf.mxu0
  %1770 = vdwg.mxu0
  %1771 = vmatpush.bf16.msra.mxu0 %v1433
  %1772 = vmatpush.bf16.msra.mxu0 %v1429
  %1773 = vmatpush.bf16.msra.mxu0 %v1425
  %1774 = vmatpush.bf16.msra.mxu0 %v1421
  %1775 = vmatpush.bf16.msra.mxu0 %v1417
  %1776 = vmatpush.bf16.msra.mxu0 %v1413
  %1777 = vmatpush.bf16.msra.mxu0 %v1409
  %1778 = vmatpush.bf16.msra.mxu0 %v1405
  %1779 = vmatmul.bf16.gmra.mxu0 %v661
  %v1780 = vpop.f32.mrf.mxu0
  %v1781 = vadd.f32 %v1768, %v1780
  %v1782 = vpop.f32.mrf.mxu0
  %1783 = vdwg.mxu0
  %1784 = vmatpush.bf16.msra.mxu0 %v1274
  %1785 = vmatpush.bf16.msra.mxu0 %v1270
  %1786 = vmatpush.bf16.msra.mxu0 %v1266
  %1787 = vmatpush.bf16.msra.mxu0 %v1262
  %1788 = vmatpush.bf16.msra.mxu0 %v1258
  %1789 = vmatpush.bf16.msra.mxu0 %v1254
  %1790 = vmatpush.bf16.msra.mxu0 %v1250
  %1791 = vmatpush.bf16.msra.mxu0 %v1246
  %1792 = vmatmul.bf16.gmra.mxu0 %v656
  %v1793 = vpop.f32.mrf.mxu0
  %v1794 = vadd.f32 %v641, %v1793
  %v1795 = vpop.f32.mrf.mxu0
  %1796 = vdwg.mxu0
  %1797 = vmatpush.bf16.msra.mxu0 %v1306
  %1798 = vmatpush.bf16.msra.mxu0 %v1302
  %1799 = vmatpush.bf16.msra.mxu0 %v1298
  %1800 = vmatpush.bf16.msra.mxu0 %v1294
  %1801 = vmatpush.bf16.msra.mxu0 %v1290
  %1802 = vmatpush.bf16.msra.mxu0 %v1286
  %1803 = vmatpush.bf16.msra.mxu0 %v1282
  %1804 = vmatpush.bf16.msra.mxu0 %v1278
  %1805 = vmatmul.bf16.gmra.mxu0 %v657
  %v1806 = vpop.f32.mrf.mxu0
  %v1807 = vadd.f32 %v1794, %v1806
  %v1808 = vpop.f32.mrf.mxu0
  %1809 = vdwg.mxu0
  %1810 = vmatpush.bf16.msra.mxu0 %v1338
  %1811 = vmatpush.bf16.msra.mxu0 %v1334
  %1812 = vmatpush.bf16.msra.mxu0 %v1330
  %1813 = vmatpush.bf16.msra.mxu0 %v1326
  %1814 = vmatpush.bf16.msra.mxu0 %v1322
  %1815 = vmatpush.bf16.msra.mxu0 %v1318
  %1816 = vmatpush.bf16.msra.mxu0 %v1314
  %1817 = vmatpush.bf16.msra.mxu0 %v1310
  %1818 = vmatmul.bf16.gmra.mxu0 %v658
  %v1819 = vpop.f32.mrf.mxu0
  %v1820 = vadd.f32 %v1807, %v1819
  %v1821 = vpop.f32.mrf.mxu0
  %1822 = vdwg.mxu0
  %1823 = vmatpush.bf16.msra.mxu0 %v1370
  %1824 = vmatpush.bf16.msra.mxu0 %v1366
  %1825 = vmatpush.bf16.msra.mxu0 %v1362
  %1826 = vmatpush.bf16.msra.mxu0 %v1358
  %1827 = vmatpush.bf16.msra.mxu0 %v1354
  %1828 = vmatpush.bf16.msra.mxu0 %v1350
  %1829 = vmatpush.bf16.msra.mxu0 %v1346
  %1830 = vmatpush.bf16.msra.mxu0 %v1342
  %1831 = vmatmul.bf16.gmra.mxu0 %v659
  %v1832 = vpop.f32.mrf.mxu0
  %v1833 = vadd.f32 %v1820, %v1832
  %v1834 = vpop.f32.mrf.mxu0
  %1835 = vdwg.mxu0
  %1836 = vmatpush.bf16.msra.mxu0 %v1402
  %1837 = vmatpush.bf16.msra.mxu0 %v1398
  %1838 = vmatpush.bf16.msra.mxu0 %v1394
  %1839 = vmatpush.bf16.msra.mxu0 %v1390
  %1840 = vmatpush.bf16.msra.mxu0 %v1386
  %1841 = vmatpush.bf16.msra.mxu0 %v1382
  %1842 = vmatpush.bf16.msra.mxu0 %v1378
  %1843 = vmatpush.bf16.msra.mxu0 %v1374
  %1844 = vmatmul.bf16.gmra.mxu0 %v660
  %v1845 = vpop.f32.mrf.mxu0
  %v1846 = vadd.f32 %v1833, %v1845
  %v1847 = vpop.f32.mrf.mxu0
  %1848 = vdwg.mxu0
  %1849 = vmatpush.bf16.msra.mxu0 %v1434
  %1850 = vmatpush.bf16.msra.mxu0 %v1430
  %1851 = vmatpush.bf16.msra.mxu0 %v1426
  %1852 = vmatpush.bf16.msra.mxu0 %v1422
  %1853 = vmatpush.bf16.msra.mxu0 %v1418
  %1854 = vmatpush.bf16.msra.mxu0 %v1414
  %1855 = vmatpush.bf16.msra.mxu0 %v1410
  %1856 = vmatpush.bf16.msra.mxu0 %v1406
  %1857 = vmatmul.bf16.gmra.mxu0 %v661
  %v1858 = vpop.f32.mrf.mxu0
  %v1859 = vadd.f32 %v1846, %v1858
  %v1860 = vpop.f32.mrf.mxu0
  %1861 = vdwg.mxu0
  %1862 = vmatpush.bf16.msra.mxu0 %v1275
  %1863 = vmatpush.bf16.msra.mxu0 %v1271
  %1864 = vmatpush.bf16.msra.mxu0 %v1267
  %1865 = vmatpush.bf16.msra.mxu0 %v1263
  %1866 = vmatpush.bf16.msra.mxu0 %v1259
  %1867 = vmatpush.bf16.msra.mxu0 %v1255
  %1868 = vmatpush.bf16.msra.mxu0 %v1251
  %1869 = vmatpush.bf16.msra.mxu0 %v1247
  %1870 = vmatmul.bf16.gmra.mxu0 %v656
  %v1871 = vpop.f32.mrf.mxu0
  %v1872 = vadd.f32 %v642, %v1871
  %v1873 = vpop.f32.mrf.mxu0
  %1874 = vdwg.mxu0
  %1875 = vmatpush.bf16.msra.mxu0 %v1307
  %1876 = vmatpush.bf16.msra.mxu0 %v1303
  %1877 = vmatpush.bf16.msra.mxu0 %v1299
  %1878 = vmatpush.bf16.msra.mxu0 %v1295
  %1879 = vmatpush.bf16.msra.mxu0 %v1291
  %1880 = vmatpush.bf16.msra.mxu0 %v1287
  %1881 = vmatpush.bf16.msra.mxu0 %v1283
  %1882 = vmatpush.bf16.msra.mxu0 %v1279
  %1883 = vmatmul.bf16.gmra.mxu0 %v657
  %v1884 = vpop.f32.mrf.mxu0
  %v1885 = vadd.f32 %v1872, %v1884
  %v1886 = vpop.f32.mrf.mxu0
  %1887 = vdwg.mxu0
  %1888 = vmatpush.bf16.msra.mxu0 %v1339
  %1889 = vmatpush.bf16.msra.mxu0 %v1335
  %1890 = vmatpush.bf16.msra.mxu0 %v1331
  %1891 = vmatpush.bf16.msra.mxu0 %v1327
  %1892 = vmatpush.bf16.msra.mxu0 %v1323
  %1893 = vmatpush.bf16.msra.mxu0 %v1319
  %1894 = vmatpush.bf16.msra.mxu0 %v1315
  %1895 = vmatpush.bf16.msra.mxu0 %v1311
  %1896 = vmatmul.bf16.gmra.mxu0 %v658
  %v1897 = vpop.f32.mrf.mxu0
  %v1898 = vadd.f32 %v1885, %v1897
  %v1899 = vpop.f32.mrf.mxu0
  %1900 = vdwg.mxu0
  %1901 = vmatpush.bf16.msra.mxu0 %v1371
  %1902 = vmatpush.bf16.msra.mxu0 %v1367
  %1903 = vmatpush.bf16.msra.mxu0 %v1363
  %1904 = vmatpush.bf16.msra.mxu0 %v1359
  %1905 = vmatpush.bf16.msra.mxu0 %v1355
  %1906 = vmatpush.bf16.msra.mxu0 %v1351
  %1907 = vmatpush.bf16.msra.mxu0 %v1347
  %1908 = vmatpush.bf16.msra.mxu0 %v1343
  %1909 = vmatmul.bf16.gmra.mxu0 %v659
  %v1910 = vpop.f32.mrf.mxu0
  %v1911 = vadd.f32 %v1898, %v1910
  %v1912 = vpop.f32.mrf.mxu0
  %1913 = vdwg.mxu0
  %1914 = vmatpush.bf16.msra.mxu0 %v1403
  %1915 = vmatpush.bf16.msra.mxu0 %v1399
  %1916 = vmatpush.bf16.msra.mxu0 %v1395
  %1917 = vmatpush.bf16.msra.mxu0 %v1391
  %1918 = vmatpush.bf16.msra.mxu0 %v1387
  %1919 = vmatpush.bf16.msra.mxu0 %v1383
  %1920 = vmatpush.bf16.msra.mxu0 %v1379
  %1921 = vmatpush.bf16.msra.mxu0 %v1375
  %1922 = vmatmul.bf16.gmra.mxu0 %v660
  %v1923 = vpop.f32.mrf.mxu0
  %v1924 = vadd.f32 %v1911, %v1923
  %v1925 = vpop.f32.mrf.mxu0
  %1926 = vdwg.mxu0
  %1927 = vmatpush.bf16.msra.mxu0 %v1435
  %1928 = vmatpush.bf16.msra.mxu0 %v1431
  %1929 = vmatpush.bf16.msra.mxu0 %v1427
  %1930 = vmatpush.bf16.msra.mxu0 %v1423
  %1931 = vmatpush.bf16.msra.mxu0 %v1419
  %1932 = vmatpush.bf16.msra.mxu0 %v1415
  %1933 = vmatpush.bf16.msra.mxu0 %v1411
  %1934 = vmatpush.bf16.msra.mxu0 %v1407
  %1935 = vmatmul.bf16.gmra.mxu0 %v661
  %v1936 = vpop.f32.mrf.mxu0
  %v1937 = vadd.f32 %v1924, %v1936
  %v1938 = vpop.f32.mrf.mxu0
  %1939 = vdwg.mxu0
  %vm1940 = vcmp.ge.f32.partialorder %v1703, 0.0
  %vm1941 = vcmp.ge.f32.partialorder %v1781, 0.0
  %vm1942 = vcmp.ge.f32.partialorder %v1859, 0.0
  %vm1943 = vcmp.ge.f32.partialorder %v1937, 0.0
  %v1944 = vmul.f32 %v1703, 0.01
  %v1945 = vmul.f32 %v1781, 0.01
  %v1946 = vmul.f32 %v1859, 0.01
  %v1947 = vmul.f32 %v1937, 0.01
  %v1948 = vsel %vm1940, %v1703, %v1944
  %v1949 = vsel %vm1941, %v1781, %v1945
  %v1950 = vsel %vm1942, %v1859, %v1946
  %v1951 = vsel %vm1943, %v1937, %v1947
  %v1952 = vpack.c.bf16 %v1948, %v1948
  %v1953 = vpack.c.bf16 %v1949, %v1949
  %v1954 = vpack.c.bf16 %v1950, %v1950
  %v1955 = vpack.c.bf16 %v1951, %v1951
  %v1956 = vld [vmem:[%s3] sm:$0xf]
  %v1957 = vld [vmem:[%s3 + $0x4] sm:$0xf]
  %v1958 = vld [vmem:[%s3 + $0x8] sm:$0xf]
  %v1959 = vld [vmem:[%s3 + $0xc] sm:$0xf]
  %v1960 = vld [vmem:[%s3 + $0x10] sm:$0xf]
  %v1961 = vld [vmem:[%s3 + $0x14] sm:$0xf]
  %v1962 = vld [vmem:[%s3 + $0x18] sm:$0xf]
  %v1963 = vld [vmem:[%s3 + $0x1c] sm:$0xf]
  %v1964 = vld [vmem:[%s3 + $0x20] sm:$0xf]
  %v1965 = vld [vmem:[%s3 + $0x24] sm:$0xf]
  %v1966 = vld [vmem:[%s3 + $0x28] sm:$0xf]
  %v1967 = vld [vmem:[%s3 + $0x2c] sm:$0xf]
  %v1968 = vld [vmem:[%s3 + $0x30] sm:$0xf]
  %v1969 = vld [vmem:[%s3 + $0x34] sm:$0xf]
  %v1970 = vld [vmem:[%s3 + $0x38] sm:$0xf]
  %v1971 = vld [vmem:[%s3 + $0x3c] sm:$0xf]
  %v1972 = vld [vmem:[%s3 + $0x40] sm:$0xf]
  %v1973 = vld [vmem:[%s3 + $0x44] sm:$0xf]
  %v1974 = vld [vmem:[%s3 + $0x48] sm:$0xf]
  %v1975 = vld [vmem:[%s3 + $0x4c] sm:$0xf]
  %v1976 = vld [vmem:[%s3 + $0x50] sm:$0xf]
  %v1977 = vld [vmem:[%s3 + $0x54] sm:$0xf]
  %v1978 = vld [vmem:[%s3 + $0x58] sm:$0xf]
  %v1979 = vld [vmem:[%s3 + $0x5c] sm:$0xf]
  %v1980 = vld [vmem:[%s3 + $0x60] sm:$0xf]
  %v1981 = vld [vmem:[%s3 + $0x64] sm:$0xf]
  %v1982 = vld [vmem:[%s3 + $0x68] sm:$0xf]
  %v1983 = vld [vmem:[%s3 + $0x6c] sm:$0xf]
  %v1984 = vld [vmem:[%s3 + $0x70] sm:$0xf]
  %v1985 = vld [vmem:[%s3 + $0x74] sm:$0xf]
  %v1986 = vld [vmem:[%s3 + $0x78] sm:$0xf]
  %v1987 = vld [vmem:[%s3 + $0x7c] sm:$0xf]
  %v1988 = vld [vmem:[%s3 + $0x80] sm:$0xf]
  %v1989 = vld [vmem:[%s3 + $0x84] sm:$0xf]
  %v1990 = vld [vmem:[%s3 + $0x88] sm:$0xf]
  %v1991 = vld [vmem:[%s3 + $0x8c] sm:$0xf]
  %v1992 = vld [vmem:[%s3 + $0x90] sm:$0xf]
  %v1993 = vld [vmem:[%s3 + $0x94] sm:$0xf]
  %v1994 = vld [vmem:[%s3 + $0x98] sm:$0xf]
  %v1995 = vld [vmem:[%s3 + $0x9c] sm:$0xf]
  %v1996 = vld [vmem:[%s3 + $0xa0] sm:$0xf]
  %v1997 = vld [vmem:[%s3 + $0xa4] sm:$0xf]
  %v1998 = vld [vmem:[%s3 + $0xa8] sm:$0xf]
  %v1999 = vld [vmem:[%s3 + $0xac] sm:$0xf]
  %v2000 = vld [vmem:[%s3 + $0xb0] sm:$0xf]
  %v2001 = vld [vmem:[%s3 + $0xb4] sm:$0xf]
  %v2002 = vld [vmem:[%s3 + $0xb8] sm:$0xf]
  %v2003 = vld [vmem:[%s3 + $0xbc] sm:$0xf]
  %v2004 = vld [vmem:[%s3 + $0xc0] sm:$0xf]
  %v2005 = vld [vmem:[%s4] sm:$0x1]
  %v2007 = vperm.slane %v2005, 0
  %v2058 = vunpack.c.l.b16 %v1956
  %v2059 = vunpack.c.l.b16 %v1957
  %v2060 = vunpack.c.l.b16 %v1958
  %v2061 = vunpack.c.l.b16 %v1959
  %v2062 = vunpack.c.l.b16 %v1960
  %v2063 = vunpack.c.l.b16 %v1961
  %v2064 = vunpack.c.l.b16 %v1962
  %v2065 = vunpack.c.l.b16 %v1963
  %v2066 = vunpack.c.l.b16 %v1964
  %v2067 = vunpack.c.l.b16 %v1965
  %v2068 = vunpack.c.l.b16 %v1966
  %v2069 = vunpack.c.l.b16 %v1967
  %v2070 = vunpack.c.l.b16 %v1968
  %v2071 = vunpack.c.l.b16 %v1969
  %v2072 = vunpack.c.l.b16 %v1970
  %v2073 = vunpack.c.l.b16 %v1971
  %v2074 = vunpack.c.l.b16 %v1972
  %v2075 = vunpack.c.l.b16 %v1973
  %v2076 = vunpack.c.l.b16 %v1974
  %v2077 = vunpack.c.l.b16 %v1975
  %v2078 = vunpack.c.l.b16 %v1976
  %v2079 = vunpack.c.l.b16 %v1977
  %v2080 = vunpack.c.l.b16 %v1978
  %v2081 = vunpack.c.l.b16 %v1979
  %v2082 = vunpack.c.l.b16 %v1980
  %v2083 = vunpack.c.l.b16 %v1981
  %v2084 = vunpack.c.l.b16 %v1982
  %v2085 = vunpack.c.l.b16 %v1983
  %v2086 = vunpack.c.l.b16 %v1984
  %v2087 = vunpack.c.l.b16 %v1985
  %v2088 = vunpack.c.l.b16 %v1986
  %v2089 = vunpack.c.l.b16 %v1987
  %v2090 = vunpack.c.l.b16 %v1988
  %v2091 = vunpack.c.l.b16 %v1989
  %v2092 = vunpack.c.l.b16 %v1990
  %v2093 = vunpack.c.l.b16 %v1991
  %v2094 = vunpack.c.l.b16 %v1992
  %v2095 = vunpack.c.l.b16 %v1993
  %v2096 = vunpack.c.l.b16 %v1994
  %v2097 = vunpack.c.l.b16 %v1995
  %v2098 = vunpack.c.l.b16 %v1996
  %v2099 = vunpack.c.l.b16 %v1997
  %v2100 = vunpack.c.l.b16 %v1998
  %v2101 = vunpack.c.l.b16 %v1999
  %v2102 = vunpack.c.l.b16 %v2000
  %v2103 = vunpack.c.l.b16 %v2001
  %v2104 = vunpack.c.l.b16 %v2002
  %v2105 = vunpack.c.l.b16 %v2003
  %v2106 = vunpack.c.l.b16 %v2004
  %v2107 = vpack.c.b16 %v2059, %v2058
  %v2108 = vpack.c.b16 %v2061, %v2060
  %v2109 = vpack.c.b16 %v2063, %v2062
  %v2110 = vpack.c.b16 %v2065, %v2064
  %v2111 = vpack.c.b16 %v2067, %v2066
  %v2112 = vpack.c.b16 %v2069, %v2068
  %v2113 = vpack.c.b16 %v2071, %v2070
  %v2114 = vpack.c.b16 %v2073, %v2072
  %v2115 = vpack.c.b16 %v2075, %v2074
  %v2116 = vpack.c.b16 %v2077, %v2076
  %v2117 = vpack.c.b16 %v2079, %v2078
  %v2118 = vpack.c.b16 %v2081, %v2080
  %v2119 = vpack.c.b16 %v2083, %v2082
  %v2120 = vpack.c.b16 %v2085, %v2084
  %v2121 = vpack.c.b16 %v2087, %v2086
  %v2122 = vpack.c.b16 %v2089, %v2088
  %v2123 = vpack.c.b16 %v2091, %v2090
  %v2124 = vpack.c.b16 %v2093, %v2092
  %v2125 = vpack.c.b16 %v2095, %v2094
  %v2126 = vpack.c.b16 %v2097, %v2096
  %v2127 = vpack.c.b16 %v2099, %v2098
  %v2128 = vpack.c.b16 %v2101, %v2100
  %v2129 = vpack.c.b16 %v2103, %v2102
  %v2130 = vpack.c.b16 %v2105, %v2104
  %v2131 = vpack.c.b16 %v2106, %v2106
  %vm2156 = vcmask 64512
  %v2158 = vsel %vm2156, %v1955, 0
  %vm2160 = vcmask 1043456
  %v2162 = vsel %vm2160, %v2131, 0
  %2164 = vmatpush.bf16.msra.mxu0 %v2114
  %2165 = vmatpush.bf16.msra.mxu0 %v2113
  %2166 = vmatpush.bf16.msra.mxu0 %v2112
  %2167 = vmatpush.bf16.msra.mxu0 %v2111
  %2168 = vmatpush.bf16.msra.mxu0 %v2110
  %2169 = vmatpush.bf16.msra.mxu0 %v2109
  %2170 = vmatpush.bf16.msra.mxu0 %v2108
  %2171 = vmatpush.bf16.msra.mxu0 %v2107
  %2172 = vmatmul.bf16.gmra.mxu0 %v1952
  %v2173 = vpop.f32.mrf.mxu0
  %v2174 = vadd.f32 %v2007, %v2173
  %v2175 = vpop.f32.mrf.mxu0
  %2176 = vdwg.mxu0
  %2177 = vmatpush.bf16.msra.mxu0 %v2122
  %2178 = vmatpush.bf16.msra.mxu0 %v2121
  %2179 = vmatpush.bf16.msra.mxu0 %v2120
  %2180 = vmatpush.bf16.msra.mxu0 %v2119
  %2181 = vmatpush.bf16.msra.mxu0 %v2118
  %2182 = vmatpush.bf16.msra.mxu0 %v2117
  %2183 = vmatpush.bf16.msra.mxu0 %v2116
  %2184 = vmatpush.bf16.msra.mxu0 %v2115
  %2185 = vmatmul.bf16.gmra.mxu0 %v1953
  %v2186 = vpop.f32.mrf.mxu0
  %v2187 = vadd.f32 %v2174, %v2186
  %v2188 = vpop.f32.mrf.mxu0
  %2189 = vdwg.mxu0
  %2190 = vmatpush.bf16.msra.mxu0 %v2130
  %2191 = vmatpush.bf16.msra.mxu0 %v2129
  %2192 = vmatpush.bf16.msra.mxu0 %v2128
  %2193 = vmatpush.bf16.msra.mxu0 %v2127
  %2194 = vmatpush.bf16.msra.mxu0 %v2126
  %2195 = vmatpush.bf16.msra.mxu0 %v2125
  %2196 = vmatpush.bf16.msra.mxu0 %v2124
  %2197 = vmatpush.bf16.msra.mxu0 %v2123
  %2198 = vmatmul.bf16.gmra.mxu0 %v1954
  %v2199 = vpop.f32.mrf.mxu0
  %v2200 = vadd.f32 %v2187, %v2199
  %v2201 = vpop.f32.mrf.mxu0
  %2202 = vdwg.mxu0
  %2203 = vmatpush.bf16.msra.mxu0 0
  %2204 = vmatpush.bf16.msra.mxu0 0
  %2205 = vmatpush.bf16.msra.mxu0 0
  %2206 = vmatpush.bf16.msra.mxu0 0
  %2207 = vmatpush.bf16.msra.mxu0 0
  %2208 = vmatpush.bf16.msra.mxu0 0
  %2209 = vmatpush.bf16.msra.mxu0 0
  %2210 = vmatpush.bf16.msra.mxu0 %v2162
  %2211 = vmatmul.bf16.gmra.mxu0 %v2158
  %v2212 = vpop.f32.mrf.mxu0
  %v2213 = vadd.f32 %v2200, %v2212
  %v2214 = vpop.f32.mrf.mxu0
  %2215 = vdwg.mxu0
  %vm2216 = vcmp.ge.f32.partialorder %v2213, 0.0
  %v2217 = vmul.f32 %v2213, 0.01
  %v2218 = vsel %vm2216, %v2213, %v2217
  %v2219 = vpack.c.bf16 %v2218, %v2218
  %v2220 = vld [vmem:[%s5] sm:$0xff]
  %v2221 = vld [vmem:[%s5 + $0x8] sm:$0xff]
  %v2222 = vld [vmem:[%s5 + $0x10] sm:$0xff]
  %v2223 = vld [vmem:[%s5 + $0x18] sm:$0xff]
  %v2224 = vld [vmem:[%s5 + $0x20] sm:$0xff]
  %v2225 = vld [vmem:[%s5 + $0x28] sm:$0xff]
  %v2226 = vld [vmem:[%s5 + $0x30] sm:$0xff]
  %v2227 = vld [vmem:[%s5 + $0x38] sm:$0xff]
  %v2228 = vld [vmem:[%s5 + $0x40] sm:$0x33]
  %v2229 = vld [vmem:[%s5 + $0x48] sm:$0x33]
  %v2230 = vld [vmem:[%s6] sm:$0xf]
  %v2232 = vperm.slane %v2230, 0
  %v2233 = vperm.slane %v2230, 1
  %v2234 = vperm.slane %v2230, 2
  %v2235 = vperm.slane %v2230, 3
  %v2250 = vunpack.c.l.b16 %v2220
  %v2251 = vunpack.c.h.b16 %v2220
  %v2252 = vunpack.c.l.b16 %v2221
  %v2253 = vunpack.c.h.b16 %v2221
  %v2254 = vunpack.c.l.b16 %v2222
  %v2255 = vunpack.c.h.b16 %v2222
  %v2256 = vunpack.c.l.b16 %v2223
  %v2257 = vunpack.c.h.b16 %v2223
  %v2258 = vunpack.c.l.b16 %v2224
  %v2259 = vunpack.c.h.b16 %v2224
  %v2260 = vunpack.c.l.b16 %v2225
  %v2261 = vunpack.c.h.b16 %v2225
  %v2262 = vunpack.c.l.b16 %v2226
  %v2263 = vunpack.c.h.b16 %v2226
  %v2264 = vunpack.c.l.b16 %v2227
  %v2265 = vunpack.c.h.b16 %v2227
  %v2266 = vunpack.c.l.b16 %v2228
  %v2267 = vunpack.c.h.b16 %v2228
  %v2268 = vunpack.c.l.b16 %v2229
  %v2269 = vunpack.c.h.b16 %v2229
  %v2270 = vpack.c.b16 %v2254, %v2250
  %v2271 = vpack.c.b16 %v2255, %v2251
  %v2272 = vpack.c.b16 %v2256, %v2252
  %v2273 = vpack.c.b16 %v2257, %v2253
  %v2274 = vpack.c.b16 %v2262, %v2258
  %v2275 = vpack.c.b16 %v2263, %v2259
  %v2276 = vpack.c.b16 %v2264, %v2260
  %v2277 = vpack.c.b16 %v2265, %v2261
  %v2278 = vpack.c.b16 %v2266, %v2266
  %v2279 = vpack.c.b16 %v2267, %v2267
  %v2280 = vpack.c.b16 %v2268, %v2268
  %v2281 = vpack.c.b16 %v2269, %v2269
  %vm2290 = vcmask 293888
  %v2292 = vsel %vm2290, %v2219, 0
  %vm2294 = vcmask 1041408
  %v2296 = vsel %vm2294, %v2278, 0
  %v2299 = vsel %vm2294, %v2279, 0
  %v2302 = vsel %vm2294, %v2280, 0
  %v2305 = vsel %vm2294, %v2281, 0
  %2307 = vmatpush.bf16.msra.mxu0 0
  %2308 = vmatpush.bf16.msra.mxu0 0
  %2309 = vmatpush.bf16.msra.mxu0 0
  %2310 = vmatpush.bf16.msra.mxu0 0
  %2311 = vmatpush.bf16.msra.mxu0 0
  %2312 = vmatpush.bf16.msra.mxu0 %v2296
  %2313 = vmatpush.bf16.msra.mxu0 %v2274
  %2314 = vmatpush.bf16.msra.mxu0 %v2270
  %2315 = vmatmul.bf16.gmra.mxu0 %v2292
  %v2316 = vpop.f32.mrf.mxu0
  %v2317 = vadd.f32 %v2232, %v2316
  %v2318 = vpop.f32.mrf.mxu0
  %2319 = vdwg.mxu0
  %2320 = vmatpush.bf16.msra.mxu0 0
  %2321 = vmatpush.bf16.msra.mxu0 0
  %2322 = vmatpush.bf16.msra.mxu0 0
  %2323 = vmatpush.bf16.msra.mxu0 0
  %2324 = vmatpush.bf16.msra.mxu0 0
  %2325 = vmatpush.bf16.msra.mxu0 %v2299
  %2326 = vmatpush.bf16.msra.mxu0 %v2275
  %2327 = vmatpush.bf16.msra.mxu0 %v2271
  %2328 = vmatmul.bf16.gmra.mxu0 %v2292
  %v2329 = vpop.f32.mrf.mxu0
  %v2330 = vadd.f32 %v2233, %v2329
  %v2331 = vpop.f32.mrf.mxu0
  %2332 = vdwg.mxu0
  %2333 = vmatpush.bf16.msra.mxu0 0
  %2334 = vmatpush.bf16.msra.mxu0 0
  %2335 = vmatpush.bf16.msra.mxu0 0
  %2336 = vmatpush.bf16.msra.mxu0 0
  %2337 = vmatpush.bf16.msra.mxu0 0
  %2338 = vmatpush.bf16.msra.mxu0 %v2302
  %2339 = vmatpush.bf16.msra.mxu0 %v2276
  %2340 = vmatpush.bf16.msra.mxu0 %v2272
  %2341 = vmatmul.bf16.gmra.mxu0 %v2292
  %v2342 = vpop.f32.mrf.mxu0
  %v2343 = vadd.f32 %v2234, %v2342
  %v2344 = vpop.f32.mrf.mxu0
  %2345 = vdwg.mxu0
  %2346 = vmatpush.bf16.msra.mxu0 0
  %2347 = vmatpush.bf16.msra.mxu0 0
  %2348 = vmatpush.bf16.msra.mxu0 0
  %2349 = vmatpush.bf16.msra.mxu0 0
  %2350 = vmatpush.bf16.msra.mxu0 0
  %2351 = vmatpush.bf16.msra.mxu0 %v2305
  %2352 = vmatpush.bf16.msra.mxu0 %v2277
  %2353 = vmatpush.bf16.msra.mxu0 %v2273
  %2354 = vmatmul.bf16.gmra.mxu0 %v2292
  %v2355 = vpop.f32.mrf.mxu0
  %v2356 = vadd.f32 %v2235, %v2355
  %v2357 = vpop.f32.mrf.mxu0
  %2358 = vdwg.mxu0
  %vm2359 = vcmp.ge.f32.partialorder %v2317, 0.0
  %vm2360 = vcmp.ge.f32.partialorder %v2330, 0.0
  %vm2361 = vcmp.ge.f32.partialorder %v2343, 0.0
  %vm2362 = vcmp.ge.f32.partialorder %v2356, 0.0
  %v2363 = vmul.f32 %v2317, 0.01
  %v2364 = vmul.f32 %v2330, 0.01
  %v2365 = vmul.f32 %v2343, 0.01
  %v2366 = vmul.f32 %v2356, 0.01
  %v2367 = vsel %vm2359, %v2317, %v2363
  %v2368 = vsel %vm2360, %v2330, %v2364
  %v2369 = vsel %vm2361, %v2343, %v2365
  %v2370 = vsel %vm2362, %v2356, %v2366
  %s2371 = smul.u32 4, 49
  %s2372 = smul.u32 %s2371, 8
  %s2373 = sshll.u32 %s2372, 4
  %2374 = dma.done [#allocation3], %s2373
  %v2375 = vpack.c.bf16 %v2367, %v2367
  %v2376 = vpack.c.bf16 %v2368, %v2368
  %v2377 = vpack.c.bf16 %v2369, %v2369
  %v2378 = vpack.c.bf16 %v2370, %v2370
  %v2379 = vld [vmem:[#allocation2] sm:$0xff]
  %v2380 = vld [vmem:[#allocation2 + $0x8] sm:$0xff]
  %v2381 = vld [vmem:[#allocation2 + $0x10] sm:$0xff]
  %v2382 = vld [vmem:[#allocation2 + $0x18] sm:$0xff]
  %v2383 = vld [vmem:[#allocation2 + $0x20] sm:$0xff]
  %v2384 = vld [vmem:[#allocation2 + $0x28] sm:$0xff]
  %v2385 = vld [vmem:[#allocation2 + $0x30] sm:$0xff]
  %v2386 = vld [vmem:[#allocation2 + $0x38] sm:$0xff]
  %v2387 = vld [vmem:[#allocation2 + $0x40] sm:$0xff]
  %v2388 = vld [vmem:[#allocation2 + $0x48] sm:$0xff]
  %v2389 = vld [vmem:[#allocation2 + $0x50] sm:$0xff]
  %v2390 = vld [vmem:[#allocation2 + $0x58] sm:$0xff]
  %v2391 = vld [vmem:[#allocation2 + $0x60] sm:$0xff]
  %v2392 = vld [vmem:[#allocation2 + $0x68] sm:$0xff]
  %v2393 = vld [vmem:[#allocation2 + $0x70] sm:$0xff]
  %v2394 = vld [vmem:[#allocation2 + $0x78] sm:$0xff]
  %v2395 = vld [vmem:[#allocation2 + $0x80] sm:$0xff]
  %v2396 = vld [vmem:[#allocation2 + $0x88] sm:$0xff]
  %v2397 = vld [vmem:[#allocation2 + $0x90] sm:$0xff]
  %v2398 = vld [vmem:[#allocation2 + $0x98] sm:$0xff]
  %v2399 = vld [vmem:[#allocation2 + $0xa0] sm:$0xff]
  %v2400 = vld [vmem:[#allocation2 + $0xa8] sm:$0xff]
  %v2401 = vld [vmem:[#allocation2 + $0xb0] sm:$0xff]
  %v2402 = vld [vmem:[#allocation2 + $0xb8] sm:$0xff]
  %v2403 = vld [vmem:[#allocation2 + $0xc0] sm:$0xff]
  %v2404 = vld [vmem:[#allocation2 + $0xc8] sm:$0xff]
  %v2405 = vld [vmem:[#allocation2 + $0xd0] sm:$0xff]
  %v2406 = vld [vmem:[#allocation2 + $0xd8] sm:$0xff]
  %v2407 = vld [vmem:[#allocation2 + $0xe0] sm:$0xff]
  %v2408 = vld [vmem:[#allocation2 + $0xe8] sm:$0xff]
  %v2409 = vld [vmem:[#allocation2 + $0xf0] sm:$0xff]
  %v2410 = vld [vmem:[#allocation2 + $0xf8] sm:$0xff]
  %v2411 = vld [vmem:[#allocation2 + $0x100] sm:$0xff]
  %v2412 = vld [vmem:[#allocation2 + $0x108] sm:$0xff]
  %v2413 = vld [vmem:[#allocation2 + $0x110] sm:$0xff]
  %v2414 = vld [vmem:[#allocation2 + $0x118] sm:$0xff]
  %v2415 = vld [vmem:[#allocation2 + $0x120] sm:$0xff]
  %v2416 = vld [vmem:[#allocation2 + $0x128] sm:$0xff]
  %v2417 = vld [vmem:[#allocation2 + $0x130] sm:$0xff]
  %v2418 = vld [vmem:[#allocation2 + $0x138] sm:$0xff]
  %v2419 = vld [vmem:[#allocation2 + $0x140] sm:$0xff]
  %v2420 = vld [vmem:[#allocation2 + $0x148] sm:$0xff]
  %v2421 = vld [vmem:[#allocation2 + $0x150] sm:$0xff]
  %v2422 = vld [vmem:[#allocation2 + $0x158] sm:$0xff]
  %v2423 = vld [vmem:[#allocation2 + $0x160] sm:$0xff]
  %v2424 = vld [vmem:[#allocation2 + $0x168] sm:$0xff]
  %v2425 = vld [vmem:[#allocation2 + $0x170] sm:$0xff]
  %v2426 = vld [vmem:[#allocation2 + $0x178] sm:$0xff]
  %v2427 = vld [vmem:[#allocation2 + $0x180] sm:$0xff]
  %v2428 = vld [vmem:[#allocation2 + $0x188] sm:$0xff]
  %v2429 = vld [vmem:[#allocation2 + $0x190] sm:$0xff]
  %v2430 = vld [vmem:[#allocation2 + $0x198] sm:$0xff]
  %v2431 = vld [vmem:[#allocation2 + $0x1a0] sm:$0xff]
  %v2432 = vld [vmem:[#allocation2 + $0x1a8] sm:$0xff]
  %v2433 = vld [vmem:[#allocation2 + $0x1b0] sm:$0xff]
  %v2434 = vld [vmem:[#allocation2 + $0x1b8] sm:$0xff]
  %v2435 = vld [vmem:[#allocation2 + $0x1c0] sm:$0xff]
  %v2436 = vld [vmem:[#allocation2 + $0x1c8] sm:$0xff]
  %v2437 = vld [vmem:[#allocation2 + $0x1d0] sm:$0xff]
  %v2438 = vld [vmem:[#allocation2 + $0x1d8] sm:$0xff]
  %v2439 = vld [vmem:[#allocation2 + $0x1e0] sm:$0xff]
  %v2440 = vld [vmem:[#allocation2 + $0x1e8] sm:$0xff]
  %v2441 = vld [vmem:[#allocation2 + $0x1f0] sm:$0xff]
  %v2442 = vld [vmem:[#allocation2 + $0x1f8] sm:$0xff]
  %v2443 = vld [vmem:[#allocation2 + $0x200] sm:$0xff]
  %v2444 = vld [vmem:[#allocation2 + $0x208] sm:$0xff]
  %v2445 = vld [vmem:[#allocation2 + $0x210] sm:$0xff]
  %v2446 = vld [vmem:[#allocation2 + $0x218] sm:$0xff]
  %v2447 = vld [vmem:[#allocation2 + $0x220] sm:$0xff]
  %v2448 = vld [vmem:[#allocation2 + $0x228] sm:$0xff]
  %v2449 = vld [vmem:[#allocation2 + $0x230] sm:$0xff]
  %v2450 = vld [vmem:[#allocation2 + $0x238] sm:$0xff]
  %v2451 = vld [vmem:[#allocation2 + $0x240] sm:$0xff]
  %v2452 = vld [vmem:[#allocation2 + $0x248] sm:$0xff]
  %v2453 = vld [vmem:[#allocation2 + $0x250] sm:$0xff]
  %v2454 = vld [vmem:[#allocation2 + $0x258] sm:$0xff]
  %v2455 = vld [vmem:[#allocation2 + $0x260] sm:$0xff]
  %v2456 = vld [vmem:[#allocation2 + $0x268] sm:$0xff]
  %v2457 = vld [vmem:[#allocation2 + $0x270] sm:$0xff]
  %v2458 = vld [vmem:[#allocation2 + $0x278] sm:$0xff]
  %v2459 = vld [vmem:[#allocation2 + $0x280] sm:$0xff]
  %v2460 = vld [vmem:[#allocation2 + $0x288] sm:$0xff]
  %v2461 = vld [vmem:[#allocation2 + $0x290] sm:$0xff]
  %v2462 = vld [vmem:[#allocation2 + $0x298] sm:$0xff]
  %v2463 = vld [vmem:[#allocation2 + $0x2a0] sm:$0xff]
  %v2464 = vld [vmem:[#allocation2 + $0x2a8] sm:$0xff]
  %v2465 = vld [vmem:[#allocation2 + $0x2b0] sm:$0xff]
  %v2466 = vld [vmem:[#allocation2 + $0x2b8] sm:$0xff]
  %v2467 = vld [vmem:[#allocation2 + $0x2c0] sm:$0xff]
  %v2468 = vld [vmem:[#allocation2 + $0x2c8] sm:$0xff]
  %v2469 = vld [vmem:[#allocation2 + $0x2d0] sm:$0xff]
  %v2470 = vld [vmem:[#allocation2 + $0x2d8] sm:$0xff]
  %v2471 = vld [vmem:[#allocation2 + $0x2e0] sm:$0xff]
  %v2472 = vld [vmem:[#allocation2 + $0x2e8] sm:$0xff]
  %v2473 = vld [vmem:[#allocation2 + $0x2f0] sm:$0xff]
  %v2474 = vld [vmem:[#allocation2 + $0x2f8] sm:$0xff]
  %v2475 = vld [vmem:[#allocation2 + $0x300] sm:$0xff]
  %v2476 = vld [vmem:[#allocation2 + $0x308] sm:$0xff]
  %v2477 = vld [vmem:[#allocation2 + $0x310] sm:$0xff]
  %v2478 = vld [vmem:[#allocation2 + $0x318] sm:$0xff]
  %v2479 = vld [vmem:[#allocation2 + $0x320] sm:$0xff]
  %v2480 = vld [vmem:[#allocation2 + $0x328] sm:$0xff]
  %v2481 = vld [vmem:[#allocation2 + $0x330] sm:$0xff]
  %v2482 = vld [vmem:[#allocation2 + $0x338] sm:$0xff]
  %v2483 = vld [vmem:[#allocation2 + $0x340] sm:$0xff]
  %v2484 = vld [vmem:[#allocation2 + $0x348] sm:$0xff]
  %v2485 = vld [vmem:[#allocation2 + $0x350] sm:$0xff]
  %v2486 = vld [vmem:[#allocation2 + $0x358] sm:$0xff]
  %v2487 = vld [vmem:[#allocation2 + $0x360] sm:$0xff]
  %v2488 = vld [vmem:[#allocation2 + $0x368] sm:$0xff]
  %v2489 = vld [vmem:[#allocation2 + $0x370] sm:$0xff]
  %v2490 = vld [vmem:[#allocation2 + $0x378] sm:$0xff]
  %v2491 = vld [vmem:[#allocation2 + $0x380] sm:$0xff]
  %v2492 = vld [vmem:[#allocation2 + $0x388] sm:$0xff]
  %v2493 = vld [vmem:[#allocation2 + $0x390] sm:$0xff]
  %v2494 = vld [vmem:[#allocation2 + $0x398] sm:$0xff]
  %v2495 = vld [vmem:[#allocation2 + $0x3a0] sm:$0xff]
  %v2496 = vld [vmem:[#allocation2 + $0x3a8] sm:$0xff]
  %v2497 = vld [vmem:[#allocation2 + $0x3b0] sm:$0xff]
  %v2498 = vld [vmem:[#allocation2 + $0x3b8] sm:$0xff]
  %v2499 = vld [vmem:[#allocation2 + $0x3c0] sm:$0xff]
  %v2500 = vld [vmem:[#allocation2 + $0x3c8] sm:$0xff]
  %v2501 = vld [vmem:[#allocation2 + $0x3d0] sm:$0xff]
  %v2502 = vld [vmem:[#allocation2 + $0x3d8] sm:$0xff]
  %v2503 = vld [vmem:[#allocation2 + $0x3e0] sm:$0xff]
  %v2504 = vld [vmem:[#allocation2 + $0x3e8] sm:$0xff]
  %v2505 = vld [vmem:[#allocation2 + $0x3f0] sm:$0xff]
  %v2506 = vld [vmem:[#allocation2 + $0x3f8] sm:$0xff]
  %v2507 = vld [vmem:[#allocation2 + $0x400] sm:$0xff]
  %v2508 = vld [vmem:[#allocation2 + $0x408] sm:$0xff]
  %v2509 = vld [vmem:[#allocation2 + $0x410] sm:$0xff]
  %v2510 = vld [vmem:[#allocation2 + $0x418] sm:$0xff]
  %v2511 = vld [vmem:[#allocation2 + $0x420] sm:$0xff]
  %v2512 = vld [vmem:[#allocation2 + $0x428] sm:$0xff]
  %v2513 = vld [vmem:[#allocation2 + $0x430] sm:$0xff]
  %v2514 = vld [vmem:[#allocation2 + $0x438] sm:$0xff]
  %v2515 = vld [vmem:[#allocation2 + $0x440] sm:$0xff]
  %v2516 = vld [vmem:[#allocation2 + $0x448] sm:$0xff]
  %v2517 = vld [vmem:[#allocation2 + $0x450] sm:$0xff]
  %v2518 = vld [vmem:[#allocation2 + $0x458] sm:$0xff]
  %v2519 = vld [vmem:[#allocation2 + $0x460] sm:$0xff]
  %v2520 = vld [vmem:[#allocation2 + $0x468] sm:$0xff]
  %v2521 = vld [vmem:[#allocation2 + $0x470] sm:$0xff]
  %v2522 = vld [vmem:[#allocation2 + $0x478] sm:$0xff]
  %v2523 = vld [vmem:[#allocation2 + $0x480] sm:$0xff]
  %v2524 = vld [vmem:[#allocation2 + $0x488] sm:$0xff]
  %v2525 = vld [vmem:[#allocation2 + $0x490] sm:$0xff]
  %v2526 = vld [vmem:[#allocation2 + $0x498] sm:$0xff]
  %v2527 = vld [vmem:[#allocation2 + $0x4a0] sm:$0xff]
  %v2528 = vld [vmem:[#allocation2 + $0x4a8] sm:$0xff]
  %v2529 = vld [vmem:[#allocation2 + $0x4b0] sm:$0xff]
  %v2530 = vld [vmem:[#allocation2 + $0x4b8] sm:$0xff]
  %v2531 = vld [vmem:[#allocation2 + $0x4c0] sm:$0xff]
  %v2532 = vld [vmem:[#allocation2 + $0x4c8] sm:$0xff]
  %v2533 = vld [vmem:[#allocation2 + $0x4d0] sm:$0xff]
  %v2534 = vld [vmem:[#allocation2 + $0x4d8] sm:$0xff]
  %v2535 = vld [vmem:[#allocation2 + $0x4e0] sm:$0xff]
  %v2536 = vld [vmem:[#allocation2 + $0x4e8] sm:$0xff]
  %v2537 = vld [vmem:[#allocation2 + $0x4f0] sm:$0xff]
  %v2538 = vld [vmem:[#allocation2 + $0x4f8] sm:$0xff]
  %v2539 = vld [vmem:[#allocation2 + $0x500] sm:$0xff]
  %v2540 = vld [vmem:[#allocation2 + $0x508] sm:$0xff]
  %v2541 = vld [vmem:[#allocation2 + $0x510] sm:$0xff]
  %v2542 = vld [vmem:[#allocation2 + $0x518] sm:$0xff]
  %v2543 = vld [vmem:[#allocation2 + $0x520] sm:$0xff]
  %v2544 = vld [vmem:[#allocation2 + $0x528] sm:$0xff]
  %v2545 = vld [vmem:[#allocation2 + $0x530] sm:$0xff]
  %v2546 = vld [vmem:[#allocation2 + $0x538] sm:$0xff]
  %v2547 = vld [vmem:[#allocation2 + $0x540] sm:$0xff]
  %v2548 = vld [vmem:[#allocation2 + $0x548] sm:$0xff]
  %v2549 = vld [vmem:[#allocation2 + $0x550] sm:$0xff]
  %v2550 = vld [vmem:[#allocation2 + $0x558] sm:$0xff]
  %v2551 = vld [vmem:[#allocation2 + $0x560] sm:$0xff]
  %v2552 = vld [vmem:[#allocation2 + $0x568] sm:$0xff]
  %v2553 = vld [vmem:[#allocation2 + $0x570] sm:$0xff]
  %v2554 = vld [vmem:[#allocation2 + $0x578] sm:$0xff]
  %v2555 = vld [vmem:[#allocation2 + $0x580] sm:$0xff]
  %v2556 = vld [vmem:[#allocation2 + $0x588] sm:$0xff]
  %v2557 = vld [vmem:[#allocation2 + $0x590] sm:$0xff]
  %v2558 = vld [vmem:[#allocation2 + $0x598] sm:$0xff]
  %v2559 = vld [vmem:[#allocation2 + $0x5a0] sm:$0xff]
  %v2560 = vld [vmem:[#allocation2 + $0x5a8] sm:$0xff]
  %v2561 = vld [vmem:[#allocation2 + $0x5b0] sm:$0xff]
  %v2562 = vld [vmem:[#allocation2 + $0x5b8] sm:$0xff]
  %v2563 = vld [vmem:[#allocation2 + $0x5c0] sm:$0xff]
  %v2564 = vld [vmem:[#allocation2 + $0x5c8] sm:$0xff]
  %v2565 = vld [vmem:[#allocation2 + $0x5d0] sm:$0xff]
  %v2566 = vld [vmem:[#allocation2 + $0x5d8] sm:$0xff]
  %v2567 = vld [vmem:[#allocation2 + $0x5e0] sm:$0xff]
  %v2568 = vld [vmem:[#allocation2 + $0x5e8] sm:$0xff]
  %v2569 = vld [vmem:[#allocation2 + $0x5f0] sm:$0xff]
  %v2570 = vld [vmem:[#allocation2 + $0x5f8] sm:$0xff]
  %v2571 = vld [vmem:[#allocation2 + $0x600] sm:$0xff]
  %v2572 = vld [vmem:[#allocation2 + $0x608] sm:$0xff]
  %v2573 = vld [vmem:[#allocation2 + $0x610] sm:$0xff]
  %v2574 = vld [vmem:[#allocation2 + $0x618] sm:$0xff]
  %v2575 = vld [vmem:[%s8] sm:$0xff]
  %v2577 = vperm.slane %v2575, 0
  %v2578 = vperm.slane %v2575, 1
  %v2579 = vperm.slane %v2575, 2
  %v2580 = vperm.slane %v2575, 3
  %v2581 = vperm.slane %v2575, 4
  %v2582 = vperm.slane %v2575, 5
  %v2583 = vperm.slane %v2575, 6
  %v2584 = vperm.slane %v2575, 7
  %v2789 = vunpack.c.l.b16 %v2379
  %v2790 = vunpack.c.h.b16 %v2379
  %v2791 = vunpack.c.l.b16 %v2380
  %v2792 = vunpack.c.h.b16 %v2380
  %v2793 = vunpack.c.l.b16 %v2381
  %v2794 = vunpack.c.h.b16 %v2381
  %v2795 = vunpack.c.l.b16 %v2382
  %v2796 = vunpack.c.h.b16 %v2382
  %v2797 = vunpack.c.l.b16 %v2383
  %v2798 = vunpack.c.h.b16 %v2383
  %v2799 = vunpack.c.l.b16 %v2384
  %v2800 = vunpack.c.h.b16 %v2384
  %v2801 = vunpack.c.l.b16 %v2385
  %v2802 = vunpack.c.h.b16 %v2385
  %v2803 = vunpack.c.l.b16 %v2386
  %v2804 = vunpack.c.h.b16 %v2386
  %v2805 = vunpack.c.l.b16 %v2387
  %v2806 = vunpack.c.h.b16 %v2387
  %v2807 = vunpack.c.l.b16 %v2388
  %v2808 = vunpack.c.h.b16 %v2388
  %v2809 = vunpack.c.l.b16 %v2389
  %v2810 = vunpack.c.h.b16 %v2389
  %v2811 = vunpack.c.l.b16 %v2390
  %v2812 = vunpack.c.h.b16 %v2390
  %v2813 = vunpack.c.l.b16 %v2391
  %v2814 = vunpack.c.h.b16 %v2391
  %v2815 = vunpack.c.l.b16 %v2392
  %v2816 = vunpack.c.h.b16 %v2392
  %v2817 = vunpack.c.l.b16 %v2393
  %v2818 = vunpack.c.h.b16 %v2393
  %v2819 = vunpack.c.l.b16 %v2394
  %v2820 = vunpack.c.h.b16 %v2394
  %v2821 = vunpack.c.l.b16 %v2395
  %v2822 = vunpack.c.h.b16 %v2395
  %v2823 = vunpack.c.l.b16 %v2396
  %v2824 = vunpack.c.h.b16 %v2396
  %v2825 = vunpack.c.l.b16 %v2397
  %v2826 = vunpack.c.h.b16 %v2397
  %v2827 = vunpack.c.l.b16 %v2398
  %v2828 = vunpack.c.h.b16 %v2398
  %v2829 = vunpack.c.l.b16 %v2399
  %v2830 = vunpack.c.h.b16 %v2399
  %v2831 = vunpack.c.l.b16 %v2400
  %v2832 = vunpack.c.h.b16 %v2400
  %v2833 = vunpack.c.l.b16 %v2401
  %v2834 = vunpack.c.h.b16 %v2401
  %v2835 = vunpack.c.l.b16 %v2402
  %v2836 = vunpack.c.h.b16 %v2402
  %v2837 = vunpack.c.l.b16 %v2403
  %v2838 = vunpack.c.h.b16 %v2403
  %v2839 = vunpack.c.l.b16 %v2404
  %v2840 = vunpack.c.h.b16 %v2404
  %v2841 = vunpack.c.l.b16 %v2405
  %v2842 = vunpack.c.h.b16 %v2405
  %v2843 = vunpack.c.l.b16 %v2406
  %v2844 = vunpack.c.h.b16 %v2406
  %v2845 = vunpack.c.l.b16 %v2407
  %v2846 = vunpack.c.h.b16 %v2407
  %v2847 = vunpack.c.l.b16 %v2408
  %v2848 = vunpack.c.h.b16 %v2408
  %v2849 = vunpack.c.l.b16 %v2409
  %v2850 = vunpack.c.h.b16 %v2409
  %v2851 = vunpack.c.l.b16 %v2410
  %v2852 = vunpack.c.h.b16 %v2410
  %v2853 = vunpack.c.l.b16 %v2411
  %v2854 = vunpack.c.h.b16 %v2411
  %v2855 = vunpack.c.l.b16 %v2412
  %v2856 = vunpack.c.h.b16 %v2412
  %v2857 = vunpack.c.l.b16 %v2413
  %v2858 = vunpack.c.h.b16 %v2413
  %v2859 = vunpack.c.l.b16 %v2414
  %v2860 = vunpack.c.h.b16 %v2414
  %v2861 = vunpack.c.l.b16 %v2415
  %v2862 = vunpack.c.h.b16 %v2415
  %v2863 = vunpack.c.l.b16 %v2416
  %v2864 = vunpack.c.h.b16 %v2416
  %v2865 = vunpack.c.l.b16 %v2417
  %v2866 = vunpack.c.h.b16 %v2417
  %v2867 = vunpack.c.l.b16 %v2418
  %v2868 = vunpack.c.h.b16 %v2418
  %v2869 = vunpack.c.l.b16 %v2419
  %v2870 = vunpack.c.h.b16 %v2419
  %v2871 = vunpack.c.l.b16 %v2420
  %v2872 = vunpack.c.h.b16 %v2420
  %v2873 = vunpack.c.l.b16 %v2421
  %v2874 = vunpack.c.h.b16 %v2421
  %v2875 = vunpack.c.l.b16 %v2422
  %v2876 = vunpack.c.h.b16 %v2422
  %v2877 = vunpack.c.l.b16 %v2423
  %v2878 = vunpack.c.h.b16 %v2423
  %v2879 = vunpack.c.l.b16 %v2424
  %v2880 = vunpack.c.h.b16 %v2424
  %v2881 = vunpack.c.l.b16 %v2425
  %v2882 = vunpack.c.h.b16 %v2425
  %v2883 = vunpack.c.l.b16 %v2426
  %v2884 = vunpack.c.h.b16 %v2426
  %v2885 = vunpack.c.l.b16 %v2427
  %v2886 = vunpack.c.h.b16 %v2427
  %v2887 = vunpack.c.l.b16 %v2428
  %v2888 = vunpack.c.h.b16 %v2428
  %v2889 = vunpack.c.l.b16 %v2429
  %v2890 = vunpack.c.h.b16 %v2429
  %v2891 = vunpack.c.l.b16 %v2430
  %v2892 = vunpack.c.h.b16 %v2430
  %v2893 = vunpack.c.l.b16 %v2431
  %v2894 = vunpack.c.h.b16 %v2431
  %v2895 = vunpack.c.l.b16 %v2432
  %v2896 = vunpack.c.h.b16 %v2432
  %v2897 = vunpack.c.l.b16 %v2433
  %v2898 = vunpack.c.h.b16 %v2433
  %v2899 = vunpack.c.l.b16 %v2434
  %v2900 = vunpack.c.h.b16 %v2434
  %v2901 = vunpack.c.l.b16 %v2435
  %v2902 = vunpack.c.h.b16 %v2435
  %v2903 = vunpack.c.l.b16 %v2436
  %v2904 = vunpack.c.h.b16 %v2436
  %v2905 = vunpack.c.l.b16 %v2437
  %v2906 = vunpack.c.h.b16 %v2437
  %v2907 = vunpack.c.l.b16 %v2438
  %v2908 = vunpack.c.h.b16 %v2438
  %v2909 = vunpack.c.l.b16 %v2439
  %v2910 = vunpack.c.h.b16 %v2439
  %v2911 = vunpack.c.l.b16 %v2440
  %v2912 = vunpack.c.h.b16 %v2440
  %v2913 = vunpack.c.l.b16 %v2441
  %v2914 = vunpack.c.h.b16 %v2441
  %v2915 = vunpack.c.l.b16 %v2442
  %v2916 = vunpack.c.h.b16 %v2442
  %v2917 = vunpack.c.l.b16 %v2443
  %v2918 = vunpack.c.h.b16 %v2443
  %v2919 = vunpack.c.l.b16 %v2444
  %v2920 = vunpack.c.h.b16 %v2444
  %v2921 = vunpack.c.l.b16 %v2445
  %v2922 = vunpack.c.h.b16 %v2445
  %v2923 = vunpack.c.l.b16 %v2446
  %v2924 = vunpack.c.h.b16 %v2446
  %v2925 = vunpack.c.l.b16 %v2447
  %v2926 = vunpack.c.h.b16 %v2447
  %v2927 = vunpack.c.l.b16 %v2448
  %v2928 = vunpack.c.h.b16 %v2448
  %v2929 = vunpack.c.l.b16 %v2449
  %v2930 = vunpack.c.h.b16 %v2449
  %v2931 = vunpack.c.l.b16 %v2450
  %v2932 = vunpack.c.h.b16 %v2450
  %v2933 = vunpack.c.l.b16 %v2451
  %v2934 = vunpack.c.h.b16 %v2451
  %v2935 = vunpack.c.l.b16 %v2452
  %v2936 = vunpack.c.h.b16 %v2452
  %v2937 = vunpack.c.l.b16 %v2453
  %v2938 = vunpack.c.h.b16 %v2453
  %v2939 = vunpack.c.l.b16 %v2454
  %v2940 = vunpack.c.h.b16 %v2454
  %v2941 = vunpack.c.l.b16 %v2455
  %v2942 = vunpack.c.h.b16 %v2455
  %v2943 = vunpack.c.l.b16 %v2456
  %v2944 = vunpack.c.h.b16 %v2456
  %v2945 = vunpack.c.l.b16 %v2457
  %v2946 = vunpack.c.h.b16 %v2457
  %v2947 = vunpack.c.l.b16 %v2458
  %v2948 = vunpack.c.h.b16 %v2458
  %v2949 = vunpack.c.l.b16 %v2459
  %v2950 = vunpack.c.h.b16 %v2459
  %v2951 = vunpack.c.l.b16 %v2460
  %v2952 = vunpack.c.h.b16 %v2460
  %v2953 = vunpack.c.l.b16 %v2461
  %v2954 = vunpack.c.h.b16 %v2461
  %v2955 = vunpack.c.l.b16 %v2462
  %v2956 = vunpack.c.h.b16 %v2462
  %v2957 = vunpack.c.l.b16 %v2463
  %v2958 = vunpack.c.h.b16 %v2463
  %v2959 = vunpack.c.l.b16 %v2464
  %v2960 = vunpack.c.h.b16 %v2464
  %v2961 = vunpack.c.l.b16 %v2465
  %v2962 = vunpack.c.h.b16 %v2465
  %v2963 = vunpack.c.l.b16 %v2466
  %v2964 = vunpack.c.h.b16 %v2466
  %v2965 = vunpack.c.l.b16 %v2467
  %v2966 = vunpack.c.h.b16 %v2467
  %v2967 = vunpack.c.l.b16 %v2468
  %v2968 = vunpack.c.h.b16 %v2468
  %v2969 = vunpack.c.l.b16 %v2469
  %v2970 = vunpack.c.h.b16 %v2469
  %v2971 = vunpack.c.l.b16 %v2470
  %v2972 = vunpack.c.h.b16 %v2470
  %v2973 = vunpack.c.l.b16 %v2471
  %v2974 = vunpack.c.h.b16 %v2471
  %v2975 = vunpack.c.l.b16 %v2472
  %v2976 = vunpack.c.h.b16 %v2472
  %v2977 = vunpack.c.l.b16 %v2473
  %v2978 = vunpack.c.h.b16 %v2473
  %v2979 = vunpack.c.l.b16 %v2474
  %v2980 = vunpack.c.h.b16 %v2474
  %v2981 = vunpack.c.l.b16 %v2475
  %v2982 = vunpack.c.h.b16 %v2475
  %v2983 = vunpack.c.l.b16 %v2476
  %v2984 = vunpack.c.h.b16 %v2476
  %v2985 = vunpack.c.l.b16 %v2477
  %v2986 = vunpack.c.h.b16 %v2477
  %v2987 = vunpack.c.l.b16 %v2478
  %v2988 = vunpack.c.h.b16 %v2478
  %v2989 = vunpack.c.l.b16 %v2479
  %v2990 = vunpack.c.h.b16 %v2479
  %v2991 = vunpack.c.l.b16 %v2480
  %v2992 = vunpack.c.h.b16 %v2480
  %v2993 = vunpack.c.l.b16 %v2481
  %v2994 = vunpack.c.h.b16 %v2481
  %v2995 = vunpack.c.l.b16 %v2482
  %v2996 = vunpack.c.h.b16 %v2482
  %v2997 = vunpack.c.l.b16 %v2483
  %v2998 = vunpack.c.h.b16 %v2483
  %v2999 = vunpack.c.l.b16 %v2484
  %v3000 = vunpack.c.h.b16 %v2484
  %v3001 = vunpack.c.l.b16 %v2485
  %v3002 = vunpack.c.h.b16 %v2485
  %v3003 = vunpack.c.l.b16 %v2486
  %v3004 = vunpack.c.h.b16 %v2486
  %v3005 = vunpack.c.l.b16 %v2487
  %v3006 = vunpack.c.h.b16 %v2487
  %v3007 = vunpack.c.l.b16 %v2488
  %v3008 = vunpack.c.h.b16 %v2488
  %v3009 = vunpack.c.l.b16 %v2489
  %v3010 = vunpack.c.h.b16 %v2489
  %v3011 = vunpack.c.l.b16 %v2490
  %v3012 = vunpack.c.h.b16 %v2490
  %v3013 = vunpack.c.l.b16 %v2491
  %v3014 = vunpack.c.h.b16 %v2491
  %v3015 = vunpack.c.l.b16 %v2492
  %v3016 = vunpack.c.h.b16 %v2492
  %v3017 = vunpack.c.l.b16 %v2493
  %v3018 = vunpack.c.h.b16 %v2493
  %v3019 = vunpack.c.l.b16 %v2494
  %v3020 = vunpack.c.h.b16 %v2494
  %v3021 = vunpack.c.l.b16 %v2495
  %v3022 = vunpack.c.h.b16 %v2495
  %v3023 = vunpack.c.l.b16 %v2496
  %v3024 = vunpack.c.h.b16 %v2496
  %v3025 = vunpack.c.l.b16 %v2497
  %v3026 = vunpack.c.h.b16 %v2497
  %v3027 = vunpack.c.l.b16 %v2498
  %v3028 = vunpack.c.h.b16 %v2498
  %v3029 = vunpack.c.l.b16 %v2499
  %v3030 = vunpack.c.h.b16 %v2499
  %v3031 = vunpack.c.l.b16 %v2500
  %v3032 = vunpack.c.h.b16 %v2500
  %v3033 = vunpack.c.l.b16 %v2501
  %v3034 = vunpack.c.h.b16 %v2501
  %v3035 = vunpack.c.l.b16 %v2502
  %v3036 = vunpack.c.h.b16 %v2502
  %v3037 = vunpack.c.l.b16 %v2503
  %v3038 = vunpack.c.h.b16 %v2503
  %v3039 = vunpack.c.l.b16 %v2504
  %v3040 = vunpack.c.h.b16 %v2504
  %v3041 = vunpack.c.l.b16 %v2505
  %v3042 = vunpack.c.h.b16 %v2505
  %v3043 = vunpack.c.l.b16 %v2506
  %v3044 = vunpack.c.h.b16 %v2506
  %v3045 = vunpack.c.l.b16 %v2507
  %v3046 = vunpack.c.h.b16 %v2507
  %v3047 = vunpack.c.l.b16 %v2508
  %v3048 = vunpack.c.h.b16 %v2508
  %v3049 = vunpack.c.l.b16 %v2509
  %v3050 = vunpack.c.h.b16 %v2509
  %v3051 = vunpack.c.l.b16 %v2510
  %v3052 = vunpack.c.h.b16 %v2510
  %v3053 = vunpack.c.l.b16 %v2511
  %v3054 = vunpack.c.h.b16 %v2511
  %v3055 = vunpack.c.l.b16 %v2512
  %v3056 = vunpack.c.h.b16 %v2512
  %v3057 = vunpack.c.l.b16 %v2513
  %v3058 = vunpack.c.h.b16 %v2513
  %v3059 = vunpack.c.l.b16 %v2514
  %v3060 = vunpack.c.h.b16 %v2514
  %v3061 = vunpack.c.l.b16 %v2515
  %v3062 = vunpack.c.h.b16 %v2515
  %v3063 = vunpack.c.l.b16 %v2516
  %v3064 = vunpack.c.h.b16 %v2516
  %v3065 = vunpack.c.l.b16 %v2517
  %v3066 = vunpack.c.h.b16 %v2517
  %v3067 = vunpack.c.l.b16 %v2518
  %v3068 = vunpack.c.h.b16 %v2518
  %v3069 = vunpack.c.l.b16 %v2519
  %v3070 = vunpack.c.h.b16 %v2519
  %v3071 = vunpack.c.l.b16 %v2520
  %v3072 = vunpack.c.h.b16 %v2520
  %v3073 = vunpack.c.l.b16 %v2521
  %v3074 = vunpack.c.h.b16 %v2521
  %v3075 = vunpack.c.l.b16 %v2522
  %v3076 = vunpack.c.h.b16 %v2522
  %v3077 = vunpack.c.l.b16 %v2523
  %v3078 = vunpack.c.h.b16 %v2523
  %v3079 = vunpack.c.l.b16 %v2524
  %v3080 = vunpack.c.h.b16 %v2524
  %v3081 = vunpack.c.l.b16 %v2525
  %v3082 = vunpack.c.h.b16 %v2525
  %v3083 = vunpack.c.l.b16 %v2526
  %v3084 = vunpack.c.h.b16 %v2526
  %v3085 = vunpack.c.l.b16 %v2527
  %v3086 = vunpack.c.h.b16 %v2527
  %v3087 = vunpack.c.l.b16 %v2528
  %v3088 = vunpack.c.h.b16 %v2528
  %v3089 = vunpack.c.l.b16 %v2529
  %v3090 = vunpack.c.h.b16 %v2529
  %v3091 = vunpack.c.l.b16 %v2530
  %v3092 = vunpack.c.h.b16 %v2530
  %v3093 = vunpack.c.l.b16 %v2531
  %v3094 = vunpack.c.h.b16 %v2531
  %v3095 = vunpack.c.l.b16 %v2532
  %v3096 = vunpack.c.h.b16 %v2532
  %v3097 = vunpack.c.l.b16 %v2533
  %v3098 = vunpack.c.h.b16 %v2533
  %v3099 = vunpack.c.l.b16 %v2534
  %v3100 = vunpack.c.h.b16 %v2534
  %v3101 = vunpack.c.l.b16 %v2535
  %v3102 = vunpack.c.h.b16 %v2535
  %v3103 = vunpack.c.l.b16 %v2536
  %v3104 = vunpack.c.h.b16 %v2536
  %v3105 = vunpack.c.l.b16 %v2537
  %v3106 = vunpack.c.h.b16 %v2537
  %v3107 = vunpack.c.l.b16 %v2538
  %v3108 = vunpack.c.h.b16 %v2538
  %v3109 = vunpack.c.l.b16 %v2539
  %v3110 = vunpack.c.h.b16 %v2539
  %v3111 = vunpack.c.l.b16 %v2540
  %v3112 = vunpack.c.h.b16 %v2540
  %v3113 = vunpack.c.l.b16 %v2541
  %v3114 = vunpack.c.h.b16 %v2541
  %v3115 = vunpack.c.l.b16 %v2542
  %v3116 = vunpack.c.h.b16 %v2542
  %v3117 = vunpack.c.l.b16 %v2543
  %v3118 = vunpack.c.h.b16 %v2543
  %v3119 = vunpack.c.l.b16 %v2544
  %v3120 = vunpack.c.h.b16 %v2544
  %v3121 = vunpack.c.l.b16 %v2545
  %v3122 = vunpack.c.h.b16 %v2545
  %v3123 = vunpack.c.l.b16 %v2546
  %v3124 = vunpack.c.h.b16 %v2546
  %v3125 = vunpack.c.l.b16 %v2547
  %v3126 = vunpack.c.h.b16 %v2547
  %v3127 = vunpack.c.l.b16 %v2548
  %v3128 = vunpack.c.h.b16 %v2548
  %v3129 = vunpack.c.l.b16 %v2549
  %v3130 = vunpack.c.h.b16 %v2549
  %v3131 = vunpack.c.l.b16 %v2550
  %v3132 = vunpack.c.h.b16 %v2550
  %v3133 = vunpack.c.l.b16 %v2551
  %v3134 = vunpack.c.h.b16 %v2551
  %v3135 = vunpack.c.l.b16 %v2552
  %v3136 = vunpack.c.h.b16 %v2552
  %v3137 = vunpack.c.l.b16 %v2553
  %v3138 = vunpack.c.h.b16 %v2553
  %v3139 = vunpack.c.l.b16 %v2554
  %v3140 = vunpack.c.h.b16 %v2554
  %v3141 = vunpack.c.l.b16 %v2555
  %v3142 = vunpack.c.h.b16 %v2555
  %v3143 = vunpack.c.l.b16 %v2556
  %v3144 = vunpack.c.h.b16 %v2556
  %v3145 = vunpack.c.l.b16 %v2557
  %v3146 = vunpack.c.h.b16 %v2557
  %v3147 = vunpack.c.l.b16 %v2558
  %v3148 = vunpack.c.h.b16 %v2558
  %v3149 = vunpack.c.l.b16 %v2559
  %v3150 = vunpack.c.h.b16 %v2559
  %v3151 = vunpack.c.l.b16 %v2560
  %v3152 = vunpack.c.h.b16 %v2560
  %v3153 = vunpack.c.l.b16 %v2561
  %v3154 = vunpack.c.h.b16 %v2561
  %v3155 = vunpack.c.l.b16 %v2562
  %v3156 = vunpack.c.h.b16 %v2562
  %v3157 = vunpack.c.l.b16 %v2563
  %v3158 = vunpack.c.h.b16 %v2563
  %v3159 = vunpack.c.l.b16 %v2564
  %v3160 = vunpack.c.h.b16 %v2564
  %v3161 = vunpack.c.l.b16 %v2565
  %v3162 = vunpack.c.h.b16 %v2565
  %v3163 = vunpack.c.l.b16 %v2566
  %v3164 = vunpack.c.h.b16 %v2566
  %v3165 = vunpack.c.l.b16 %v2567
  %v3166 = vunpack.c.h.b16 %v2567
  %v3167 = vunpack.c.l.b16 %v2568
  %v3168 = vunpack.c.h.b16 %v2568
  %v3169 = vunpack.c.l.b16 %v2569
  %v3170 = vunpack.c.h.b16 %v2569
  %v3171 = vunpack.c.l.b16 %v2570
  %v3172 = vunpack.c.h.b16 %v2570
  %v3173 = vunpack.c.l.b16 %v2571
  %v3174 = vunpack.c.h.b16 %v2571
  %v3175 = vunpack.c.l.b16 %v2572
  %v3176 = vunpack.c.h.b16 %v2572
  %v3177 = vunpack.c.l.b16 %v2573
  %v3178 = vunpack.c.h.b16 %v2573
  %v3179 = vunpack.c.l.b16 %v2574
  %v3180 = vunpack.c.h.b16 %v2574
  %v3181 = vpack.c.b16 %v2797, %v2789
  %v3182 = vpack.c.b16 %v2798, %v2790
  %v3183 = vpack.c.b16 %v2799, %v2791
  %v3184 = vpack.c.b16 %v2800, %v2792
  %v3185 = vpack.c.b16 %v2801, %v2793
  %v3186 = vpack.c.b16 %v2802, %v2794
  %v3187 = vpack.c.b16 %v2803, %v2795
  %v3188 = vpack.c.b16 %v2804, %v2796
  %v3189 = vpack.c.b16 %v2813, %v2805
  %v3190 = vpack.c.b16 %v2814, %v2806
  %v3191 = vpack.c.b16 %v2815, %v2807
  %v3192 = vpack.c.b16 %v2816, %v2808
  %v3193 = vpack.c.b16 %v2817, %v2809
  %v3194 = vpack.c.b16 %v2818, %v2810
  %v3195 = vpack.c.b16 %v2819, %v2811
  %v3196 = vpack.c.b16 %v2820, %v2812
  %v3197 = vpack.c.b16 %v2829, %v2821
  %v3198 = vpack.c.b16 %v2830, %v2822
  %v3199 = vpack.c.b16 %v2831, %v2823
  %v3200 = vpack.c.b16 %v2832, %v2824
  %v3201 = vpack.c.b16 %v2833, %v2825
  %v3202 = vpack.c.b16 %v2834, %v2826
  %v3203 = vpack.c.b16 %v2835, %v2827
  %v3204 = vpack.c.b16 %v2836, %v2828
  %v3205 = vpack.c.b16 %v2845, %v2837
  %v3206 = vpack.c.b16 %v2846, %v2838
  %v3207 = vpack.c.b16 %v2847, %v2839
  %v3208 = vpack.c.b16 %v2848, %v2840
  %v3209 = vpack.c.b16 %v2849, %v2841
  %v3210 = vpack.c.b16 %v2850, %v2842
  %v3211 = vpack.c.b16 %v2851, %v2843
  %v3212 = vpack.c.b16 %v2852, %v2844
  %v3213 = vpack.c.b16 %v2861, %v2853
  %v3214 = vpack.c.b16 %v2862, %v2854
  %v3215 = vpack.c.b16 %v2863, %v2855
  %v3216 = vpack.c.b16 %v2864, %v2856
  %v3217 = vpack.c.b16 %v2865, %v2857
  %v3218 = vpack.c.b16 %v2866, %v2858
  %v3219 = vpack.c.b16 %v2867, %v2859
  %v3220 = vpack.c.b16 %v2868, %v2860
  %v3221 = vpack.c.b16 %v2877, %v2869
  %v3222 = vpack.c.b16 %v2878, %v2870
  %v3223 = vpack.c.b16 %v2879, %v2871
  %v3224 = vpack.c.b16 %v2880, %v2872
  %v3225 = vpack.c.b16 %v2881, %v2873
  %v3226 = vpack.c.b16 %v2882, %v2874
  %v3227 = vpack.c.b16 %v2883, %v2875
  %v3228 = vpack.c.b16 %v2884, %v2876
  %v3229 = vpack.c.b16 %v2893, %v2885
  %v3230 = vpack.c.b16 %v2894, %v2886
  %v3231 = vpack.c.b16 %v2895, %v2887
  %v3232 = vpack.c.b16 %v2896, %v2888
  %v3233 = vpack.c.b16 %v2897, %v2889
  %v3234 = vpack.c.b16 %v2898, %v2890
  %v3235 = vpack.c.b16 %v2899, %v2891
  %v3236 = vpack.c.b16 %v2900, %v2892
  %v3237 = vpack.c.b16 %v2909, %v2901
  %v3238 = vpack.c.b16 %v2910, %v2902
  %v3239 = vpack.c.b16 %v2911, %v2903
  %v3240 = vpack.c.b16 %v2912, %v2904
  %v3241 = vpack.c.b16 %v2913, %v2905
  %v3242 = vpack.c.b16 %v2914, %v2906
  %v3243 = vpack.c.b16 %v2915, %v2907
  %v3244 = vpack.c.b16 %v2916, %v2908
  %v3245 = vpack.c.b16 %v2925, %v2917
  %v3246 = vpack.c.b16 %v2926, %v2918
  %v3247 = vpack.c.b16 %v2927, %v2919
  %v3248 = vpack.c.b16 %v2928, %v2920
  %v3249 = vpack.c.b16 %v2929, %v2921
  %v3250 = vpack.c.b16 %v2930, %v2922
  %v3251 = vpack.c.b16 %v2931, %v2923
  %v3252 = vpack.c.b16 %v2932, %v2924
  %v3253 = vpack.c.b16 %v2941, %v2933
  %v3254 = vpack.c.b16 %v2942, %v2934
  %v3255 = vpack.c.b16 %v2943, %v2935
  %v3256 = vpack.c.b16 %v2944, %v2936
  %v3257 = vpack.c.b16 %v2945, %v2937
  %v3258 = vpack.c.b16 %v2946, %v2938
  %v3259 = vpack.c.b16 %v2947, %v2939
  %v3260 = vpack.c.b16 %v2948, %v2940
  %v3261 = vpack.c.b16 %v2957, %v2949
  %v3262 = vpack.c.b16 %v2958, %v2950
  %v3263 = vpack.c.b16 %v2959, %v2951
  %v3264 = vpack.c.b16 %v2960, %v2952
  %v3265 = vpack.c.b16 %v2961, %v2953
  %v3266 = vpack.c.b16 %v2962, %v2954
  %v3267 = vpack.c.b16 %v2963, %v2955
  %v3268 = vpack.c.b16 %v2964, %v2956
  %v3269 = vpack.c.b16 %v2973, %v2965
  %v3270 = vpack.c.b16 %v2974, %v2966
  %v3271 = vpack.c.b16 %v2975, %v2967
  %v3272 = vpack.c.b16 %v2976, %v2968
  %v3273 = vpack.c.b16 %v2977, %v2969
  %v3274 = vpack.c.b16 %v2978, %v2970
  %v3275 = vpack.c.b16 %v2979, %v2971
  %v3276 = vpack.c.b16 %v2980, %v2972
  %v3277 = vpack.c.b16 %v2989, %v2981
  %v3278 = vpack.c.b16 %v2990, %v2982
  %v3279 = vpack.c.b16 %v2991, %v2983
  %v3280 = vpack.c.b16 %v2992, %v2984
  %v3281 = vpack.c.b16 %v2993, %v2985
  %v3282 = vpack.c.b16 %v2994, %v2986
  %v3283 = vpack.c.b16 %v2995, %v2987
  %v3284 = vpack.c.b16 %v2996, %v2988
  %v3285 = vpack.c.b16 %v3005, %v2997
  %v3286 = vpack.c.b16 %v3006, %v2998
  %v3287 = vpack.c.b16 %v3007, %v2999
  %v3288 = vpack.c.b16 %v3008, %v3000
  %v3289 = vpack.c.b16 %v3009, %v3001
  %v3290 = vpack.c.b16 %v3010, %v3002
  %v3291 = vpack.c.b16 %v3011, %v3003
  %v3292 = vpack.c.b16 %v3012, %v3004
  %v3293 = vpack.c.b16 %v3021, %v3013
  %v3294 = vpack.c.b16 %v3022, %v3014
  %v3295 = vpack.c.b16 %v3023, %v3015
  %v3296 = vpack.c.b16 %v3024, %v3016
  %v3297 = vpack.c.b16 %v3025, %v3017
  %v3298 = vpack.c.b16 %v3026, %v3018
  %v3299 = vpack.c.b16 %v3027, %v3019
  %v3300 = vpack.c.b16 %v3028, %v3020
  %v3301 = vpack.c.b16 %v3037, %v3029
  %v3302 = vpack.c.b16 %v3038, %v3030
  %v3303 = vpack.c.b16 %v3039, %v3031
  %v3304 = vpack.c.b16 %v3040, %v3032
  %v3305 = vpack.c.b16 %v3041, %v3033
  %v3306 = vpack.c.b16 %v3042, %v3034
  %v3307 = vpack.c.b16 %v3043, %v3035
  %v3308 = vpack.c.b16 %v3044, %v3036
  %v3309 = vpack.c.b16 %v3053, %v3045
  %v3310 = vpack.c.b16 %v3054, %v3046
  %v3311 = vpack.c.b16 %v3055, %v3047
  %v3312 = vpack.c.b16 %v3056, %v3048
  %v3313 = vpack.c.b16 %v3057, %v3049
  %v3314 = vpack.c.b16 %v3058, %v3050
  %v3315 = vpack.c.b16 %v3059, %v3051
  %v3316 = vpack.c.b16 %v3060, %v3052
  %v3317 = vpack.c.b16 %v3069, %v3061
  %v3318 = vpack.c.b16 %v3070, %v3062
  %v3319 = vpack.c.b16 %v3071, %v3063
  %v3320 = vpack.c.b16 %v3072, %v3064
  %v3321 = vpack.c.b16 %v3073, %v3065
  %v3322 = vpack.c.b16 %v3074, %v3066
  %v3323 = vpack.c.b16 %v3075, %v3067
  %v3324 = vpack.c.b16 %v3076, %v3068
  %v3325 = vpack.c.b16 %v3085, %v3077
  %v3326 = vpack.c.b16 %v3086, %v3078
  %v3327 = vpack.c.b16 %v3087, %v3079
  %v3328 = vpack.c.b16 %v3088, %v3080
  %v3329 = vpack.c.b16 %v3089, %v3081
  %v3330 = vpack.c.b16 %v3090, %v3082
  %v3331 = vpack.c.b16 %v3091, %v3083
  %v3332 = vpack.c.b16 %v3092, %v3084
  %v3333 = vpack.c.b16 %v3101, %v3093
  %v3334 = vpack.c.b16 %v3102, %v3094
  %v3335 = vpack.c.b16 %v3103, %v3095
  %v3336 = vpack.c.b16 %v3104, %v3096
  %v3337 = vpack.c.b16 %v3105, %v3097
  %v3338 = vpack.c.b16 %v3106, %v3098
  %v3339 = vpack.c.b16 %v3107, %v3099
  %v3340 = vpack.c.b16 %v3108, %v3100
  %v3341 = vpack.c.b16 %v3117, %v3109
  %v3342 = vpack.c.b16 %v3118, %v3110
  %v3343 = vpack.c.b16 %v3119, %v3111
  %v3344 = vpack.c.b16 %v3120, %v3112
  %v3345 = vpack.c.b16 %v3121, %v3113
  %v3346 = vpack.c.b16 %v3122, %v3114
  %v3347 = vpack.c.b16 %v3123, %v3115
  %v3348 = vpack.c.b16 %v3124, %v3116
  %v3349 = vpack.c.b16 %v3133, %v3125
  %v3350 = vpack.c.b16 %v3134, %v3126
  %v3351 = vpack.c.b16 %v3135, %v3127
  %v3352 = vpack.c.b16 %v3136, %v3128
  %v3353 = vpack.c.b16 %v3137, %v3129
  %v3354 = vpack.c.b16 %v3138, %v3130
  %v3355 = vpack.c.b16 %v3139, %v3131
  %v3356 = vpack.c.b16 %v3140, %v3132
  %v3357 = vpack.c.b16 %v3149, %v3141
  %v3358 = vpack.c.b16 %v3150, %v3142
  %v3359 = vpack.c.b16 %v3151, %v3143
  %v3360 = vpack.c.b16 %v3152, %v3144
  %v3361 = vpack.c.b16 %v3153, %v3145
  %v3362 = vpack.c.b16 %v3154, %v3146
  %v3363 = vpack.c.b16 %v3155, %v3147
  %v3364 = vpack.c.b16 %v3156, %v3148
  %v3365 = vpack.c.b16 %v3165, %v3157
  %v3366 = vpack.c.b16 %v3166, %v3158
  %v3367 = vpack.c.b16 %v3167, %v3159
  %v3368 = vpack.c.b16 %v3168, %v3160
  %v3369 = vpack.c.b16 %v3169, %v3161
  %v3370 = vpack.c.b16 %v3170, %v3162
  %v3371 = vpack.c.b16 %v3171, %v3163
  %v3372 = vpack.c.b16 %v3172, %v3164
  %v3373 = vpack.c.b16 %v3173, %v3173
  %v3374 = vpack.c.b16 %v3174, %v3174
  %v3375 = vpack.c.b16 %v3175, %v3175
  %v3376 = vpack.c.b16 %v3176, %v3176
  %v3377 = vpack.c.b16 %v3177, %v3177
  %v3378 = vpack.c.b16 %v3178, %v3178
  %v3379 = vpack.c.b16 %v3179, %v3179
  %v3380 = vpack.c.b16 %v3180, %v3180
  %v3574 = vsel %vm2156, %v2378, 0
  %v3577 = vsel %vm2160, %v3373, 0
  %v3580 = vsel %vm2160, %v3374, 0
  %v3583 = vsel %vm2160, %v3375, 0
  %v3586 = vsel %vm2160, %v3376, 0
  %v3589 = vsel %vm2160, %v3377, 0
  %v3592 = vsel %vm2160, %v3378, 0
  %v3595 = vsel %vm2160, %v3379, 0
  %v3598 = vsel %vm2160, %v3380, 0
  %3600 = vmatpush.bf16.msra.mxu0 %v3237
  %3601 = vmatpush.bf16.msra.mxu0 %v3229
  %3602 = vmatpush.bf16.msra.mxu0 %v3221
  %3603 = vmatpush.bf16.msra.mxu0 %v3213
  %3604 = vmatpush.bf16.msra.mxu0 %v3205
  %3605 = vmatpush.bf16.msra.mxu0 %v3197
  %3606 = vmatpush.bf16.msra.mxu0 %v3189
  %3607 = vmatpush.bf16.msra.mxu0 %v3181
  %3608 = vmatmul.bf16.gmra.mxu0 %v2375
  %v3609 = vpop.f32.mrf.mxu0
  %v3610 = vadd.f32 %v2577, %v3609
  %v3611 = vpop.f32.mrf.mxu0
  %3612 = vdwg.mxu0
  %3613 = vmatpush.bf16.msra.mxu0 %v3301
  %3614 = vmatpush.bf16.msra.mxu0 %v3293
  %3615 = vmatpush.bf16.msra.mxu0 %v3285
  %3616 = vmatpush.bf16.msra.mxu0 %v3277
  %3617 = vmatpush.bf16.msra.mxu0 %v3269
  %3618 = vmatpush.bf16.msra.mxu0 %v3261
  %3619 = vmatpush.bf16.msra.mxu0 %v3253
  %3620 = vmatpush.bf16.msra.mxu0 %v3245
  %3621 = vmatmul.bf16.gmra.mxu0 %v2376
  %v3622 = vpop.f32.mrf.mxu0
  %v3623 = vadd.f32 %v3610, %v3622
  %v3624 = vpop.f32.mrf.mxu0
  %3625 = vdwg.mxu0
  %3626 = vmatpush.bf16.msra.mxu0 %v3365
  %3627 = vmatpush.bf16.msra.mxu0 %v3357
  %3628 = vmatpush.bf16.msra.mxu0 %v3349
  %3629 = vmatpush.bf16.msra.mxu0 %v3341
  %3630 = vmatpush.bf16.msra.mxu0 %v3333
  %3631 = vmatpush.bf16.msra.mxu0 %v3325
  %3632 = vmatpush.bf16.msra.mxu0 %v3317
  %3633 = vmatpush.bf16.msra.mxu0 %v3309
  %3634 = vmatmul.bf16.gmra.mxu0 %v2377
  %v3635 = vpop.f32.mrf.mxu0
  %v3636 = vadd.f32 %v3623, %v3635
  %v3637 = vpop.f32.mrf.mxu0
  %3638 = vdwg.mxu0
  %3639 = vmatpush.bf16.msra.mxu0 0
  %3640 = vmatpush.bf16.msra.mxu0 0
  %3641 = vmatpush.bf16.msra.mxu0 0
  %3642 = vmatpush.bf16.msra.mxu0 0
  %3643 = vmatpush.bf16.msra.mxu0 0
  %3644 = vmatpush.bf16.msra.mxu0 0
  %3645 = vmatpush.bf16.msra.mxu0 0
  %3646 = vmatpush.bf16.msra.mxu0 %v3577
  %3647 = vmatmul.bf16.gmra.mxu0 %v3574
  %v3648 = vpop.f32.mrf.mxu0
  %v3649 = vadd.f32 %v3636, %v3648
  %v3650 = vpop.f32.mrf.mxu0
  %3651 = vdwg.mxu0
  %3652 = vmatpush.bf16.msra.mxu0 %v3238
  %3653 = vmatpush.bf16.msra.mxu0 %v3230
  %3654 = vmatpush.bf16.msra.mxu0 %v3222
  %3655 = vmatpush.bf16.msra.mxu0 %v3214
  %3656 = vmatpush.bf16.msra.mxu0 %v3206
  %3657 = vmatpush.bf16.msra.mxu0 %v3198
  %3658 = vmatpush.bf16.msra.mxu0 %v3190
  %3659 = vmatpush.bf16.msra.mxu0 %v3182
  %3660 = vmatmul.bf16.gmra.mxu0 %v2375
  %v3661 = vpop.f32.mrf.mxu0
  %v3662 = vadd.f32 %v2578, %v3661
  %v3663 = vpop.f32.mrf.mxu0
  %3664 = vdwg.mxu0
  %3665 = vmatpush.bf16.msra.mxu0 %v3302
  %3666 = vmatpush.bf16.msra.mxu0 %v3294
  %3667 = vmatpush.bf16.msra.mxu0 %v3286
  %3668 = vmatpush.bf16.msra.mxu0 %v3278
  %3669 = vmatpush.bf16.msra.mxu0 %v3270
  %3670 = vmatpush.bf16.msra.mxu0 %v3262
  %3671 = vmatpush.bf16.msra.mxu0 %v3254
  %3672 = vmatpush.bf16.msra.mxu0 %v3246
  %3673 = vmatmul.bf16.gmra.mxu0 %v2376
  %v3674 = vpop.f32.mrf.mxu0
  %v3675 = vadd.f32 %v3662, %v3674
  %v3676 = vpop.f32.mrf.mxu0
  %3677 = vdwg.mxu0
  %3678 = vmatpush.bf16.msra.mxu0 %v3366
  %3679 = vmatpush.bf16.msra.mxu0 %v3358
  %3680 = vmatpush.bf16.msra.mxu0 %v3350
  %3681 = vmatpush.bf16.msra.mxu0 %v3342
  %3682 = vmatpush.bf16.msra.mxu0 %v3334
  %3683 = vmatpush.bf16.msra.mxu0 %v3326
  %3684 = vmatpush.bf16.msra.mxu0 %v3318
  %3685 = vmatpush.bf16.msra.mxu0 %v3310
  %3686 = vmatmul.bf16.gmra.mxu0 %v2377
  %v3687 = vpop.f32.mrf.mxu0
  %v3688 = vadd.f32 %v3675, %v3687
  %v3689 = vpop.f32.mrf.mxu0
  %3690 = vdwg.mxu0
  %3691 = vmatpush.bf16.msra.mxu0 0
  %3692 = vmatpush.bf16.msra.mxu0 0
  %3693 = vmatpush.bf16.msra.mxu0 0
  %3694 = vmatpush.bf16.msra.mxu0 0
  %3695 = vmatpush.bf16.msra.mxu0 0
  %3696 = vmatpush.bf16.msra.mxu0 0
  %3697 = vmatpush.bf16.msra.mxu0 0
  %3698 = vmatpush.bf16.msra.mxu0 %v3580
  %3699 = vmatmul.bf16.gmra.mxu0 %v3574
  %v3700 = vpop.f32.mrf.mxu0
  %v3701 = vadd.f32 %v3688, %v3700
  %v3702 = vpop.f32.mrf.mxu0
  %3703 = vdwg.mxu0
  %3704 = vmatpush.bf16.msra.mxu0 %v3239
  %3705 = vmatpush.bf16.msra.mxu0 %v3231
  %3706 = vmatpush.bf16.msra.mxu0 %v3223
  %3707 = vmatpush.bf16.msra.mxu0 %v3215
  %3708 = vmatpush.bf16.msra.mxu0 %v3207
  %3709 = vmatpush.bf16.msra.mxu0 %v3199
  %3710 = vmatpush.bf16.msra.mxu0 %v3191
  %3711 = vmatpush.bf16.msra.mxu0 %v3183
  %3712 = vmatmul.bf16.gmra.mxu0 %v2375
  %v3713 = vpop.f32.mrf.mxu0
  %v3714 = vadd.f32 %v2579, %v3713
  %v3715 = vpop.f32.mrf.mxu0
  %3716 = vdwg.mxu0
  %3717 = vmatpush.bf16.msra.mxu0 %v3303
  %3718 = vmatpush.bf16.msra.mxu0 %v3295
  %3719 = vmatpush.bf16.msra.mxu0 %v3287
  %3720 = vmatpush.bf16.msra.mxu0 %v3279
  %3721 = vmatpush.bf16.msra.mxu0 %v3271
  %3722 = vmatpush.bf16.msra.mxu0 %v3263
  %3723 = vmatpush.bf16.msra.mxu0 %v3255
  %3724 = vmatpush.bf16.msra.mxu0 %v3247
  %3725 = vmatmul.bf16.gmra.mxu0 %v2376
  %v3726 = vpop.f32.mrf.mxu0
  %v3727 = vadd.f32 %v3714, %v3726
  %v3728 = vpop.f32.mrf.mxu0
  %3729 = vdwg.mxu0
  %3730 = vmatpush.bf16.msra.mxu0 %v3367
  %3731 = vmatpush.bf16.msra.mxu0 %v3359
  %3732 = vmatpush.bf16.msra.mxu0 %v3351
  %3733 = vmatpush.bf16.msra.mxu0 %v3343
  %3734 = vmatpush.bf16.msra.mxu0 %v3335
  %3735 = vmatpush.bf16.msra.mxu0 %v3327
  %3736 = vmatpush.bf16.msra.mxu0 %v3319
  %3737 = vmatpush.bf16.msra.mxu0 %v3311
  %3738 = vmatmul.bf16.gmra.mxu0 %v2377
  %v3739 = vpop.f32.mrf.mxu0
  %v3740 = vadd.f32 %v3727, %v3739
  %v3741 = vpop.f32.mrf.mxu0
  %3742 = vdwg.mxu0
  %3743 = vmatpush.bf16.msra.mxu0 0
  %3744 = vmatpush.bf16.msra.mxu0 0
  %3745 = vmatpush.bf16.msra.mxu0 0
  %3746 = vmatpush.bf16.msra.mxu0 0
  %3747 = vmatpush.bf16.msra.mxu0 0
  %3748 = vmatpush.bf16.msra.mxu0 0
  %3749 = vmatpush.bf16.msra.mxu0 0
  %3750 = vmatpush.bf16.msra.mxu0 %v3583
  %3751 = vmatmul.bf16.gmra.mxu0 %v3574
  %v3752 = vpop.f32.mrf.mxu0
  %v3753 = vadd.f32 %v3740, %v3752
  %v3754 = vpop.f32.mrf.mxu0
  %3755 = vdwg.mxu0
  %3756 = vmatpush.bf16.msra.mxu0 %v3240
  %3757 = vmatpush.bf16.msra.mxu0 %v3232
  %3758 = vmatpush.bf16.msra.mxu0 %v3224
  %3759 = vmatpush.bf16.msra.mxu0 %v3216
  %3760 = vmatpush.bf16.msra.mxu0 %v3208
  %3761 = vmatpush.bf16.msra.mxu0 %v3200
  %3762 = vmatpush.bf16.msra.mxu0 %v3192
  %3763 = vmatpush.bf16.msra.mxu0 %v3184
  %3764 = vmatmul.bf16.gmra.mxu0 %v2375
  %v3765 = vpop.f32.mrf.mxu0
  %v3766 = vadd.f32 %v2580, %v3765
  %v3767 = vpop.f32.mrf.mxu0
  %3768 = vdwg.mxu0
  %3769 = vmatpush.bf16.msra.mxu0 %v3304
  %3770 = vmatpush.bf16.msra.mxu0 %v3296
  %3771 = vmatpush.bf16.msra.mxu0 %v3288
  %3772 = vmatpush.bf16.msra.mxu0 %v3280
  %3773 = vmatpush.bf16.msra.mxu0 %v3272
  %3774 = vmatpush.bf16.msra.mxu0 %v3264
  %3775 = vmatpush.bf16.msra.mxu0 %v3256
  %3776 = vmatpush.bf16.msra.mxu0 %v3248
  %3777 = vmatmul.bf16.gmra.mxu0 %v2376
  %v3778 = vpop.f32.mrf.mxu0
  %v3779 = vadd.f32 %v3766, %v3778
  %v3780 = vpop.f32.mrf.mxu0
  %3781 = vdwg.mxu0
  %3782 = vmatpush.bf16.msra.mxu0 %v3368
  %3783 = vmatpush.bf16.msra.mxu0 %v3360
  %3784 = vmatpush.bf16.msra.mxu0 %v3352
  %3785 = vmatpush.bf16.msra.mxu0 %v3344
  %3786 = vmatpush.bf16.msra.mxu0 %v3336
  %3787 = vmatpush.bf16.msra.mxu0 %v3328
  %3788 = vmatpush.bf16.msra.mxu0 %v3320
  %3789 = vmatpush.bf16.msra.mxu0 %v3312
  %3790 = vmatmul.bf16.gmra.mxu0 %v2377
  %v3791 = vpop.f32.mrf.mxu0
  %v3792 = vadd.f32 %v3779, %v3791
  %v3793 = vpop.f32.mrf.mxu0
  %3794 = vdwg.mxu0
  %3795 = vmatpush.bf16.msra.mxu0 0
  %3796 = vmatpush.bf16.msra.mxu0 0
  %3797 = vmatpush.bf16.msra.mxu0 0
  %3798 = vmatpush.bf16.msra.mxu0 0
  %3799 = vmatpush.bf16.msra.mxu0 0
  %3800 = vmatpush.bf16.msra.mxu0 0
  %3801 = vmatpush.bf16.msra.mxu0 0
  %3802 = vmatpush.bf16.msra.mxu0 %v3586
  %3803 = vmatmul.bf16.gmra.mxu0 %v3574
  %v3804 = vpop.f32.mrf.mxu0
  %v3805 = vadd.f32 %v3792, %v3804
  %v3806 = vpop.f32.mrf.mxu0
  %3807 = vdwg.mxu0
  %3808 = vmatpush.bf16.msra.mxu0 %v3241
  %3809 = vmatpush.bf16.msra.mxu0 %v3233
  %3810 = vmatpush.bf16.msra.mxu0 %v3225
  %3811 = vmatpush.bf16.msra.mxu0 %v3217
  %3812 = vmatpush.bf16.msra.mxu0 %v3209
  %3813 = vmatpush.bf16.msra.mxu0 %v3201
  %3814 = vmatpush.bf16.msra.mxu0 %v3193
  %3815 = vmatpush.bf16.msra.mxu0 %v3185
  %3816 = vmatmul.bf16.gmra.mxu0 %v2375
  %v3817 = vpop.f32.mrf.mxu0
  %v3818 = vadd.f32 %v2581, %v3817
  %v3819 = vpop.f32.mrf.mxu0
  %3820 = vdwg.mxu0
  %3821 = vmatpush.bf16.msra.mxu0 %v3305
  %3822 = vmatpush.bf16.msra.mxu0 %v3297
  %3823 = vmatpush.bf16.msra.mxu0 %v3289
  %3824 = vmatpush.bf16.msra.mxu0 %v3281
  %3825 = vmatpush.bf16.msra.mxu0 %v3273
  %3826 = vmatpush.bf16.msra.mxu0 %v3265
  %3827 = vmatpush.bf16.msra.mxu0 %v3257
  %3828 = vmatpush.bf16.msra.mxu0 %v3249
  %3829 = vmatmul.bf16.gmra.mxu0 %v2376
  %v3830 = vpop.f32.mrf.mxu0
  %v3831 = vadd.f32 %v3818, %v3830
  %v3832 = vpop.f32.mrf.mxu0
  %3833 = vdwg.mxu0
  %3834 = vmatpush.bf16.msra.mxu0 %v3369
  %3835 = vmatpush.bf16.msra.mxu0 %v3361
  %3836 = vmatpush.bf16.msra.mxu0 %v3353
  %3837 = vmatpush.bf16.msra.mxu0 %v3345
  %3838 = vmatpush.bf16.msra.mxu0 %v3337
  %3839 = vmatpush.bf16.msra.mxu0 %v3329
  %3840 = vmatpush.bf16.msra.mxu0 %v3321
  %3841 = vmatpush.bf16.msra.mxu0 %v3313
  %3842 = vmatmul.bf16.gmra.mxu0 %v2377
  %v3843 = vpop.f32.mrf.mxu0
  %v3844 = vadd.f32 %v3831, %v3843
  %v3845 = vpop.f32.mrf.mxu0
  %3846 = vdwg.mxu0
  %3847 = vmatpush.bf16.msra.mxu0 0
  %3848 = vmatpush.bf16.msra.mxu0 0
  %3849 = vmatpush.bf16.msra.mxu0 0
  %3850 = vmatpush.bf16.msra.mxu0 0
  %3851 = vmatpush.bf16.msra.mxu0 0
  %3852 = vmatpush.bf16.msra.mxu0 0
  %3853 = vmatpush.bf16.msra.mxu0 0
  %3854 = vmatpush.bf16.msra.mxu0 %v3589
  %3855 = vmatmul.bf16.gmra.mxu0 %v3574
  %v3856 = vpop.f32.mrf.mxu0
  %v3857 = vadd.f32 %v3844, %v3856
  %v3858 = vpop.f32.mrf.mxu0
  %3859 = vdwg.mxu0
  %3860 = vmatpush.bf16.msra.mxu0 %v3242
  %3861 = vmatpush.bf16.msra.mxu0 %v3234
  %3862 = vmatpush.bf16.msra.mxu0 %v3226
  %3863 = vmatpush.bf16.msra.mxu0 %v3218
  %3864 = vmatpush.bf16.msra.mxu0 %v3210
  %3865 = vmatpush.bf16.msra.mxu0 %v3202
  %3866 = vmatpush.bf16.msra.mxu0 %v3194
  %3867 = vmatpush.bf16.msra.mxu0 %v3186
  %3868 = vmatmul.bf16.gmra.mxu0 %v2375
  %v3869 = vpop.f32.mrf.mxu0
  %v3870 = vadd.f32 %v2582, %v3869
  %v3871 = vpop.f32.mrf.mxu0
  %3872 = vdwg.mxu0
  %3873 = vmatpush.bf16.msra.mxu0 %v3306
  %3874 = vmatpush.bf16.msra.mxu0 %v3298
  %3875 = vmatpush.bf16.msra.mxu0 %v3290
  %3876 = vmatpush.bf16.msra.mxu0 %v3282
  %3877 = vmatpush.bf16.msra.mxu0 %v3274
  %3878 = vmatpush.bf16.msra.mxu0 %v3266
  %3879 = vmatpush.bf16.msra.mxu0 %v3258
  %3880 = vmatpush.bf16.msra.mxu0 %v3250
  %3881 = vmatmul.bf16.gmra.mxu0 %v2376
  %v3882 = vpop.f32.mrf.mxu0
  %v3883 = vadd.f32 %v3870, %v3882
  %v3884 = vpop.f32.mrf.mxu0
  %3885 = vdwg.mxu0
  %3886 = vmatpush.bf16.msra.mxu0 %v3370
  %3887 = vmatpush.bf16.msra.mxu0 %v3362
  %3888 = vmatpush.bf16.msra.mxu0 %v3354
  %3889 = vmatpush.bf16.msra.mxu0 %v3346
  %3890 = vmatpush.bf16.msra.mxu0 %v3338
  %3891 = vmatpush.bf16.msra.mxu0 %v3330
  %3892 = vmatpush.bf16.msra.mxu0 %v3322
  %3893 = vmatpush.bf16.msra.mxu0 %v3314
  %3894 = vmatmul.bf16.gmra.mxu0 %v2377
  %v3895 = vpop.f32.mrf.mxu0
  %v3896 = vadd.f32 %v3883, %v3895
  %v3897 = vpop.f32.mrf.mxu0
  %3898 = vdwg.mxu0
  %3899 = vmatpush.bf16.msra.mxu0 0
  %3900 = vmatpush.bf16.msra.mxu0 0
  %3901 = vmatpush.bf16.msra.mxu0 0
  %3902 = vmatpush.bf16.msra.mxu0 0
  %3903 = vmatpush.bf16.msra.mxu0 0
  %3904 = vmatpush.bf16.msra.mxu0 0
  %3905 = vmatpush.bf16.msra.mxu0 0
  %3906 = vmatpush.bf16.msra.mxu0 %v3592
  %3907 = vmatmul.bf16.gmra.mxu0 %v3574
  %v3908 = vpop.f32.mrf.mxu0
  %v3909 = vadd.f32 %v3896, %v3908
  %v3910 = vpop.f32.mrf.mxu0
  %3911 = vdwg.mxu0
  %3912 = vmatpush.bf16.msra.mxu0 %v3243
  %3913 = vmatpush.bf16.msra.mxu0 %v3235
  %3914 = vmatpush.bf16.msra.mxu0 %v3227
  %3915 = vmatpush.bf16.msra.mxu0 %v3219
  %3916 = vmatpush.bf16.msra.mxu0 %v3211
  %3917 = vmatpush.bf16.msra.mxu0 %v3203
  %3918 = vmatpush.bf16.msra.mxu0 %v3195
  %3919 = vmatpush.bf16.msra.mxu0 %v3187
  %3920 = vmatmul.bf16.gmra.mxu0 %v2375
  %v3921 = vpop.f32.mrf.mxu0
  %v3922 = vadd.f32 %v2583, %v3921
  %v3923 = vpop.f32.mrf.mxu0
  %3924 = vdwg.mxu0
  %3925 = vmatpush.bf16.msra.mxu0 %v3307
  %3926 = vmatpush.bf16.msra.mxu0 %v3299
  %3927 = vmatpush.bf16.msra.mxu0 %v3291
  %3928 = vmatpush.bf16.msra.mxu0 %v3283
  %3929 = vmatpush.bf16.msra.mxu0 %v3275
  %3930 = vmatpush.bf16.msra.mxu0 %v3267
  %3931 = vmatpush.bf16.msra.mxu0 %v3259
  %3932 = vmatpush.bf16.msra.mxu0 %v3251
  %3933 = vmatmul.bf16.gmra.mxu0 %v2376
  %v3934 = vpop.f32.mrf.mxu0
  %v3935 = vadd.f32 %v3922, %v3934
  %v3936 = vpop.f32.mrf.mxu0
  %3937 = vdwg.mxu0
  %3938 = vmatpush.bf16.msra.mxu0 %v3371
  %3939 = vmatpush.bf16.msra.mxu0 %v3363
  %3940 = vmatpush.bf16.msra.mxu0 %v3355
  %3941 = vmatpush.bf16.msra.mxu0 %v3347
  %3942 = vmatpush.bf16.msra.mxu0 %v3339
  %3943 = vmatpush.bf16.msra.mxu0 %v3331
  %3944 = vmatpush.bf16.msra.mxu0 %v3323
  %3945 = vmatpush.bf16.msra.mxu0 %v3315
  %3946 = vmatmul.bf16.gmra.mxu0 %v2377
  %v3947 = vpop.f32.mrf.mxu0
  %v3948 = vadd.f32 %v3935, %v3947
  %v3949 = vpop.f32.mrf.mxu0
  %3950 = vdwg.mxu0
  %3951 = vmatpush.bf16.msra.mxu0 0
  %3952 = vmatpush.bf16.msra.mxu0 0
  %3953 = vmatpush.bf16.msra.mxu0 0
  %3954 = vmatpush.bf16.msra.mxu0 0
  %3955 = vmatpush.bf16.msra.mxu0 0
  %3956 = vmatpush.bf16.msra.mxu0 0
  %3957 = vmatpush.bf16.msra.mxu0 0
  %3958 = vmatpush.bf16.msra.mxu0 %v3595
  %3959 = vmatmul.bf16.gmra.mxu0 %v3574
  %v3960 = vpop.f32.mrf.mxu0
  %v3961 = vadd.f32 %v3948, %v3960
  %v3962 = vpop.f32.mrf.mxu0
  %3963 = vdwg.mxu0
  %3964 = vmatpush.bf16.msra.mxu0 %v3244
  %3965 = vmatpush.bf16.msra.mxu0 %v3236
  %3966 = vmatpush.bf16.msra.mxu0 %v3228
  %3967 = vmatpush.bf16.msra.mxu0 %v3220
  %3968 = vmatpush.bf16.msra.mxu0 %v3212
  %3969 = vmatpush.bf16.msra.mxu0 %v3204
  %3970 = vmatpush.bf16.msra.mxu0 %v3196
  %3971 = vmatpush.bf16.msra.mxu0 %v3188
  %3972 = vmatmul.bf16.gmra.mxu0 %v2375
  %v3973 = vpop.f32.mrf.mxu0
  %v3974 = vadd.f32 %v2584, %v3973
  %v3975 = vpop.f32.mrf.mxu0
  %3976 = vdwg.mxu0
  %3977 = vmatpush.bf16.msra.mxu0 %v3308
  %3978 = vmatpush.bf16.msra.mxu0 %v3300
  %3979 = vmatpush.bf16.msra.mxu0 %v3292
  %3980 = vmatpush.bf16.msra.mxu0 %v3284
  %3981 = vmatpush.bf16.msra.mxu0 %v3276
  %3982 = vmatpush.bf16.msra.mxu0 %v3268
  %3983 = vmatpush.bf16.msra.mxu0 %v3260
  %3984 = vmatpush.bf16.msra.mxu0 %v3252
  %3985 = vmatmul.bf16.gmra.mxu0 %v2376
  %v3986 = vpop.f32.mrf.mxu0
  %v3987 = vadd.f32 %v3974, %v3986
  %v3988 = vpop.f32.mrf.mxu0
  %3989 = vdwg.mxu0
  %3990 = vmatpush.bf16.msra.mxu0 %v3372
  %3991 = vmatpush.bf16.msra.mxu0 %v3364
  %3992 = vmatpush.bf16.msra.mxu0 %v3356
  %3993 = vmatpush.bf16.msra.mxu0 %v3348
  %3994 = vmatpush.bf16.msra.mxu0 %v3340
  %3995 = vmatpush.bf16.msra.mxu0 %v3332
  %3996 = vmatpush.bf16.msra.mxu0 %v3324
  %3997 = vmatpush.bf16.msra.mxu0 %v3316
  %3998 = vmatmul.bf16.gmra.mxu0 %v2377
  %v3999 = vpop.f32.mrf.mxu0
  %v4000 = vadd.f32 %v3987, %v3999
  %v4001 = vpop.f32.mrf.mxu0
  %4002 = vdwg.mxu0
  %4003 = vmatpush.bf16.msra.mxu0 0
  %4004 = vmatpush.bf16.msra.mxu0 0
  %4005 = vmatpush.bf16.msra.mxu0 0
  %4006 = vmatpush.bf16.msra.mxu0 0
  %4007 = vmatpush.bf16.msra.mxu0 0
  %4008 = vmatpush.bf16.msra.mxu0 0
  %4009 = vmatpush.bf16.msra.mxu0 0
  %4010 = vmatpush.bf16.msra.mxu0 %v3598
  %4011 = vmatmul.bf16.gmra.mxu0 %v3574
  %v4012 = vpop.f32.mrf.mxu0
  %v4013 = vadd.f32 %v4000, %v4012
  %v4014 = vpop.f32.mrf.mxu0
  %4015 = vdwg.mxu0
  %v4016 = vmax.f32 %v3649, 0.0
  %v4017 = vmax.f32 %v3701, 0.0
  %v4018 = vmax.f32 %v3753, 0.0
  %v4019 = vmax.f32 %v3805, 0.0
  %v4020 = vmax.f32 %v3857, 0.0
  %v4021 = vmax.f32 %v3909, 0.0
  %v4022 = vmax.f32 %v3961, 0.0
  %v4023 = vmax.f32 %v4013, 0.0
  %v4024 = vmax.f32 %v4016, %v4017
  %4025 = vmax.xlane.f32.xlu0 %v4024
  %v4026 = vpop.xlane.xlu0 %4025
  %v4027 = vmax.f32 %v4018, %v4019
  %4028 = vmax.xlane.f32.xlu0 %v4027
  %v4029 = vpop.xlane.xlu0 %4028
  %v4030 = vmax.f32 %v4020, %v4021
  %4031 = vmax.xlane.f32.xlu0 %v4030
  %v4032 = vpop.xlane.xlu0 %4031
  %v4033 = vmax.f32 %v4022, %v4023
  %4034 = vmax.xlane.f32.xlu0 %v4033
  %v4035 = vpop.xlane.xlu0 %4034
  %vm4036 = vcmask 7168
  %v4037 = vsel %vm4036, %v4026, %v4029
  %vm4038 = vcmask 15360
  %v4039 = vsel %vm4038, %v4037, %v4032
  %vm4040 = vcmask 23552
  %v4041 = vsel %vm4040, %v4039, %v4035
  %v4042 = vsub.f32 %v4016, %v4026
  %v4043 = vsub.f32 %v4017, %v4026
  %v4044 = vsub.f32 %v4018, %v4029
  %v4045 = vsub.f32 %v4019, %v4029
  %v4046 = vsub.f32 %v4020, %v4032
  %v4047 = vsub.f32 %v4021, %v4032
  %v4048 = vsub.f32 %v4022, %v4035
  %v4049 = vsub.f32 %v4023, %v4035
  %v4050 = vmul.f32 %v4042, 1.442695
  %v4051 = vpow.pop %v4050
  %v4052 = vmul.f32 %v4043, 1.442695
  %v4053 = vpow.pop %v4052
  %v4054 = vmul.f32 %v4044, 1.442695
  %v4055 = vpow.pop %v4054
  %v4056 = vmul.f32 %v4045, 1.442695
  %v4057 = vpow.pop %v4056
  %v4058 = vmul.f32 %v4046, 1.442695
  %v4059 = vpow.pop %v4058
  %v4060 = vmul.f32 %v4047, 1.442695
  %v4061 = vpow.pop %v4060
  %v4062 = vmul.f32 %v4048, 1.442695
  %v4063 = vpow.pop %v4062
  %v4064 = vmul.f32 %v4049, 1.442695
  %v4065 = vpow.pop %v4064
  %v4066 = vld [vmem:[%s9] sm:$0xff]
  %v4067 = vld [vmem:[%s9 + $0x8] sm:$0xff]
  %v4068 = vld [vmem:[%s9 + $0x10] sm:$0xff]
  %v4069 = vld [vmem:[%s9 + $0x18] sm:$0xff]
  %v4070 = vld [vmem:[%s9 + $0x20] sm:$0xff]
  %v4071 = vld [vmem:[%s9 + $0x28] sm:$0xff]
  %v4072 = vld [vmem:[%s9 + $0x30] sm:$0xff]
  %v4073 = vld [vmem:[%s9 + $0x38] sm:$0xff]
  %v4074 = vld [vmem:[%s9 + $0x40] sm:$0xff]
  %v4075 = vld [vmem:[%s9 + $0x48] sm:$0xff]
  %v4076 = vld [vmem:[%s9 + $0x50] sm:$0xff]
  %v4077 = vld [vmem:[%s9 + $0x58] sm:$0xff]
  %v4078 = vld [vmem:[%s9 + $0x60] sm:$0xff]
  %v4079 = vld [vmem:[%s9 + $0x68] sm:$0xff]
  %v4080 = vld [vmem:[%s9 + $0x70] sm:$0xff]
  %v4081 = vld [vmem:[%s9 + $0x78] sm:$0xff]
  %v4082 = vld [vmem:[%s9 + $0x80] sm:$0xff]
  %v4083 = vld [vmem:[%s9 + $0x88] sm:$0xff]
  %v4084 = vld [vmem:[%s9 + $0x90] sm:$0xff]
  %v4085 = vld [vmem:[%s9 + $0x98] sm:$0xff]
  %v4086 = vld [vmem:[%s9 + $0xa0] sm:$0xff]
  %v4087 = vld [vmem:[%s9 + $0xa8] sm:$0xff]
  %v4088 = vld [vmem:[%s9 + $0xb0] sm:$0xff]
  %v4089 = vld [vmem:[%s9 + $0xb8] sm:$0xff]
  %v4090 = vld [vmem:[%s9 + $0xc0] sm:$0xff]
  %v4091 = vld [vmem:[%s9 + $0xc8] sm:$0xff]
  %v4092 = vld [vmem:[%s9 + $0xd0] sm:$0xff]
  %v4093 = vld [vmem:[%s9 + $0xd8] sm:$0xff]
  %v4094 = vld [vmem:[%s9 + $0xe0] sm:$0xff]
  %v4095 = vld [vmem:[%s9 + $0xe8] sm:$0xff]
  %v4096 = vld [vmem:[%s9 + $0xf0] sm:$0xff]
  %v4097 = vld [vmem:[%s9 + $0xf8] sm:$0xff]
  %v4098 = vld [vmem:[%s9 + $0x100] sm:$0xff]
  %v4099 = vld [vmem:[%s9 + $0x108] sm:$0xff]
  %v4100 = vld [vmem:[%s9 + $0x110] sm:$0xff]
  %v4101 = vld [vmem:[%s9 + $0x118] sm:$0xff]
  %v4102 = vld [vmem:[%s9 + $0x120] sm:$0xff]
  %v4103 = vld [vmem:[%s9 + $0x128] sm:$0xff]
  %v4104 = vld [vmem:[%s9 + $0x130] sm:$0xff]
  %v4105 = vld [vmem:[%s9 + $0x138] sm:$0xff]
  %v4106 = vld [vmem:[%s9 + $0x140] sm:$0xff]
  %v4107 = vld [vmem:[%s9 + $0x148] sm:$0xff]
  %v4108 = vld [vmem:[%s9 + $0x150] sm:$0xff]
  %v4109 = vld [vmem:[%s9 + $0x158] sm:$0xff]
  %v4110 = vld [vmem:[%s9 + $0x160] sm:$0xff]
  %v4111 = vld [vmem:[%s9 + $0x168] sm:$0xff]
  %v4112 = vld [vmem:[%s9 + $0x170] sm:$0xff]
  %v4113 = vld [vmem:[%s9 + $0x178] sm:$0xff]
  %v4114 = vld [vmem:[%s9 + $0x180] sm:$0xff]
  %v4115 = vld [vmem:[%s9 + $0x188] sm:$0xff]
  %v4116 = vld [vmem:[%s9 + $0x190] sm:$0xff]
  %v4117 = vld [vmem:[%s9 + $0x198] sm:$0xff]
  %v4118 = vld [vmem:[%s9 + $0x1a0] sm:$0xff]
  %v4119 = vld [vmem:[%s9 + $0x1a8] sm:$0xff]
  %v4120 = vld [vmem:[%s9 + $0x1b0] sm:$0xff]
  %v4121 = vld [vmem:[%s9 + $0x1b8] sm:$0xff]
  %v4122 = vld [vmem:[%s9 + $0x1c0] sm:$0xff]
  %v4123 = vld [vmem:[%s9 + $0x1c8] sm:$0xff]
  %v4124 = vld [vmem:[%s9 + $0x1d0] sm:$0xff]
  %v4125 = vld [vmem:[%s9 + $0x1d8] sm:$0xff]
  %v4126 = vld [vmem:[%s9 + $0x1e0] sm:$0xff]
  %v4127 = vld [vmem:[%s9 + $0x1e8] sm:$0xff]
  %v4128 = vld [vmem:[%s9 + $0x1f0] sm:$0xff]
  %v4129 = vld [vmem:[%s9 + $0x1f8] sm:$0xff]
  %v4130 = vld [vmem:[%s9 + $0x200] sm:$0xff]
  %v4131 = vld [vmem:[%s9 + $0x208] sm:$0xff]
  %v4132 = vld [vmem:[%s9 + $0x210] sm:$0xff]
  %v4133 = vld [vmem:[%s9 + $0x218] sm:$0xff]
  %v4134 = vld [vmem:[%s9 + $0x220] sm:$0xff]
  %v4135 = vld [vmem:[%s9 + $0x228] sm:$0xff]
  %v4136 = vld [vmem:[%s9 + $0x230] sm:$0xff]
  %v4137 = vld [vmem:[%s9 + $0x238] sm:$0xff]
  %v4138 = vld [vmem:[%s9 + $0x240] sm:$0xff]
  %v4139 = vld [vmem:[%s9 + $0x248] sm:$0xff]
  %v4140 = vld [vmem:[%s9 + $0x250] sm:$0xff]
  %v4141 = vld [vmem:[%s9 + $0x258] sm:$0xff]
  %v4142 = vld [vmem:[%s9 + $0x260] sm:$0xff]
  %v4143 = vld [vmem:[%s9 + $0x268] sm:$0xff]
  %v4144 = vld [vmem:[%s9 + $0x270] sm:$0xff]
  %v4145 = vld [vmem:[%s9 + $0x278] sm:$0xff]
  %v4146 = vld [vmem:[%s9 + $0x280] sm:$0xff]
  %v4147 = vld [vmem:[%s9 + $0x288] sm:$0xff]
  %v4148 = vld [vmem:[%s9 + $0x290] sm:$0xff]
  %v4149 = vld [vmem:[%s9 + $0x298] sm:$0xff]
  %v4150 = vld [vmem:[%s9 + $0x2a0] sm:$0xff]
  %v4151 = vld [vmem:[%s9 + $0x2a8] sm:$0xff]
  %v4152 = vld [vmem:[%s9 + $0x2b0] sm:$0xff]
  %v4153 = vld [vmem:[%s9 + $0x2b8] sm:$0xff]
  %v4154 = vld [vmem:[%s9 + $0x2c0] sm:$0xff]
  %v4155 = vld [vmem:[%s9 + $0x2c8] sm:$0xff]
  %v4156 = vld [vmem:[%s9 + $0x2d0] sm:$0xff]
  %v4157 = vld [vmem:[%s9 + $0x2d8] sm:$0xff]
  %v4158 = vld [vmem:[%s9 + $0x2e0] sm:$0xff]
  %v4159 = vld [vmem:[%s9 + $0x2e8] sm:$0xff]
  %v4160 = vld [vmem:[%s9 + $0x2f0] sm:$0xff]
  %v4161 = vld [vmem:[%s9 + $0x2f8] sm:$0xff]
  %v4162 = vld [vmem:[%s9 + $0x300] sm:$0xff]
  %v4163 = vld [vmem:[%s9 + $0x308] sm:$0xff]
  %v4164 = vld [vmem:[%s9 + $0x310] sm:$0xff]
  %v4165 = vld [vmem:[%s9 + $0x318] sm:$0xff]
  %v4166 = vld [vmem:[%s9 + $0x320] sm:$0xff]
  %v4167 = vld [vmem:[%s9 + $0x328] sm:$0xff]
  %v4168 = vld [vmem:[%s9 + $0x330] sm:$0xff]
  %v4169 = vld [vmem:[%s9 + $0x338] sm:$0xff]
  %v4170 = vld [vmem:[%s9 + $0x340] sm:$0xff]
  %v4171 = vld [vmem:[%s9 + $0x348] sm:$0xff]
  %v4172 = vld [vmem:[%s9 + $0x350] sm:$0xff]
  %v4173 = vld [vmem:[%s9 + $0x358] sm:$0xff]
  %v4174 = vld [vmem:[%s9 + $0x360] sm:$0xff]
  %v4175 = vld [vmem:[%s9 + $0x368] sm:$0xff]
  %v4176 = vld [vmem:[%s9 + $0x370] sm:$0xff]
  %v4177 = vld [vmem:[%s9 + $0x378] sm:$0xff]
  %v4178 = vld [vmem:[%s9 + $0x380] sm:$0xff]
  %v4179 = vld [vmem:[%s9 + $0x388] sm:$0xff]
  %v4180 = vld [vmem:[%s9 + $0x390] sm:$0xff]
  %v4181 = vld [vmem:[%s9 + $0x398] sm:$0xff]
  %v4182 = vld [vmem:[%s9 + $0x3a0] sm:$0xff]
  %v4183 = vld [vmem:[%s9 + $0x3a8] sm:$0xff]
  %v4184 = vld [vmem:[%s9 + $0x3b0] sm:$0xff]
  %v4185 = vld [vmem:[%s9 + $0x3b8] sm:$0xff]
  %v4186 = vld [vmem:[%s9 + $0x3c0] sm:$0xff]
  %v4187 = vld [vmem:[%s9 + $0x3c8] sm:$0xff]
  %v4188 = vld [vmem:[%s9 + $0x3d0] sm:$0xff]
  %v4189 = vld [vmem:[%s9 + $0x3d8] sm:$0xff]
  %v4190 = vld [vmem:[%s9 + $0x3e0] sm:$0xff]
  %v4191 = vld [vmem:[%s9 + $0x3e8] sm:$0xff]
  %v4192 = vld [vmem:[%s9 + $0x3f0] sm:$0xff]
  %v4193 = vld [vmem:[%s9 + $0x3f8] sm:$0xff]
  %4194 = vmatpush.msra.mxu0 %v4081
  %4195 = vmatpush.msra.mxu0 %v4080
  %4196 = vmatpush.msra.mxu0 %v4079
  %4197 = vmatpush.msra.mxu0 %v4078
  %4198 = vmatpush.msra.mxu0 %v4077
  %4199 = vmatpush.msra.mxu0 %v4076
  %4200 = vmatpush.msra.mxu0 %v4075
  %4201 = vmatpush.msra.mxu0 %v4074
  %4202 = vmatpush.msra.mxu0 %v4073
  %4203 = vmatpush.msra.mxu0 %v4072
  %4204 = vmatpush.msra.mxu0 %v4071
  %4205 = vmatpush.msra.mxu0 %v4070
  %4206 = vmatpush.msra.mxu0 %v4069
  %4207 = vmatpush.msra.mxu0 %v4068
  %4208 = vmatpush.msra.mxu0 %v4067
  %4209 = vmatpush.msra.mxu0 %v4066
  %4210 = vmatmul.f32.gmra.mxu0 %v4051
  %v4211 = vpop.f32.mrf.mxu0
  %v4212 = vadd.f32 0.0, %v4211
  %4213 = vdwg.mxu0
  %4214 = vmatpush.msra.mxu0 %v4097
  %4215 = vmatpush.msra.mxu0 %v4096
  %4216 = vmatpush.msra.mxu0 %v4095
  %4217 = vmatpush.msra.mxu0 %v4094
  %4218 = vmatpush.msra.mxu0 %v4093
  %4219 = vmatpush.msra.mxu0 %v4092
  %4220 = vmatpush.msra.mxu0 %v4091
  %4221 = vmatpush.msra.mxu0 %v4090
  %4222 = vmatpush.msra.mxu0 %v4089
  %4223 = vmatpush.msra.mxu0 %v4088
  %4224 = vmatpush.msra.mxu0 %v4087
  %4225 = vmatpush.msra.mxu0 %v4086
  %4226 = vmatpush.msra.mxu0 %v4085
  %4227 = vmatpush.msra.mxu0 %v4084
  %4228 = vmatpush.msra.mxu0 %v4083
  %4229 = vmatpush.msra.mxu0 %v4082
  %4230 = vmatmul.f32.gmra.mxu0 %v4053
  %v4231 = vpop.f32.mrf.mxu0
  %v4232 = vadd.f32 %v4212, %v4231
  %4233 = vdwg.mxu0
  %4234 = vmatpush.msra.mxu0 %v4113
  %4235 = vmatpush.msra.mxu0 %v4112
  %4236 = vmatpush.msra.mxu0 %v4111
  %4237 = vmatpush.msra.mxu0 %v4110
  %4238 = vmatpush.msra.mxu0 %v4109
  %4239 = vmatpush.msra.mxu0 %v4108
  %4240 = vmatpush.msra.mxu0 %v4107
  %4241 = vmatpush.msra.mxu0 %v4106
  %4242 = vmatpush.msra.mxu0 %v4105
  %4243 = vmatpush.msra.mxu0 %v4104
  %4244 = vmatpush.msra.mxu0 %v4103
  %4245 = vmatpush.msra.mxu0 %v4102
  %4246 = vmatpush.msra.mxu0 %v4101
  %4247 = vmatpush.msra.mxu0 %v4100
  %4248 = vmatpush.msra.mxu0 %v4099
  %4249 = vmatpush.msra.mxu0 %v4098
  %4250 = vmatmul.f32.gmra.mxu0 %v4055
  %v4251 = vpop.f32.mrf.mxu0
  %v4252 = vadd.f32 %v4232, %v4251
  %4253 = vdwg.mxu0
  %4254 = vmatpush.msra.mxu0 %v4129
  %4255 = vmatpush.msra.mxu0 %v4128
  %4256 = vmatpush.msra.mxu0 %v4127
  %4257 = vmatpush.msra.mxu0 %v4126
  %4258 = vmatpush.msra.mxu0 %v4125
  %4259 = vmatpush.msra.mxu0 %v4124
  %4260 = vmatpush.msra.mxu0 %v4123
  %4261 = vmatpush.msra.mxu0 %v4122
  %4262 = vmatpush.msra.mxu0 %v4121
  %4263 = vmatpush.msra.mxu0 %v4120
  %4264 = vmatpush.msra.mxu0 %v4119
  %4265 = vmatpush.msra.mxu0 %v4118
  %4266 = vmatpush.msra.mxu0 %v4117
  %4267 = vmatpush.msra.mxu0 %v4116
  %4268 = vmatpush.msra.mxu0 %v4115
  %4269 = vmatpush.msra.mxu0 %v4114
  %4270 = vmatmul.f32.gmra.mxu0 %v4057
  %v4271 = vpop.f32.mrf.mxu0
  %v4272 = vadd.f32 %v4252, %v4271
  %4273 = vdwg.mxu0
  %4274 = vmatpush.msra.mxu0 %v4145
  %4275 = vmatpush.msra.mxu0 %v4144
  %4276 = vmatpush.msra.mxu0 %v4143
  %4277 = vmatpush.msra.mxu0 %v4142
  %4278 = vmatpush.msra.mxu0 %v4141
  %4279 = vmatpush.msra.mxu0 %v4140
  %4280 = vmatpush.msra.mxu0 %v4139
  %4281 = vmatpush.msra.mxu0 %v4138
  %4282 = vmatpush.msra.mxu0 %v4137
  %4283 = vmatpush.msra.mxu0 %v4136
  %4284 = vmatpush.msra.mxu0 %v4135
  %4285 = vmatpush.msra.mxu0 %v4134
  %4286 = vmatpush.msra.mxu0 %v4133
  %4287 = vmatpush.msra.mxu0 %v4132
  %4288 = vmatpush.msra.mxu0 %v4131
  %4289 = vmatpush.msra.mxu0 %v4130
  %4290 = vmatmul.f32.gmra.mxu0 %v4059
  %v4291 = vpop.f32.mrf.mxu0
  %v4292 = vadd.f32 %v4272, %v4291
  %4293 = vdwg.mxu0
  %4294 = vmatpush.msra.mxu0 %v4161
  %4295 = vmatpush.msra.mxu0 %v4160
  %4296 = vmatpush.msra.mxu0 %v4159
  %4297 = vmatpush.msra.mxu0 %v4158
  %4298 = vmatpush.msra.mxu0 %v4157
  %4299 = vmatpush.msra.mxu0 %v4156
  %4300 = vmatpush.msra.mxu0 %v4155
  %4301 = vmatpush.msra.mxu0 %v4154
  %4302 = vmatpush.msra.mxu0 %v4153
  %4303 = vmatpush.msra.mxu0 %v4152
  %4304 = vmatpush.msra.mxu0 %v4151
  %4305 = vmatpush.msra.mxu0 %v4150
  %4306 = vmatpush.msra.mxu0 %v4149
  %4307 = vmatpush.msra.mxu0 %v4148
  %4308 = vmatpush.msra.mxu0 %v4147
  %4309 = vmatpush.msra.mxu0 %v4146
  %4310 = vmatmul.f32.gmra.mxu0 %v4061
  %v4311 = vpop.f32.mrf.mxu0
  %v4312 = vadd.f32 %v4292, %v4311
  %4313 = vdwg.mxu0
  %4314 = vmatpush.msra.mxu0 %v4177
  %4315 = vmatpush.msra.mxu0 %v4176
  %4316 = vmatpush.msra.mxu0 %v4175
  %4317 = vmatpush.msra.mxu0 %v4174
  %4318 = vmatpush.msra.mxu0 %v4173
  %4319 = vmatpush.msra.mxu0 %v4172
  %4320 = vmatpush.msra.mxu0 %v4171
  %4321 = vmatpush.msra.mxu0 %v4170
  %4322 = vmatpush.msra.mxu0 %v4169
  %4323 = vmatpush.msra.mxu0 %v4168
  %4324 = vmatpush.msra.mxu0 %v4167
  %4325 = vmatpush.msra.mxu0 %v4166
  %4326 = vmatpush.msra.mxu0 %v4165
  %4327 = vmatpush.msra.mxu0 %v4164
  %4328 = vmatpush.msra.mxu0 %v4163
  %4329 = vmatpush.msra.mxu0 %v4162
  %4330 = vmatmul.f32.gmra.mxu0 %v4063
  %v4331 = vpop.f32.mrf.mxu0
  %v4332 = vadd.f32 %v4312, %v4331
  %4333 = vdwg.mxu0
  %4334 = vmatpush.msra.mxu0 %v4193
  %4335 = vmatpush.msra.mxu0 %v4192
  %4336 = vmatpush.msra.mxu0 %v4191
  %4337 = vmatpush.msra.mxu0 %v4190
  %4338 = vmatpush.msra.mxu0 %v4189
  %4339 = vmatpush.msra.mxu0 %v4188
  %4340 = vmatpush.msra.mxu0 %v4187
  %4341 = vmatpush.msra.mxu0 %v4186
  %4342 = vmatpush.msra.mxu0 %v4185
  %4343 = vmatpush.msra.mxu0 %v4184
  %4344 = vmatpush.msra.mxu0 %v4183
  %4345 = vmatpush.msra.mxu0 %v4182
  %4346 = vmatpush.msra.mxu0 %v4181
  %4347 = vmatpush.msra.mxu0 %v4180
  %4348 = vmatpush.msra.mxu0 %v4179
  %4349 = vmatpush.msra.mxu0 %v4178
  %4350 = vmatmul.f32.gmra.mxu0 %v4065
  %v4351 = vpop.f32.mrf.mxu0
  %v4352 = vadd.f32 %v4332, %v4351
  %4353 = vdwg.mxu0
  %v4354 = vadd.f32 %v4352, 1e-08
  %4356 = vrot.lane.b32.xlu0 %v4354, 4
  %v4357 = vpop.permute.xlu0 %4356
  %v4359 = vrcp.pop %v4357
  %v4360 = vmul.f32 %v4357, %v4359
  %v4361 = vsub.f32 1.0, %v4360
  %v4362 = vmul.f32 %v4359, %v4361
  %v4363 = vadd.f32 %v4359, %v4362
  %vm4364 = vweird.f32 %v4357
  %vm4365 = vweird.f32 %v4359
  %vm4366 = vmor %vm4364, %vm4365
  %v4367 = vsel %vm4366, %v4359, %v4363
  %v4368 = vand.u32 2147483647, %v4357
  %vm4369 = vcmp.eq.f32.partialorder %v4368, 8.507059e+37
  %v4370 = vand.u32 %v4357, 2147483648
  %v4371 = vor.u32 1.1754944e-38, %v4370
  %v4372 = vsel %vm4369, %v4371, %v4367
  %v4373 = vmul.f32 %v4352, %v4372
  %4374 = vrot.lane.b32.xlu0 %v4354, 8
  %v4375 = vpop.permute.xlu0 %4374
  %v4377 = vrcp.pop %v4375
  %v4378 = vmul.f32 %v4375, %v4377
  %v4379 = vsub.f32 1.0, %v4378
  %v4380 = vmul.f32 %v4377, %v4379
  %v4381 = vadd.f32 %v4377, %v4380
  %vm4382 = vweird.f32 %v4375
  %vm4383 = vweird.f32 %v4377
  %vm4384 = vmor %vm4382, %vm4383
  %v4385 = vsel %vm4384, %v4377, %v4381
  %v4386 = vand.u32 2147483647, %v4375
  %vm4387 = vcmp.eq.f32.partialorder %v4386, 8.507059e+37
  %v4388 = vand.u32 %v4375, 2147483648
  %v4389 = vor.u32 1.1754944e-38, %v4388
  %v4390 = vsel %vm4387, %v4389, %v4385
  %v4391 = vmul.f32 %v4352, %v4390
  %v4392 = vsub.f32 %v4041, 0.5
  %v4393 = vmul.f32 %v4392, 1000.0
  %v4394 = vsub.f32 0.0, %v4393
  %v4395 = vmul.f32 %v4394, 1.442695
  %v4396 = vpow.pop %v4395
  %v4397 = vadd.f32 %v4396, 1.0
  %v4398 = vrcp.pop %v4397
  %v4399 = vmul.f32 %v4397, %v4398
  %v4400 = vsub.f32 1.0, %v4399
  %v4401 = vmul.f32 %v4398, %v4400
  %v4402 = vadd.f32 %v4398, %v4401
  %vm4403 = vweird.f32 %v4397
  %vm4404 = vweird.f32 %v4398
  %vm4405 = vmor %vm4403, %vm4404
  %v4406 = vsel %vm4405, %v4398, %v4402
  %v4407 = vand.u32 2147483647, %v4397
  %vm4408 = vcmp.eq.f32.partialorder %v4407, 8.507059e+37
  %v4409 = vand.u32 %v4397, 2147483648
  %v4410 = vor.u32 1.1754944e-38, %v4409
  %v4411 = vsel %vm4408, %v4410, %v4406
  %v4412 = vmul.f32 1.0, %v4411
  %4414 = vrot.lane.b32.xlu0 %v4373, 124
  %v4415 = vpop.permute.xlu0 %4414
  %4418 = vrot.lane.b32.xlu0 %v4391, 124
  %v4419 = vpop.permute.xlu0 %4418
  %4422 = vrot.lane.b32.xlu0 %v4412, 8
  %v4423 = vpop.permute.xlu0 %4422
  %vm4425 = vcmask 31744
  %v4426 = vsel %vm4425, %v4415, %v4419
  %v4427 = vsel %vm2156, %v4426, %v4423
  %vm4428 = vcmask 97280
  %4429 = vst.msk [vmem:[%s10] sm:$0xff] %vm4428, %v4427
  // Predicated region
  $region57: #{forward.1} parent=0 // pred_check
    _
  $region58: #{forward.1} parent=0 // pred_check_branch
    %4431 = sbr.rel (0) target = $region60
  $region59: #{forward.1} parent=0 // pred_region
    _
  $region60: #{forward.1} parent=0 // pred_fallthru
    _
  // Predicated region
  $region61: #{forward.1} parent=0 // pred_check
    _
  $region62: #{forward.1} parent=0 // pred_check_branch
    %4433 = sbr.rel (0) target = $region64
  $region63: #{forward.1} parent=0 // pred_region
    _
  $region64: #{forward.1} parent=0 // pred_fallthru
    _
  %4434 = vsyncmov [#allocation3]
  %s4435 = vpop.sfrf %4434
  %p4436 = scmp.eq.s32.totalorder %s4435, 0
  %p4437 = pneg %p4436
  %4439 = shalt.err (%p4437)

</llo_original>
